<compile_context>
chip_gen: v5e
topology: v5e:2x2
jax: 0.10.0
libtpu: 0.0.40
codegen_flags: <defaults>
</compile_context>

<pallas_src>
import jax
import jax.numpy as jnp
from jax.experimental import pallas as pl
from jax.experimental.pallas import tpu as pltpu

# ---- small, module-consistent sizes ----
HOP = 320              # wav2vec2-style frame hop (stand-in downsampling factor)
SSL_DIM = 64           # stands in for ssl_model_output_dim (=768 in the real module)
MEAN_NET_DNN_DIM = 32  # mean_net_dnn_dim
OUT_DIM = 1            # output_type == 'scalar' -> 1

# Row tile (multiple of 256 for v6e/v7x MXU rows; see header for per-chip guidance).
TM = 1024


def sslmos_kernel(frames_ref, wssl_ref, bssl_ref, w1_ref, b1_ref, w2_ref, b2_ref,
                  enc_ref, score_ref):
    # --- SSL encoder stand-in: linear frame projection (dominant, bf16-native MXU matmul) ---
    enc = jnp.dot(frames_ref[...], wssl_ref[...],
                  preferred_element_type=jnp.float32) + bssl_ref[...]
    enc_ref[...] = enc.astype(enc_ref.dtype)

    # --- mean_net_dnn (Projection): Linear -> ReLU -> (Dropout=id at eval) -> Linear ---
    h = jnp.dot(enc, w1_ref[...], preferred_element_type=jnp.float32) + b1_ref[...]
    h = jnp.maximum(h, 0.0)

    # Final layer has a single output unit: contract against the w2 row so the tile's
    # scores come out lane-dense as a single (1, TM) row (standard q@k^T-style NT matmul;
    # avoids a (TM,1) result and per-row masked stores).
    y = jnp.einsum("od,td->ot", w2_ref[...], h,
                   preferred_element_type=jnp.float32) + b2_ref[...]

    # --- range clipping: tanh(y) * 2 + 3 ---
    score_ref[...] = (jnp.tanh(y) * 2.0 + 3.0).reshape(score_ref.shape).astype(score_ref.dtype)


def sslmos_forward(waveform, waveform_lengths, params, *, tm=TM):
    """Forward pass (use_listener_modeling=False path)."""
    B, T = waveform.shape
    n_frames = T // HOP
    rows = B * n_frames

    # Frame + bf16 cast: one XLA producer fusion (read f32 once, write bf16 once);
    # the kernel then streams half the bytes of the f32 path.
    frames = waveform[:, : n_frames * HOP].reshape(rows, HOP).astype(jnp.bfloat16)

    # No wrapper-side padding: the grid rounds up and Pallas masks the partial last block
    # (OOB reads are garbage in rows that are sliced off below; OOB writes are dropped).
    num_tiles = pl.cdiv(rows, tm)

    wssl = params["wssl"].astype(jnp.bfloat16)
    bssl, w1, b1, w2, b2 = (params[k] for k in ("bssl", "w1", "b1", "w2", "b2"))

    cost = pl.CostEstimate(
        flops=int(2 * rows * (HOP * SSL_DIM
                              + SSL_DIM * MEAN_NET_DNN_DIM
                              + MEAN_NET_DNN_DIM * OUT_DIM)),
        transcendentals=int(rows),                      # one tanh per row
        bytes_accessed=int(rows * HOP * 2               # bf16 frames read
                           + rows * SSL_DIM * 2         # bf16 enc write
                           + rows * 4                   # f32 scores write
                           + HOP * SSL_DIM * 2          # bf16 wssl
                           + SSL_DIM * MEAN_NET_DNN_DIM * 4),
    )

    enc, score_slab = pl.pallas_call(
        sslmos_kernel,
        out_shape=(
            jax.ShapeDtypeStruct((rows, SSL_DIM), jnp.bfloat16),     # ssl_embeddings (bf16)
            jax.ShapeDtypeStruct((num_tiles, 1, tm), jnp.float32),   # lane-dense score slab
        ),
        grid=(num_tiles,),
        in_specs=[
            pl.BlockSpec((tm, HOP), lambda i: (i, 0)),                 # streamed frame tile
            pl.BlockSpec((HOP, SSL_DIM), lambda i: (0, 0)),            # constant -> VMEM resident
            pl.BlockSpec((1, SSL_DIM), lambda i: (0, 0)),
            pl.BlockSpec((SSL_DIM, MEAN_NET_DNN_DIM), lambda i: (0, 0)),
            pl.BlockSpec((1, MEAN_NET_DNN_DIM), lambda i: (0, 0)),
            pl.BlockSpec((1, MEAN_NET_DNN_DIM), lambda i: (0, 0)),     # w2 row (out=1)
            pl.BlockSpec((1, 1), lambda i: (0, 0)),                    # b2
        ],
        out_specs=(
            pl.BlockSpec((tm, SSL_DIM), lambda i: (i, 0)),
            pl.BlockSpec((1, 1, tm), lambda i: (i, 0, 0)),
        ),
        compiler_params=pltpu.CompilerParams(
            dimension_semantics=("parallel",)),   # row grid splits across v7x's 2 TCs
        cost_estimate=cost,
    )(frames, wssl, bssl, w1, b1, w2, b2)

    encoder_outputs = enc.reshape(B, n_frames, SSL_DIM)
    # Valid score for row r lives at slab[r // tm, 0, r % tm]; the flatten keeps garbage
    # (possibly NaN) strictly at indices >= rows, which the slice drops.
    mean_scores = score_slab.reshape(num_tiles * tm)[:rows].reshape(B, n_frames, OUT_DIM)
    # frame_lengths from the stand-in encoder's downsampling.
    frame_lengths = waveform_lengths // HOP

    return {
        "waveform_lengths": waveform_lengths,
        "frame_lengths": frame_lengths,
        "mean_scores": mean_scores,
        "ld_scores": None,               # use_listener_modeling = False
        "ssl_embeddings": encoder_outputs,
    }


def init_params(key):
    ks = jax.random.split(key, 6)
    scale = lambda fan_in: 1.0 / jnp.sqrt(jnp.float32(fan_in))
    return {
        "wssl": jax.random.normal(ks[0], (HOP, SSL_DIM), jnp.float32) * scale(HOP),
        "bssl": jnp.zeros((1, SSL_DIM), jnp.float32),
        "w1": jax.random.normal(ks[1], (SSL_DIM, MEAN_NET_DNN_DIM), jnp.float32) * scale(SSL_DIM),
        "b1": jax.random.normal(ks[2], (1, MEAN_NET_DNN_DIM), jnp.float32) * 0.01,
        # w2 stored as the (1, hidden) row of the final Linear (PyTorch weight layout).
        "w2": jax.random.normal(ks[3], (1, MEAN_NET_DNN_DIM), jnp.float32) * scale(MEAN_NET_DNN_DIM),
        "b2": jax.random.normal(ks[4], (1, 1), jnp.float32) * 0.01,
    }


def reference_forward(waveform, params):
    """Plain-JAX reference (matches the kernel's bf16 frame/wssl cast, f32 accumulation)."""
    B, T = waveform.shape
    n_frames = T // HOP
    frames = (waveform[:, : n_frames * HOP].reshape(B * n_frames, HOP)
              .astype(jnp.bfloat16).astype(jnp.float32))
    wssl = params["wssl"].astype(jnp.bfloat16).astype(jnp.float32)
    enc = frames @ wssl + params["bssl"]
    h = jnp.maximum(enc @ params["w1"] + params["b1"], 0.0)
    y = h @ params["w2"].T + params["b2"]
    scores = jnp.tanh(y) * 2.0 + 3.0
    return enc.reshape(B, n_frames, SSL_DIM), scores.reshape(B, n_frames, OUT_DIM)


if __name__ == "__main__":
    key = jax.random.PRNGKey(0)
    pkey, wkey = jax.random.split(key)
    params = init_params(pkey)

    B = 4
    n_frames = 300                         # rows = 1200 -> one full TM=1024 tile + one partial tile
    T = n_frames * HOP                     # 96000 samples (~6 s at 16 kHz)
    waveform = jax.random.normal(wkey, (B, T), jnp.float32)
    waveform_lengths = jnp.array([T, T - HOP * 3, T - HOP * 7, T // 2], dtype=jnp.int32)

    fwd = jax.jit(sslmos_forward)
    out = fwd(waveform, waveform_lengths, params)
    jax.block_until_ready(out["mean_scores"])

    # sanity check against plain-JAX reference (bf16 input path -> loosened tolerances)
    ref_enc, ref_scores = reference_forward(waveform, params)
    assert out["mean_scores"].shape == (B, n_frames, 1)
    assert out["ssl_embeddings"].shape == (B, n_frames, SSL_DIM)
    assert out["ssl_embeddings"].dtype == jnp.bfloat16
    assert bool(jnp.all(jnp.isfinite(out["mean_scores"])))
    assert jnp.allclose(out["mean_scores"], ref_scores, atol=2e-2)
    assert jnp.allclose(out["ssl_embeddings"].astype(jnp.float32), ref_enc, atol=6e-2)

    print("KERNEL_OK")
</pallas_src>

<mosaic_0001>
module attributes {stable_mosaic.version = 11 : i64} {
  func.func @sslmos_kernel(%arg0: i32, %arg1: memref<1024x320xbf16, #tpu.memory_space<vmem>>, %arg2: memref<320x64xbf16, #tpu.memory_space<vmem>>, %arg3: memref<1x64xf32, #tpu.memory_space<vmem>>, %arg4: memref<64x32xf32, #tpu.memory_space<vmem>>, %arg5: memref<1x32xf32, #tpu.memory_space<vmem>>, %arg6: memref<1x32xf32, #tpu.memory_space<vmem>>, %arg7: memref<1x1xf32, #tpu.memory_space<vmem>>, %arg8: memref<1024x64xbf16, #tpu.memory_space<vmem>>, %arg9: memref<1x1x1024xf32, #tpu.memory_space<vmem>>) attributes {dimension_semantics = [#tpu.dimension_semantics<parallel>], iteration_bounds = array<i64: 2>, scalar_prefetch = 0 : i64, scratch_operands = 0 : i64, tpu.core_type = #tpu.core_type<tc>, window_params = [{transform_indices = @transform_0, window_bounds = array<i64: 1024, 320>}, {pipeline_mode = #tpu.pipeline_mode<synchronous>, transform_indices = @transform_1, window_bounds = array<i64: 320, 64>}, {pipeline_mode = #tpu.pipeline_mode<synchronous>, transform_indices = @transform_2, window_bounds = array<i64: 1, 64>}, {pipeline_mode = #tpu.pipeline_mode<synchronous>, transform_indices = @transform_3, window_bounds = array<i64: 64, 32>}, {pipeline_mode = #tpu.pipeline_mode<synchronous>, transform_indices = @transform_4, window_bounds = array<i64: 1, 32>}, {pipeline_mode = #tpu.pipeline_mode<synchronous>, transform_indices = @transform_5, window_bounds = array<i64: 1, 32>}, {pipeline_mode = #tpu.pipeline_mode<synchronous>, transform_indices = @transform_6, window_bounds = array<i64: 1, 1>}, {transform_indices = @transform_7, window_bounds = array<i64: 1024, 64>}, {transform_indices = @transform_8, window_bounds = array<i64: 1, 1, 1024>}]} {
    %c0 = arith.constant 0 : index
    %c0_0 = arith.constant 0 : index
    %0 = vector.load %arg1[%c0, %c0_0] : memref<1024x320xbf16, #tpu.memory_space<vmem>>, vector<1024x320xbf16>
    %c0_1 = arith.constant 0 : index
    %c0_2 = arith.constant 0 : index
    %1 = vector.load %arg2[%c0_1, %c0_2] : memref<320x64xbf16, #tpu.memory_space<vmem>>, vector<320x64xbf16>
    %cst = arith.constant dense<0.000000e+00> : vector<1024x64xf32>
    %2 = tpu.matmul %0, %1, %cst {dimension_numbers = #tpu.dot_dimension_numbers<[1], [0], [0], [1], [0, 0, 1, 1], [], []>} : vector<1024x320xbf16>, vector<320x64xbf16>, vector<1024x64xf32> -> vector<1024x64xf32>
    %c0_3 = arith.constant 0 : index
    %c0_4 = arith.constant 0 : index
    %3 = vector.load %arg3[%c0_3, %c0_4] : memref<1x64xf32, #tpu.memory_space<vmem>>, vector<1x64xf32>
    %4 = vector.broadcast %3 : vector<1x64xf32> to vector<1024x64xf32>
    %5 = arith.addf %2, %4 : vector<1024x64xf32>
    %6 = arith.truncf %5 : vector<1024x64xf32> to vector<1024x64xbf16>
    %c0_5 = arith.constant 0 : index
    %c0_6 = arith.constant 0 : index
    %7 = vector.load %arg8[%c0_5, %c0_6] : memref<1024x64xbf16, #tpu.memory_space<vmem>>, vector<1024x64xbf16>
    tpu.vector_store %arg8[%c0_5, %c0_6], %6 {strides = array<i32>} : memref<1024x64xbf16, #tpu.memory_space<vmem>>, vector<1024x64xbf16>,
    %c0_7 = arith.constant 0 : index
    %c0_8 = arith.constant 0 : index
    %8 = vector.load %arg4[%c0_7, %c0_8] : memref<64x32xf32, #tpu.memory_space<vmem>>, vector<64x32xf32>
    %cst_9 = arith.constant dense<0.000000e+00> : vector<1024x32xf32>
    %9 = tpu.matmul %5, %8, %cst_9 {dimension_numbers = #tpu.dot_dimension_numbers<[1], [0], [0], [1], [0, 0, 1, 1], [], []>} : vector<1024x64xf32>, vector<64x32xf32>, vector<1024x32xf32> -> vector<1024x32xf32>
    %c0_10 = arith.constant 0 : index
    %c0_11 = arith.constant 0 : index
    %10 = vector.load %arg5[%c0_10, %c0_11] : memref<1x32xf32, #tpu.memory_space<vmem>>, vector<1x32xf32>
    %11 = vector.broadcast %10 : vector<1x32xf32> to vector<1024x32xf32>
    %12 = arith.addf %9, %11 : vector<1024x32xf32>
    %cst_12 = arith.constant 0.000000e+00 : f32
    %13 = vector.broadcast %cst_12 : f32 to vector<1024x32xf32>
    %14 = arith.maximumf %12, %13 : vector<1024x32xf32>
    %c0_13 = arith.constant 0 : index
    %c0_14 = arith.constant 0 : index
    %15 = vector.load %arg6[%c0_13, %c0_14] : memref<1x32xf32, #tpu.memory_space<vmem>>, vector<1x32xf32>
    "tpu.trace_start"() <{level = 10 : i32, message = "od,td->ot"}> : () -> ()
    %cst_15 = arith.constant dense<0.000000e+00> : vector<1x1024xf32>
    %16 = tpu.matmul %15, %14, %cst_15 {dimension_numbers = #tpu.dot_dimension_numbers<[1], [1], [0], [0], [0, 0, 1, 0], [], []>} : vector<1x32xf32>, vector<1024x32xf32>, vector<1x1024xf32> -> vector<1x1024xf32>
    "tpu.trace_stop"() : () -> ()
    %c0_16 = arith.constant 0 : index
    %c0_17 = arith.constant 0 : index
    %17 = vector.load %arg7[%c0_16, %c0_17] : memref<1x1xf32, #tpu.memory_space<vmem>>, vector<1x1xf32>
    %18 = vector.broadcast %17 : vector<1x1xf32> to vector<1x1024xf32>
    %19 = arith.addf %16, %18 : vector<1x1024xf32>
    %20 = math.tanh %19 : vector<1x1024xf32>
    %cst_18 = arith.constant 2.000000e+00 : f32
    %21 = vector.broadcast %cst_18 : f32 to vector<1x1024xf32>
    %22 = arith.mulf %20, %21 : vector<1x1024xf32>
    %cst_19 = arith.constant 3.000000e+00 : f32
    %23 = vector.broadcast %cst_19 : f32 to vector<1x1024xf32>
    %24 = arith.addf %22, %23 : vector<1x1024xf32>
    %25 = vector.shape_cast %24 : vector<1x1024xf32> to vector<1x1x1024xf32>
    %c0_20 = arith.constant 0 : index
    %c0_21 = arith.constant 0 : index
    %c0_22 = arith.constant 0 : index
    %26 = vector.load %arg9[%c0_20, %c0_21, %c0_22] : memref<1x1x1024xf32, #tpu.memory_space<vmem>>, vector<1x1x1024xf32>
    tpu.vector_store %arg9[%c0_20, %c0_21, %c0_22], %25 {strides = array<i32>} : memref<1x1x1024xf32, #tpu.memory_space<vmem>>, vector<1x1x1024xf32>,
    return
  }
  func.func @transform_0(%arg0: i32) -> (i32, i32) {
    %c0_i32 = arith.constant 0 : i32
    %c0_i32_0 = arith.constant 0 : i32
    return %arg0, %c0_i32 : i32, i32
  }
  func.func @transform_1(%arg0: i32) -> (i32, i32) {
    %c0_i32 = arith.constant 0 : i32
    %c0_i32_0 = arith.constant 0 : i32
    %c0_i32_1 = arith.constant 0 : i32
    return %c0_i32, %c0_i32_0 : i32, i32
  }
  func.func @transform_2(%arg0: i32) -> (i32, i32) {
    %c0_i32 = arith.constant 0 : i32
    %c0_i32_0 = arith.constant 0 : i32
    %c0_i32_1 = arith.constant 0 : i32
    return %c0_i32, %c0_i32_0 : i32, i32
  }
  func.func @transform_3(%arg0: i32) -> (i32, i32) {
    %c0_i32 = arith.constant 0 : i32
    %c0_i32_0 = arith.constant 0 : i32
    %c0_i32_1 = arith.constant 0 : i32
    return %c0_i32, %c0_i32_0 : i32, i32
  }
  func.func @transform_4(%arg0: i32) -> (i32, i32) {
    %c0_i32 = arith.constant 0 : i32
    %c0_i32_0 = arith.constant 0 : i32
    %c0_i32_1 = arith.constant 0 : i32
    return %c0_i32, %c0_i32_0 : i32, i32
  }
  func.func @transform_5(%arg0: i32) -> (i32, i32) {
    %c0_i32 = arith.constant 0 : i32
    %c0_i32_0 = arith.constant 0 : i32
    %c0_i32_1 = arith.constant 0 : i32
    return %c0_i32, %c0_i32_0 : i32, i32
  }
  func.func @transform_6(%arg0: i32) -> (i32, i32) {
    %c0_i32 = arith.constant 0 : i32
    %c0_i32_0 = arith.constant 0 : i32
    %c0_i32_1 = arith.constant 0 : i32
    return %c0_i32, %c0_i32_0 : i32, i32
  }
  func.func @transform_7(%arg0: i32) -> (i32, i32) {
    %c0_i32 = arith.constant 0 : i32
    %c0_i32_0 = arith.constant 0 : i32
    return %arg0, %c0_i32 : i32, i32
  }
  func.func @transform_8(%arg0: i32) -> (i32, i32, i32) {
    %c0_i32 = arith.constant 0 : i32
    %c0_i32_0 = arith.constant 0 : i32
    %c0_i32_1 = arith.constant 0 : i32
    return %arg0, %c0_i32, %c0_i32_0 : i32, i32, i32
  }
}

</mosaic_0001>

<llo_original>
// kernel: sslmos_forward.1
$region0: #{sslmos_forward.1}
  #allocation0 [shape = 'u32[]', space=smem, size = 0x4, offset = 0x4, fixed_abs, tag = 'smem constant byte address 0x4 - core index']
  #allocation1 [shape = 'u32[72,128]{1,0:T(1,128)}', space=vmem, size = 0x9000, scoped, tag = 'internal scratch']
  #allocation2 [shape = 'f32[1,1]{1,0:T(1,128)S(1)}', space=vmem, size = 0x200, scoped, tag = 'scoped memory for sslmos_forward.1']
  %s0 = inlined_call_operand.vmem [shape: bf16[1200,320], index: 0, kind: input, shape index: {}]
  %s1 = inlined_call_operand.vmem [shape: bf16[320,64], index: 1, kind: input, shape index: {}]
  %s2 = inlined_call_operand.vmem [shape: f32[1,64], index: 2, kind: input, shape index: {}]
  %s3 = inlined_call_operand.vmem [shape: f32[64,32], index: 3, kind: input, shape index: {}]
  %s4 = inlined_call_operand.vmem [shape: f32[1,32], index: 4, kind: input, shape index: {}]
  %s5 = inlined_call_operand.vmem [shape: f32[1,32], index: 5, kind: input, shape index: {}]
  %s6 = inlined_call_operand.<no memory space> [shape: f32[1,1], index: 6, kind: input, shape index: {}]
  %s7 = inlined_call_operand.vmem [shape: bf16[1200,64], index: 7, kind: output, shape index: {0}]
  %s8 = inlined_call_operand.vmem [shape: f32[2,1,1024], index: 8, kind: output, shape index: {1}]
  %9 = xla_tuple %s7, %s8
  %s10 = sld [smem:[#allocation0]]
  $region113: #{sslmos_forward.1} parent=0
    _
  %s12 = ssub.s32 1, %s10
  %s13 = scalar_select 0, %s12, %s10
  %v14 = vstv %s6
  %15 = vst [vmem:[#allocation2] sm:$0x1] %v14
  $region1: #{sslmos_forward.1} parent=0
    #allocation3 [shape = 'u8[524288]{0}', space=vmem, size = 0x80000, scoped, tag = 'output window, operand 0']
    loop: start=0, step=1, limit=4
    $region2: #{sslmos_forward.1} parent=1 // loop_pre_header
      _
    $region3: #{sslmos_forward.1} parent=1 // loop_header
      %s17 = sphi 0, %s21
      %p18 = scmp.ge.s32.totalorder %s17, 4
      %s27 = sphi 0, %s29
      %s30 = sphi 0, %s27
      %s31 = sphi 0, %s30
      %s47 = sphi 0, %s31
      %s51 = sphi 0, %s51
      %s53 = sphi 0, %s51
      %s54 = sphi 0, %s53
      %s68 = sphi 0, %s54
      %s72 = sphi 0, %s72
      %s74 = sphi 0, %s72
      %s75 = sphi 0, %s74
      %s89 = sphi 0, %s75
      %s93 = sphi 0, %s93
      %s95 = sphi 0, %s93
      %s96 = sphi 0, %s95
      %s110 = sphi 0, %s96
      %s114 = sphi 0, %s114
      %s116 = sphi 0, %s114
      %s117 = sphi 0, %s116
      %s131 = sphi 0, %s117
      %s135 = sphi 0, %s135
      %s137 = sphi 0, %s135
      %s138 = sphi 0, %s137
      %s152 = sphi 0, %s138
      %s156 = sphi 0, %s156
      %s158 = sphi 0, %s156
      %s159 = sphi 0, %s158
      %s173 = sphi 0, %s159
      %s179 = sphi 0, %s181
      %s182 = sphi 0, %s179
      %s183 = sphi 0, %s182
      %s199 = sphi 0, %s183
      %s205 = sphi 0, %s207
      %s208 = sphi 0, %s205
      %s209 = sphi 0, %s208
      %s225 = sphi 0, %s209
    $region4: #{sslmos_forward.1} parent=1 // loop_header_branch
      %20 = sbr.rel (%p18) target = $region8
    $region5: #{sslmos_forward.1} parent=1 // loop_body
      %s22 = ssub.s32 %s17, 1
      %s23 = ssub.s32 %s17, 2
      %s24 = sadd.s32 %s17, 1
      %s25 = ssub.s32 %s17, %s24
      %p26 = scmp.eq.s32.totalorder %s25, 0
      %s28 = sadd.s32 %s27, 1
      %s29 = scalar_select %p26, %s27, %s28
      %p32 = pneg %p26
      %p33 = scmp.eq.s32.totalorder %s17, 1
      %p34 = por %p32, %p33
      %p35 = scmp.ne.s32.totalorder %s27, %s30
      %p36 = scmp.eq.s32.totalorder %s17, 0
      %p37 = por %p35, %p36
      %p38 = scmp.ne.s32.totalorder %s27, %s30
      %p39 = scmp.eq.s32.totalorder %s22, 1
      %p40 = por %p38, %p39
      %p41 = scmp.ne.s32.totalorder %s30, %s31
      %p42 = scmp.eq.s32.totalorder %s22, 0
      %p43 = por %p41, %p42
      %p44 = scmp.ne.s32.totalorder %s30, %s31
      %p45 = scmp.eq.s32.totalorder %s23, 1
      %p46 = por %p44, %p45
      %p48 = scmp.ne.s32.totalorder %s31, %s47
      %p49 = scmp.eq.s32.totalorder %s23, 0
      %p50 = por %p48, %p49
      %s52 = sadd.s32 %s51, 1
      %p55 = scmp.eq.s32.totalorder %s17, 1
      %p56 = scmp.ne.s32.totalorder %s51, %s53
      %p57 = scmp.eq.s32.totalorder %s17, 0
      %p58 = por %p56, %p57
      %p59 = scmp.ne.s32.totalorder %s51, %s53
      %p60 = scmp.eq.s32.totalorder %s22, 1
      %p61 = por %p59, %p60
      %p62 = scmp.ne.s32.totalorder %s53, %s54
      %p63 = scmp.eq.s32.totalorder %s22, 0
      %p64 = por %p62, %p63
      %p65 = scmp.ne.s32.totalorder %s53, %s54
      %p66 = scmp.eq.s32.totalorder %s23, 1
      %p67 = por %p65, %p66
      %p69 = scmp.ne.s32.totalorder %s54, %s68
      %p70 = scmp.eq.s32.totalorder %s23, 0
      %p71 = por %p69, %p70
      %s73 = sadd.s32 %s72, 1
      %p76 = scmp.eq.s32.totalorder %s17, 1
      %p77 = scmp.ne.s32.totalorder %s72, %s74
      %p78 = scmp.eq.s32.totalorder %s17, 0
      %p79 = por %p77, %p78
      %p80 = scmp.ne.s32.totalorder %s72, %s74
      %p81 = scmp.eq.s32.totalorder %s22, 1
      %p82 = por %p80, %p81
      %p83 = scmp.ne.s32.totalorder %s74, %s75
      %p84 = scmp.eq.s32.totalorder %s22, 0
      %p85 = por %p83, %p84
      %p86 = scmp.ne.s32.totalorder %s74, %s75
      %p87 = scmp.eq.s32.totalorder %s23, 1
      %p88 = por %p86, %p87
      %p90 = scmp.ne.s32.totalorder %s75, %s89
      %p91 = scmp.eq.s32.totalorder %s23, 0
      %p92 = por %p90, %p91
      %s94 = sadd.s32 %s93, 1
      %p97 = scmp.eq.s32.totalorder %s17, 1
      %p98 = scmp.ne.s32.totalorder %s93, %s95
      %p99 = scmp.eq.s32.totalorder %s17, 0
      %p100 = por %p98, %p99
      %p101 = scmp.ne.s32.totalorder %s93, %s95
      %p102 = scmp.eq.s32.totalorder %s22, 1
      %p103 = por %p101, %p102
      %p104 = scmp.ne.s32.totalorder %s95, %s96
      %p105 = scmp.eq.s32.totalorder %s22, 0
      %p106 = por %p104, %p105
      %p107 = scmp.ne.s32.totalorder %s95, %s96
      %p108 = scmp.eq.s32.totalorder %s23, 1
      %p109 = por %p107, %p108
      %p111 = scmp.ne.s32.totalorder %s96, %s110
      %p112 = scmp.eq.s32.totalorder %s23, 0
      %p113 = por %p111, %p112
      %s115 = sadd.s32 %s114, 1
      %p118 = scmp.eq.s32.totalorder %s17, 1
      %p119 = scmp.ne.s32.totalorder %s114, %s116
      %p120 = scmp.eq.s32.totalorder %s17, 0
      %p121 = por %p119, %p120
      %p122 = scmp.ne.s32.totalorder %s114, %s116
      %p123 = scmp.eq.s32.totalorder %s22, 1
      %p124 = por %p122, %p123
      %p125 = scmp.ne.s32.totalorder %s116, %s117
      %p126 = scmp.eq.s32.totalorder %s22, 0
      %p127 = por %p125, %p126
      %p128 = scmp.ne.s32.totalorder %s116, %s117
      %p129 = scmp.eq.s32.totalorder %s23, 1
      %p130 = por %p128, %p129
      %p132 = scmp.ne.s32.totalorder %s117, %s131
      %p133 = scmp.eq.s32.totalorder %s23, 0
      %p134 = por %p132, %p133
      %s136 = sadd.s32 %s135, 1
      %p139 = scmp.eq.s32.totalorder %s17, 1
      %p140 = scmp.ne.s32.totalorder %s135, %s137
      %p141 = scmp.eq.s32.totalorder %s17, 0
      %p142 = por %p140, %p141
      %p143 = scmp.ne.s32.totalorder %s135, %s137
      %p144 = scmp.eq.s32.totalorder %s22, 1
      %p145 = por %p143, %p144
      %p146 = scmp.ne.s32.totalorder %s137, %s138
      %p147 = scmp.eq.s32.totalorder %s22, 0
      %p148 = por %p146, %p147
      %p149 = scmp.ne.s32.totalorder %s137, %s138
      %p150 = scmp.eq.s32.totalorder %s23, 1
      %p151 = por %p149, %p150
      %p153 = scmp.ne.s32.totalorder %s138, %s152
      %p154 = scmp.eq.s32.totalorder %s23, 0
      %p155 = por %p153, %p154
      %s157 = sadd.s32 %s156, 1
      %p160 = scmp.eq.s32.totalorder %s17, 1
      %p161 = scmp.ne.s32.totalorder %s156, %s158
      %p162 = scmp.eq.s32.totalorder %s17, 0
      %p163 = por %p161, %p162
      %p164 = scmp.ne.s32.totalorder %s156, %s158
      %p165 = scmp.eq.s32.totalorder %s22, 1
      %p166 = por %p164, %p165
      %p167 = scmp.ne.s32.totalorder %s158, %s159
      %p168 = scmp.eq.s32.totalorder %s22, 0
      %p169 = por %p167, %p168
      %p170 = scmp.ne.s32.totalorder %s158, %s159
      %p171 = scmp.eq.s32.totalorder %s23, 1
      %p172 = por %p170, %p171
      %p174 = scmp.ne.s32.totalorder %s159, %s173
      %p175 = scmp.eq.s32.totalorder %s23, 0
      %p176 = por %p174, %p175
      %s177 = ssub.s32 %s17, %s24
      %p178 = scmp.eq.s32.totalorder %s177, 0
      %s180 = sadd.s32 %s179, 1
      %s181 = scalar_select %p178, %s179, %s180
      %p184 = pneg %p178
      %p185 = scmp.eq.s32.totalorder %s17, 1
      %p186 = por %p184, %p185
      %p187 = scmp.ne.s32.totalorder %s179, %s182
      %p188 = scmp.eq.s32.totalorder %s17, 0
      %p189 = por %p187, %p188
      %p190 = scmp.ne.s32.totalorder %s179, %s182
      %p191 = scmp.eq.s32.totalorder %s22, 1
      %p192 = por %p190, %p191
      %p193 = scmp.ne.s32.totalorder %s182, %s183
      %p194 = scmp.eq.s32.totalorder %s22, 0
      %p195 = por %p193, %p194
      %p196 = scmp.ne.s32.totalorder %s182, %s183
      %p197 = scmp.eq.s32.totalorder %s23, 1
      %p198 = por %p196, %p197
      %p200 = scmp.ne.s32.totalorder %s183, %s199
      %p201 = scmp.eq.s32.totalorder %s23, 0
      %p202 = por %p200, %p201
      %s203 = ssub.s32 %s17, %s24
      %p204 = scmp.eq.s32.totalorder %s203, 0
      %s206 = sadd.s32 %s205, 1
      %s207 = scalar_select %p204, %s205, %s206
      %p210 = pneg %p204
      %p211 = scmp.eq.s32.totalorder %s17, 1
      %p212 = por %p210, %p211
      %p213 = scmp.ne.s32.totalorder %s205, %s208
      %p214 = scmp.eq.s32.totalorder %s17, 0
      %p215 = por %p213, %p214
      %p216 = scmp.ne.s32.totalorder %s205, %s208
      %p217 = scmp.eq.s32.totalorder %s22, 1
      %p218 = por %p216, %p217
      %p219 = scmp.ne.s32.totalorder %s208, %s209
      %p220 = scmp.eq.s32.totalorder %s22, 0
      %p221 = por %p219, %p220
      %p222 = scmp.ne.s32.totalorder %s208, %s209
      %p223 = scmp.eq.s32.totalorder %s23, 1
      %p224 = por %p222, %p223
      %p226 = scmp.ne.s32.totalorder %s209, %s225
      %p227 = scmp.eq.s32.totalorder %s23, 0
      %p228 = por %p226, %p227
      %p229 = scmp.le.s32.totalorder 1, %s17
      %p230 = scmp.lt.s32.totalorder %s17, 3
      %p231 = pnand %p229, %p230
      %p232 = pneg %p231
      // Predicated region
      $region9: #{sslmos_forward.1} parent=5 // pred_check
        _
      $region10: #{sslmos_forward.1} parent=5 // pred_check_branch
        %234 = sbr.rel (%p231) target = $region12
      $region11: #{sslmos_forward.1} parent=5 // pred_region
        %s235 = ssub.s32 %s17, 1
        // Predicated region
        $region13: #{sslmos_forward.1} parent=11 // pred_check
          %p236 = pneg %p64
        $region14: #{sslmos_forward.1} parent=11 // pred_check_branch
          %238 = sbr.rel (%p236) target = $region16
        $region15: #{sslmos_forward.1} parent=11 // pred_region
          _
        $region16: #{sslmos_forward.1} parent=11 // pred_fallthru
          _
        // Predicated region
        $region17: #{sslmos_forward.1} parent=11 // pred_check
          %p239 = pneg %p85
        $region18: #{sslmos_forward.1} parent=11 // pred_check_branch
          %241 = sbr.rel (%p239) target = $region20
        $region19: #{sslmos_forward.1} parent=11 // pred_region
          _
        $region20: #{sslmos_forward.1} parent=11 // pred_fallthru
          _
        // Predicated region
        $region21: #{sslmos_forward.1} parent=11 // pred_check
          %p242 = pneg %p106
        $region22: #{sslmos_forward.1} parent=11 // pred_check_branch
          %244 = sbr.rel (%p242) target = $region24
        $region23: #{sslmos_forward.1} parent=11 // pred_region
          _
        $region24: #{sslmos_forward.1} parent=11 // pred_fallthru
          _
        // Predicated region
        $region25: #{sslmos_forward.1} parent=11 // pred_check
          %p245 = pneg %p127
        $region26: #{sslmos_forward.1} parent=11 // pred_check_branch
          %247 = sbr.rel (%p245) target = $region28
        $region27: #{sslmos_forward.1} parent=11 // pred_region
          _
        $region28: #{sslmos_forward.1} parent=11 // pred_fallthru
          _
        // Predicated region
        $region29: #{sslmos_forward.1} parent=11 // pred_check
          %p248 = pneg %p148
        $region30: #{sslmos_forward.1} parent=11 // pred_check_branch
          %250 = sbr.rel (%p248) target = $region32
        $region31: #{sslmos_forward.1} parent=11 // pred_region
          _
        $region32: #{sslmos_forward.1} parent=11 // pred_fallthru
          _
        // Predicated region
        $region33: #{sslmos_forward.1} parent=11 // pred_check
          %p251 = pneg %p169
        $region34: #{sslmos_forward.1} parent=11 // pred_check_branch
          %253 = sbr.rel (%p251) target = $region36
        $region35: #{sslmos_forward.1} parent=11 // pred_region
          _
        $region36: #{sslmos_forward.1} parent=11 // pred_fallthru
          _
      $region12: #{sslmos_forward.1} parent=5 // pred_fallthru
        _
      %p254 = scmp.lt.s32.totalorder %s17, 2
      // Predicated region
      $region37: #{sslmos_forward.1} parent=5 // pred_check
        %p255 = pneg %p254
      $region38: #{sslmos_forward.1} parent=5 // pred_check_branch
        %257 = sbr.rel (%p255) target = $region40
      $region39: #{sslmos_forward.1} parent=5 // pred_region
        // Predicated region
        $region41: #{sslmos_forward.1} parent=39 // pred_check
          %p258 = pneg %p37
        $region42: #{sslmos_forward.1} parent=39 // pred_check_branch
          %260 = sbr.rel (%p258) target = $region44
        $region43: #{sslmos_forward.1} parent=39 // pred_region
          %s261 = smul.u32 128, %s17
          %s262 = ssub.s32 150, %s261
          %p263 = scmp.lt.s32.totalorder %s262, 128
          %s264 = scalar_select %p263, %s262, 128
          %s265 = smul.u32 4, %s264
          %s266 = smul.u32 %s265, 3
          %p267 = scmp.lt.s32.totalorder %s261, 149
          %s268 = scalar_select %p267, %s261, 149
          %s269 = smul.addr %s268, 3
          %s270 = smul.addr %s269, 4
          %s271 = scalar_lea.vmem %s0, %s270
          %s272 = smul.u32 128, %s17
          %s273 = ssub.s32 150, %s272
          %p274 = scmp.lt.s32.totalorder %s273, 128
          %s275 = scalar_select %p274, %s273, 128
          %s276 = smul.u32 4, %s275
          %s277 = smul.u32 %s276, 3
        $region44: #{sslmos_forward.1} parent=39 // pred_fallthru
          _
      $region40: #{sslmos_forward.1} parent=5 // pred_fallthru
        _
      %p278 = scmp.le.s32.totalorder 1, %s17
      %p279 = scmp.lt.s32.totalorder %s17, 3
      %p280 = pnand %p278, %p279
      %p281 = pneg %p280
      // Predicated region
      $region45: #{sslmos_forward.1} parent=5 // pred_check
        _
      $region46: #{sslmos_forward.1} parent=5 // pred_check_branch
        %283 = sbr.rel (%p280) target = $region48
      $region47: #{sslmos_forward.1} parent=5 // pred_region
        %s284 = ssub.s32 %s17, 1
        %s285 = smul.u32 128, %s22
        %s286 = ssub.s32 150, %s285
        %p287 = scmp.lt.s32.totalorder %s286, 128
        %s288 = scalar_select %p287, %s286, 128
        %s289 = smul.u32 4, %s288
        %s290 = smul.u32 %s289, 3
        %p291 = scmp.lt.s32.totalorder %s285, 149
        %s292 = scalar_select %p291, %s285, 149
        %s293 = smul.addr %s292, 3
        %s294 = smul.addr %s293, 4
        %s295 = scalar_lea.vmem %s0, %s294
        %p296 = pneg %p43
        %p297 = pneg %p40
        %p298 = pneg %p64
        %p299 = pneg %p61
        %p300 = pneg %p85
        %p301 = pneg %p82
        %p302 = pneg %p106
        %p303 = pneg %p103
        %p304 = pneg %p127
        %p305 = pneg %p124
        %p306 = pneg %p148
        %p307 = pneg %p145
        %p308 = pneg %p169
        %p309 = pneg %p166
        %p310 = pneg %p195
        %p311 = pneg %p192
        %s312 = sand.u32 %s182, 1
        %s313 = sand.u32 %s182, 1
        %s314 = smul.addr %s313, 512
        %s315 = scalar_lea.vmem [#allocation3], %s314
        %p316 = pneg %p221
        %p317 = pneg %p218
        %p318 = scmp.lt.s32.totalorder %s22, 1
        %s319 = scalar_select %p318, %s22, 1
        %s320 = smul.addr %s319, 8
        %s321 = scalar_lea.vmem %s8, %s320
        %s322 = smul.u32 128, %s22
        %s323 = ssub.s32 150, %s322
        %p324 = scmp.lt.s32.totalorder %s323, 128
        %s325 = scalar_select %p324, %s323, 128
        %s326 = smul.u32 4, %s325
        %s327 = smul.u32 %s326, 3
        %p328 = scmp.lt.s32.totalorder %s322, 149
        %s329 = scalar_select %p328, %s322, 149
        %s330 = smul.addr %s329, 3
        %s331 = smul.addr %s330, 4
        %s332 = scalar_lea.vmem %s0, %s331
        %s333 = smul.u32 128, %s22
        %s334 = ssub.s32 150, %s333
        %p335 = scmp.lt.s32.totalorder %s334, 128
        %s336 = scalar_select %p335, %s334, 128
        %s337 = smul.u32 4, %s336
        %s338 = smul.u32 %s337, 3
        %s339 = smul.u32 128, %s22
        %s340 = ssub.s32 150, %s339
        %p341 = scmp.lt.s32.totalorder %s340, 128
        %s342 = scalar_select %p341, %s340, 128
        %s343 = smul.u32 4, %s342
        %p344 = scmp.lt.s32.totalorder %s22, 1
        %s345 = scalar_select %p344, %s22, 1
        %s346 = smul.addr %s345, 8
        %s347 = scalar_lea.vmem %s8, %s346
        %v349 = vld [vmem:[%s332] sm:$0xff]
        %v350 = vld [vmem:[%s332 + $0x8] sm:$0xf]
        %v351 = vld [vmem:[%s332 + $0xc] sm:$0xff]
        %v352 = vld [vmem:[%s332 + $0x14] sm:$0xf]
        %v353 = vld [vmem:[%s332 + $0x18] sm:$0xff]
        %v354 = vld [vmem:[%s332 + $0x20] sm:$0xf]
        %v355 = vld [vmem:[%s332 + $0x24] sm:$0xff]
        %v356 = vld [vmem:[%s332 + $0x2c] sm:$0xf]
        %v357 = vld [vmem:[%s332 + $0x30] sm:$0xff]
        %v358 = vld [vmem:[%s332 + $0x38] sm:$0xf]
        %v359 = vld [vmem:[%s332 + $0x3c] sm:$0xff]
        %v360 = vld [vmem:[%s332 + $0x44] sm:$0xf]
        %v361 = vld [vmem:[%s332 + $0x48] sm:$0xff]
        %v362 = vld [vmem:[%s332 + $0x50] sm:$0xf]
        %v363 = vld [vmem:[%s332 + $0x54] sm:$0xff]
        %v364 = vld [vmem:[%s332 + $0x5c] sm:$0xf]
        %v365 = vld [vmem:[%s332 + $0x60] sm:$0xff]
        %v366 = vld [vmem:[%s332 + $0x68] sm:$0xf]
        %v367 = vld [vmem:[%s332 + $0x6c] sm:$0xff]
        %v368 = vld [vmem:[%s332 + $0x74] sm:$0xf]
        %v369 = vld [vmem:[%s332 + $0x78] sm:$0xff]
        %v370 = vld [vmem:[%s332 + $0x80] sm:$0xf]
        %v371 = vld [vmem:[%s332 + $0x84] sm:$0xff]
        %v372 = vld [vmem:[%s332 + $0x8c] sm:$0xf]
        %v373 = vld [vmem:[%s332 + $0x90] sm:$0xff]
        %v374 = vld [vmem:[%s332 + $0x98] sm:$0xf]
        %v375 = vld [vmem:[%s332 + $0x9c] sm:$0xff]
        %v376 = vld [vmem:[%s332 + $0xa4] sm:$0xf]
        %v377 = vld [vmem:[%s332 + $0xa8] sm:$0xff]
        %v378 = vld [vmem:[%s332 + $0xb0] sm:$0xf]
        %v379 = vld [vmem:[%s332 + $0xb4] sm:$0xff]
        %v380 = vld [vmem:[%s332 + $0xbc] sm:$0xf]
        %v381 = vld [vmem:[%s332 + $0xc0] sm:$0xff]
        %v382 = vld [vmem:[%s332 + $0xc8] sm:$0xf]
        %v383 = vld [vmem:[%s332 + $0xcc] sm:$0xff]
        %v384 = vld [vmem:[%s332 + $0xd4] sm:$0xf]
        %v385 = vld [vmem:[%s332 + $0xd8] sm:$0xff]
        %v386 = vld [vmem:[%s332 + $0xe0] sm:$0xf]
        %v387 = vld [vmem:[%s332 + $0xe4] sm:$0xff]
        %v388 = vld [vmem:[%s332 + $0xec] sm:$0xf]
        %v389 = vld [vmem:[%s332 + $0xf0] sm:$0xff]
        %v390 = vld [vmem:[%s332 + $0xf8] sm:$0xf]
        %v391 = vld [vmem:[%s332 + $0xfc] sm:$0xff]
        %v392 = vld [vmem:[%s332 + $0x104] sm:$0xf]
        %v393 = vld [vmem:[%s332 + $0x108] sm:$0xff]
        %v394 = vld [vmem:[%s332 + $0x110] sm:$0xf]
        %v395 = vld [vmem:[%s332 + $0x114] sm:$0xff]
        %v396 = vld [vmem:[%s332 + $0x11c] sm:$0xf]
        %v397 = vld [vmem:[%s332 + $0x120] sm:$0xff]
        %v398 = vld [vmem:[%s332 + $0x128] sm:$0xf]
        %v399 = vld [vmem:[%s332 + $0x12c] sm:$0xff]
        %v400 = vld [vmem:[%s332 + $0x134] sm:$0xf]
        %v401 = vld [vmem:[%s332 + $0x138] sm:$0xff]
        %v402 = vld [vmem:[%s332 + $0x140] sm:$0xf]
        %v403 = vld [vmem:[%s332 + $0x144] sm:$0xff]
        %v404 = vld [vmem:[%s332 + $0x14c] sm:$0xf]
        %v405 = vld [vmem:[%s332 + $0x150] sm:$0xff]
        %v406 = vld [vmem:[%s332 + $0x158] sm:$0xf]
        %v407 = vld [vmem:[%s332 + $0x15c] sm:$0xff]
        %v408 = vld [vmem:[%s332 + $0x164] sm:$0xf]
        %v409 = vld [vmem:[%s332 + $0x168] sm:$0xff]
        %v410 = vld [vmem:[%s332 + $0x170] sm:$0xf]
        %v411 = vld [vmem:[%s332 + $0x174] sm:$0xff]
        %v412 = vld [vmem:[%s332 + $0x17c] sm:$0xf]
        %v413 = vld [vmem:[%s332 + $0x180] sm:$0xff]
        %v414 = vld [vmem:[%s332 + $0x188] sm:$0xf]
        %v415 = vld [vmem:[%s332 + $0x18c] sm:$0xff]
        %v416 = vld [vmem:[%s332 + $0x194] sm:$0xf]
        %v417 = vld [vmem:[%s332 + $0x198] sm:$0xff]
        %v418 = vld [vmem:[%s332 + $0x1a0] sm:$0xf]
        %v419 = vld [vmem:[%s332 + $0x1a4] sm:$0xff]
        %v420 = vld [vmem:[%s332 + $0x1ac] sm:$0xf]
        %v421 = vld [vmem:[%s332 + $0x1b0] sm:$0xff]
        %v422 = vld [vmem:[%s332 + $0x1b8] sm:$0xf]
        %v423 = vld [vmem:[%s332 + $0x1bc] sm:$0xff]
        %v424 = vld [vmem:[%s332 + $0x1c4] sm:$0xf]
        %v425 = vld [vmem:[%s332 + $0x1c8] sm:$0xff]
        %v426 = vld [vmem:[%s332 + $0x1d0] sm:$0xf]
        %v427 = vld [vmem:[%s332 + $0x1d4] sm:$0xff]
        %v428 = vld [vmem:[%s332 + $0x1dc] sm:$0xf]
        %v429 = vld [vmem:[%s332 + $0x1e0] sm:$0xff]
        %v430 = vld [vmem:[%s332 + $0x1e8] sm:$0xf]
        %v431 = vld [vmem:[%s332 + $0x1ec] sm:$0xff]
        %v432 = vld [vmem:[%s332 + $0x1f4] sm:$0xf]
        %v433 = vld [vmem:[%s332 + $0x1f8] sm:$0xff]
        %v434 = vld [vmem:[%s332 + $0x200] sm:$0xf]
        %v435 = vld [vmem:[%s332 + $0x204] sm:$0xff]
        %v436 = vld [vmem:[%s332 + $0x20c] sm:$0xf]
        %v437 = vld [vmem:[%s332 + $0x210] sm:$0xff]
        %v438 = vld [vmem:[%s332 + $0x218] sm:$0xf]
        %v439 = vld [vmem:[%s332 + $0x21c] sm:$0xff]
        %v440 = vld [vmem:[%s332 + $0x224] sm:$0xf]
        %v441 = vld [vmem:[%s332 + $0x228] sm:$0xff]
        %v442 = vld [vmem:[%s332 + $0x230] sm:$0xf]
        %v443 = vld [vmem:[%s332 + $0x234] sm:$0xff]
        %v444 = vld [vmem:[%s332 + $0x23c] sm:$0xf]
        %v445 = vld [vmem:[%s332 + $0x240] sm:$0xff]
        %v446 = vld [vmem:[%s332 + $0x248] sm:$0xf]
        %v447 = vld [vmem:[%s332 + $0x24c] sm:$0xff]
        %v448 = vld [vmem:[%s332 + $0x254] sm:$0xf]
        %v449 = vld [vmem:[%s332 + $0x258] sm:$0xff]
        %v450 = vld [vmem:[%s332 + $0x260] sm:$0xf]
        %v451 = vld [vmem:[%s332 + $0x264] sm:$0xff]
        %v452 = vld [vmem:[%s332 + $0x26c] sm:$0xf]
        %v453 = vld [vmem:[%s332 + $0x270] sm:$0xff]
        %v454 = vld [vmem:[%s332 + $0x278] sm:$0xf]
        %v455 = vld [vmem:[%s332 + $0x27c] sm:$0xff]
        %v456 = vld [vmem:[%s332 + $0x284] sm:$0xf]
        %v457 = vld [vmem:[%s332 + $0x288] sm:$0xff]
        %v458 = vld [vmem:[%s332 + $0x290] sm:$0xf]
        %v459 = vld [vmem:[%s332 + $0x294] sm:$0xff]
        %v460 = vld [vmem:[%s332 + $0x29c] sm:$0xf]
        %v461 = vld [vmem:[%s332 + $0x2a0] sm:$0xff]
        %v462 = vld [vmem:[%s332 + $0x2a8] sm:$0xf]
        %v463 = vld [vmem:[%s332 + $0x2ac] sm:$0xff]
        %v464 = vld [vmem:[%s332 + $0x2b4] sm:$0xf]
        %v465 = vld [vmem:[%s332 + $0x2b8] sm:$0xff]
        %v466 = vld [vmem:[%s332 + $0x2c0] sm:$0xf]
        %v467 = vld [vmem:[%s332 + $0x2c4] sm:$0xff]
        %v468 = vld [vmem:[%s332 + $0x2cc] sm:$0xf]
        %v469 = vld [vmem:[%s332 + $0x2d0] sm:$0xff]
        %v470 = vld [vmem:[%s332 + $0x2d8] sm:$0xf]
        %v471 = vld [vmem:[%s332 + $0x2dc] sm:$0xff]
        %v472 = vld [vmem:[%s332 + $0x2e4] sm:$0xf]
        %v473 = vld [vmem:[%s332 + $0x2e8] sm:$0xff]
        %v474 = vld [vmem:[%s332 + $0x2f0] sm:$0xf]
        %v475 = vld [vmem:[%s332 + $0x2f4] sm:$0xff]
        %v476 = vld [vmem:[%s332 + $0x2fc] sm:$0xf]
        %v477 = vld [vmem:[%s332 + $0x300] sm:$0xff]
        %v478 = vld [vmem:[%s332 + $0x308] sm:$0xf]
        %v479 = vld [vmem:[%s332 + $0x30c] sm:$0xff]
        %v480 = vld [vmem:[%s332 + $0x314] sm:$0xf]
        %v481 = vld [vmem:[%s332 + $0x318] sm:$0xff]
        %v482 = vld [vmem:[%s332 + $0x320] sm:$0xf]
        %v483 = vld [vmem:[%s332 + $0x324] sm:$0xff]
        %v484 = vld [vmem:[%s332 + $0x32c] sm:$0xf]
        %v485 = vld [vmem:[%s332 + $0x330] sm:$0xff]
        %v486 = vld [vmem:[%s332 + $0x338] sm:$0xf]
        %v487 = vld [vmem:[%s332 + $0x33c] sm:$0xff]
        %v488 = vld [vmem:[%s332 + $0x344] sm:$0xf]
        %v489 = vld [vmem:[%s332 + $0x348] sm:$0xff]
        %v490 = vld [vmem:[%s332 + $0x350] sm:$0xf]
        %v491 = vld [vmem:[%s332 + $0x354] sm:$0xff]
        %v492 = vld [vmem:[%s332 + $0x35c] sm:$0xf]
        %v493 = vld [vmem:[%s332 + $0x360] sm:$0xff]
        %v494 = vld [vmem:[%s332 + $0x368] sm:$0xf]
        %v495 = vld [vmem:[%s332 + $0x36c] sm:$0xff]
        %v496 = vld [vmem:[%s332 + $0x374] sm:$0xf]
        %v497 = vld [vmem:[%s332 + $0x378] sm:$0xff]
        %v498 = vld [vmem:[%s332 + $0x380] sm:$0xf]
        %v499 = vld [vmem:[%s332 + $0x384] sm:$0xff]
        %v500 = vld [vmem:[%s332 + $0x38c] sm:$0xf]
        %v501 = vld [vmem:[%s332 + $0x390] sm:$0xff]
        %v502 = vld [vmem:[%s332 + $0x398] sm:$0xf]
        %v503 = vld [vmem:[%s332 + $0x39c] sm:$0xff]
        %v504 = vld [vmem:[%s332 + $0x3a4] sm:$0xf]
        %v505 = vld [vmem:[%s332 + $0x3a8] sm:$0xff]
        %v506 = vld [vmem:[%s332 + $0x3b0] sm:$0xf]
        %v507 = vld [vmem:[%s332 + $0x3b4] sm:$0xff]
        %v508 = vld [vmem:[%s332 + $0x3bc] sm:$0xf]
        %v509 = vld [vmem:[%s332 + $0x3c0] sm:$0xff]
        %v510 = vld [vmem:[%s332 + $0x3c8] sm:$0xf]
        %v511 = vld [vmem:[%s332 + $0x3cc] sm:$0xff]
        %v512 = vld [vmem:[%s332 + $0x3d4] sm:$0xf]
        %v513 = vld [vmem:[%s332 + $0x3d8] sm:$0xff]
        %v514 = vld [vmem:[%s332 + $0x3e0] sm:$0xf]
        %v515 = vld [vmem:[%s332 + $0x3e4] sm:$0xff]
        %v516 = vld [vmem:[%s332 + $0x3ec] sm:$0xf]
        %v517 = vld [vmem:[%s332 + $0x3f0] sm:$0xff]
        %v518 = vld [vmem:[%s332 + $0x3f8] sm:$0xf]
        %v519 = vld [vmem:[%s332 + $0x3fc] sm:$0xff]
        %v520 = vld [vmem:[%s332 + $0x404] sm:$0xf]
        %v521 = vld [vmem:[%s332 + $0x408] sm:$0xff]
        %v522 = vld [vmem:[%s332 + $0x410] sm:$0xf]
        %v523 = vld [vmem:[%s332 + $0x414] sm:$0xff]
        %v524 = vld [vmem:[%s332 + $0x41c] sm:$0xf]
        %v525 = vld [vmem:[%s332 + $0x420] sm:$0xff]
        %v526 = vld [vmem:[%s332 + $0x428] sm:$0xf]
        %v527 = vld [vmem:[%s332 + $0x42c] sm:$0xff]
        %v528 = vld [vmem:[%s332 + $0x434] sm:$0xf]
        %v529 = vld [vmem:[%s332 + $0x438] sm:$0xff]
        %v530 = vld [vmem:[%s332 + $0x440] sm:$0xf]
        %v531 = vld [vmem:[%s332 + $0x444] sm:$0xff]
        %v532 = vld [vmem:[%s332 + $0x44c] sm:$0xf]
        %v533 = vld [vmem:[%s332 + $0x450] sm:$0xff]
        %v534 = vld [vmem:[%s332 + $0x458] sm:$0xf]
        %v535 = vld [vmem:[%s332 + $0x45c] sm:$0xff]
        %v536 = vld [vmem:[%s332 + $0x464] sm:$0xf]
        %v537 = vld [vmem:[%s332 + $0x468] sm:$0xff]
        %v538 = vld [vmem:[%s332 + $0x470] sm:$0xf]
        %v539 = vld [vmem:[%s332 + $0x474] sm:$0xff]
        %v540 = vld [vmem:[%s332 + $0x47c] sm:$0xf]
        %v541 = vld [vmem:[%s332 + $0x480] sm:$0xff]
        %v542 = vld [vmem:[%s332 + $0x488] sm:$0xf]
        %v543 = vld [vmem:[%s332 + $0x48c] sm:$0xff]
        %v544 = vld [vmem:[%s332 + $0x494] sm:$0xf]
        %v545 = vld [vmem:[%s332 + $0x498] sm:$0xff]
        %v546 = vld [vmem:[%s332 + $0x4a0] sm:$0xf]
        %v547 = vld [vmem:[%s332 + $0x4a4] sm:$0xff]
        %v548 = vld [vmem:[%s332 + $0x4ac] sm:$0xf]
        %v549 = vld [vmem:[%s332 + $0x4b0] sm:$0xff]
        %v550 = vld [vmem:[%s332 + $0x4b8] sm:$0xf]
        %v551 = vld [vmem:[%s332 + $0x4bc] sm:$0xff]
        %v552 = vld [vmem:[%s332 + $0x4c4] sm:$0xf]
        %v553 = vld [vmem:[%s332 + $0x4c8] sm:$0xff]
        %v554 = vld [vmem:[%s332 + $0x4d0] sm:$0xf]
        %v555 = vld [vmem:[%s332 + $0x4d4] sm:$0xff]
        %v556 = vld [vmem:[%s332 + $0x4dc] sm:$0xf]
        %v557 = vld [vmem:[%s332 + $0x4e0] sm:$0xff]
        %v558 = vld [vmem:[%s332 + $0x4e8] sm:$0xf]
        %v559 = vld [vmem:[%s332 + $0x4ec] sm:$0xff]
        %v560 = vld [vmem:[%s332 + $0x4f4] sm:$0xf]
        %v561 = vld [vmem:[%s332 + $0x4f8] sm:$0xff]
        %v562 = vld [vmem:[%s332 + $0x500] sm:$0xf]
        %v563 = vld [vmem:[%s332 + $0x504] sm:$0xff]
        %v564 = vld [vmem:[%s332 + $0x50c] sm:$0xf]
        %v565 = vld [vmem:[%s332 + $0x510] sm:$0xff]
        %v566 = vld [vmem:[%s332 + $0x518] sm:$0xf]
        %v567 = vld [vmem:[%s332 + $0x51c] sm:$0xff]
        %v568 = vld [vmem:[%s332 + $0x524] sm:$0xf]
        %v569 = vld [vmem:[%s332 + $0x528] sm:$0xff]
        %v570 = vld [vmem:[%s332 + $0x530] sm:$0xf]
        %v571 = vld [vmem:[%s332 + $0x534] sm:$0xff]
        %v572 = vld [vmem:[%s332 + $0x53c] sm:$0xf]
        %v573 = vld [vmem:[%s332 + $0x540] sm:$0xff]
        %v574 = vld [vmem:[%s332 + $0x548] sm:$0xf]
        %v575 = vld [vmem:[%s332 + $0x54c] sm:$0xff]
        %v576 = vld [vmem:[%s332 + $0x554] sm:$0xf]
        %v577 = vld [vmem:[%s332 + $0x558] sm:$0xff]
        %v578 = vld [vmem:[%s332 + $0x560] sm:$0xf]
        %v579 = vld [vmem:[%s332 + $0x564] sm:$0xff]
        %v580 = vld [vmem:[%s332 + $0x56c] sm:$0xf]
        %v581 = vld [vmem:[%s332 + $0x570] sm:$0xff]
        %v582 = vld [vmem:[%s332 + $0x578] sm:$0xf]
        %v583 = vld [vmem:[%s332 + $0x57c] sm:$0xff]
        %v584 = vld [vmem:[%s332 + $0x584] sm:$0xf]
        %v585 = vld [vmem:[%s332 + $0x588] sm:$0xff]
        %v586 = vld [vmem:[%s332 + $0x590] sm:$0xf]
        %v587 = vld [vmem:[%s332 + $0x594] sm:$0xff]
        %v588 = vld [vmem:[%s332 + $0x59c] sm:$0xf]
        %v589 = vld [vmem:[%s332 + $0x5a0] sm:$0xff]
        %v590 = vld [vmem:[%s332 + $0x5a8] sm:$0xf]
        %v591 = vld [vmem:[%s332 + $0x5ac] sm:$0xff]
        %v592 = vld [vmem:[%s332 + $0x5b4] sm:$0xf]
        %v593 = vld [vmem:[%s332 + $0x5b8] sm:$0xff]
        %v594 = vld [vmem:[%s332 + $0x5c0] sm:$0xf]
        %v595 = vld [vmem:[%s332 + $0x5c4] sm:$0xff]
        %v596 = vld [vmem:[%s332 + $0x5cc] sm:$0xf]
        %v597 = vld [vmem:[%s332 + $0x5d0] sm:$0xff]
        %v598 = vld [vmem:[%s332 + $0x5d8] sm:$0xf]
        %v599 = vld [vmem:[%s332 + $0x5dc] sm:$0xff]
        %v600 = vld [vmem:[%s332 + $0x5e4] sm:$0xf]
        %v601 = vld [vmem:[%s332 + $0x5e8] sm:$0xff]
        %v602 = vld [vmem:[%s332 + $0x5f0] sm:$0xf]
        %v603 = vld [vmem:[%s332 + $0x5f4] sm:$0xff]
        %v604 = vld [vmem:[%s332 + $0x5fc] sm:$0xf]
        %v605 = vld [vmem:[%s1] sm:$0xf]
        %v606 = vld [vmem:[%s1 + $0x4] sm:$0xf]
        %v607 = vld [vmem:[%s1 + $0x8] sm:$0xf]
        %v608 = vld [vmem:[%s1 + $0xc] sm:$0xf]
        %v609 = vld [vmem:[%s1 + $0x10] sm:$0xf]
        %v610 = vld [vmem:[%s1 + $0x14] sm:$0xf]
        %v611 = vld [vmem:[%s1 + $0x18] sm:$0xf]
        %v612 = vld [vmem:[%s1 + $0x1c] sm:$0xf]
        %v613 = vld [vmem:[%s1 + $0x20] sm:$0xf]
        %v614 = vld [vmem:[%s1 + $0x24] sm:$0xf]
        %v615 = vld [vmem:[%s1 + $0x28] sm:$0xf]
        %v616 = vld [vmem:[%s1 + $0x2c] sm:$0xf]
        %v617 = vld [vmem:[%s1 + $0x30] sm:$0xf]
        %v618 = vld [vmem:[%s1 + $0x34] sm:$0xf]
        %v619 = vld [vmem:[%s1 + $0x38] sm:$0xf]
        %v620 = vld [vmem:[%s1 + $0x3c] sm:$0xf]
        %v621 = vld [vmem:[%s1 + $0x40] sm:$0xf]
        %v622 = vld [vmem:[%s1 + $0x44] sm:$0xf]
        %v623 = vld [vmem:[%s1 + $0x48] sm:$0xf]
        %v624 = vld [vmem:[%s1 + $0x4c] sm:$0xf]
        %v625 = vld [vmem:[%s1 + $0x50] sm:$0xf]
        %v626 = vld [vmem:[%s1 + $0x54] sm:$0xf]
        %v627 = vld [vmem:[%s1 + $0x58] sm:$0xf]
        %v628 = vld [vmem:[%s1 + $0x5c] sm:$0xf]
        %v629 = vld [vmem:[%s1 + $0x60] sm:$0xf]
        %v630 = vld [vmem:[%s1 + $0x64] sm:$0xf]
        %v631 = vld [vmem:[%s1 + $0x68] sm:$0xf]
        %v632 = vld [vmem:[%s1 + $0x6c] sm:$0xf]
        %v633 = vld [vmem:[%s1 + $0x70] sm:$0xf]
        %v634 = vld [vmem:[%s1 + $0x74] sm:$0xf]
        %v635 = vld [vmem:[%s1 + $0x78] sm:$0xf]
        %v636 = vld [vmem:[%s1 + $0x7c] sm:$0xf]
        %v637 = vld [vmem:[%s1 + $0x80] sm:$0xf]
        %v638 = vld [vmem:[%s1 + $0x84] sm:$0xf]
        %v639 = vld [vmem:[%s1 + $0x88] sm:$0xf]
        %v640 = vld [vmem:[%s1 + $0x8c] sm:$0xf]
        %v641 = vld [vmem:[%s1 + $0x90] sm:$0xf]
        %v642 = vld [vmem:[%s1 + $0x94] sm:$0xf]
        %v643 = vld [vmem:[%s1 + $0x98] sm:$0xf]
        %v644 = vld [vmem:[%s1 + $0x9c] sm:$0xf]
        %v645 = vld [vmem:[%s2] sm:$0x1]
        %v647 = vperm.slane %v645, 0
        %v905 = vunpack.c.l.b16 %v349
        %v906 = vunpack.c.h.b16 %v349
        %v907 = vunpack.c.l.b16 %v350
        %v908 = vunpack.c.l.b16 %v351
        %v909 = vunpack.c.h.b16 %v351
        %v910 = vunpack.c.l.b16 %v352
        %v911 = vunpack.c.l.b16 %v353
        %v912 = vunpack.c.h.b16 %v353
        %v913 = vunpack.c.l.b16 %v354
        %v914 = vunpack.c.l.b16 %v355
        %v915 = vunpack.c.h.b16 %v355
        %v916 = vunpack.c.l.b16 %v356
        %v917 = vunpack.c.l.b16 %v357
        %v918 = vunpack.c.h.b16 %v357
        %v919 = vunpack.c.l.b16 %v358
        %v920 = vunpack.c.l.b16 %v359
        %v921 = vunpack.c.h.b16 %v359
        %v922 = vunpack.c.l.b16 %v360
        %v923 = vunpack.c.l.b16 %v361
        %v924 = vunpack.c.h.b16 %v361
        %v925 = vunpack.c.l.b16 %v362
        %v926 = vunpack.c.l.b16 %v363
        %v927 = vunpack.c.h.b16 %v363
        %v928 = vunpack.c.l.b16 %v364
        %v929 = vunpack.c.l.b16 %v365
        %v930 = vunpack.c.h.b16 %v365
        %v931 = vunpack.c.l.b16 %v366
        %v932 = vunpack.c.l.b16 %v367
        %v933 = vunpack.c.h.b16 %v367
        %v934 = vunpack.c.l.b16 %v368
        %v935 = vunpack.c.l.b16 %v369
        %v936 = vunpack.c.h.b16 %v369
        %v937 = vunpack.c.l.b16 %v370
        %v938 = vunpack.c.l.b16 %v371
        %v939 = vunpack.c.h.b16 %v371
        %v940 = vunpack.c.l.b16 %v372
        %v941 = vunpack.c.l.b16 %v373
        %v942 = vunpack.c.h.b16 %v373
        %v943 = vunpack.c.l.b16 %v374
        %v944 = vunpack.c.l.b16 %v375
        %v945 = vunpack.c.h.b16 %v375
        %v946 = vunpack.c.l.b16 %v376
        %v947 = vunpack.c.l.b16 %v377
        %v948 = vunpack.c.h.b16 %v377
        %v949 = vunpack.c.l.b16 %v378
        %v950 = vunpack.c.l.b16 %v379
        %v951 = vunpack.c.h.b16 %v379
        %v952 = vunpack.c.l.b16 %v380
        %v953 = vunpack.c.l.b16 %v381
        %v954 = vunpack.c.h.b16 %v381
        %v955 = vunpack.c.l.b16 %v382
        %v956 = vunpack.c.l.b16 %v383
        %v957 = vunpack.c.h.b16 %v383
        %v958 = vunpack.c.l.b16 %v384
        %v959 = vunpack.c.l.b16 %v385
        %v960 = vunpack.c.h.b16 %v385
        %v961 = vunpack.c.l.b16 %v386
        %v962 = vunpack.c.l.b16 %v387
        %v963 = vunpack.c.h.b16 %v387
        %v964 = vunpack.c.l.b16 %v388
        %v965 = vunpack.c.l.b16 %v389
        %v966 = vunpack.c.h.b16 %v389
        %v967 = vunpack.c.l.b16 %v390
        %v968 = vunpack.c.l.b16 %v391
        %v969 = vunpack.c.h.b16 %v391
        %v970 = vunpack.c.l.b16 %v392
        %v971 = vunpack.c.l.b16 %v393
        %v972 = vunpack.c.h.b16 %v393
        %v973 = vunpack.c.l.b16 %v394
        %v974 = vunpack.c.l.b16 %v395
        %v975 = vunpack.c.h.b16 %v395
        %v976 = vunpack.c.l.b16 %v396
        %v977 = vunpack.c.l.b16 %v397
        %v978 = vunpack.c.h.b16 %v397
        %v979 = vunpack.c.l.b16 %v398
        %v980 = vunpack.c.l.b16 %v399
        %v981 = vunpack.c.h.b16 %v399
        %v982 = vunpack.c.l.b16 %v400
        %v983 = vunpack.c.l.b16 %v401
        %v984 = vunpack.c.h.b16 %v401
        %v985 = vunpack.c.l.b16 %v402
        %v986 = vunpack.c.l.b16 %v403
        %v987 = vunpack.c.h.b16 %v403
        %v988 = vunpack.c.l.b16 %v404
        %v989 = vunpack.c.l.b16 %v405
        %v990 = vunpack.c.h.b16 %v405
        %v991 = vunpack.c.l.b16 %v406
        %v992 = vunpack.c.l.b16 %v407
        %v993 = vunpack.c.h.b16 %v407
        %v994 = vunpack.c.l.b16 %v408
        %v995 = vunpack.c.l.b16 %v409
        %v996 = vunpack.c.h.b16 %v409
        %v997 = vunpack.c.l.b16 %v410
        %v998 = vunpack.c.l.b16 %v411
        %v999 = vunpack.c.h.b16 %v411
        %v1000 = vunpack.c.l.b16 %v412
        %v1001 = vunpack.c.l.b16 %v413
        %v1002 = vunpack.c.h.b16 %v413
        %v1003 = vunpack.c.l.b16 %v414
        %v1004 = vunpack.c.l.b16 %v415
        %v1005 = vunpack.c.h.b16 %v415
        %v1006 = vunpack.c.l.b16 %v416
        %v1007 = vunpack.c.l.b16 %v417
        %v1008 = vunpack.c.h.b16 %v417
        %v1009 = vunpack.c.l.b16 %v418
        %v1010 = vunpack.c.l.b16 %v419
        %v1011 = vunpack.c.h.b16 %v419
        %v1012 = vunpack.c.l.b16 %v420
        %v1013 = vunpack.c.l.b16 %v421
        %v1014 = vunpack.c.h.b16 %v421
        %v1015 = vunpack.c.l.b16 %v422
        %v1016 = vunpack.c.l.b16 %v423
        %v1017 = vunpack.c.h.b16 %v423
        %v1018 = vunpack.c.l.b16 %v424
        %v1019 = vunpack.c.l.b16 %v425
        %v1020 = vunpack.c.h.b16 %v425
        %v1021 = vunpack.c.l.b16 %v426
        %v1022 = vunpack.c.l.b16 %v427
        %v1023 = vunpack.c.h.b16 %v427
        %v1024 = vunpack.c.l.b16 %v428
        %v1025 = vunpack.c.l.b16 %v429
        %v1026 = vunpack.c.h.b16 %v429
        %v1027 = vunpack.c.l.b16 %v430
        %v1028 = vunpack.c.l.b16 %v431
        %v1029 = vunpack.c.h.b16 %v431
        %v1030 = vunpack.c.l.b16 %v432
        %v1031 = vunpack.c.l.b16 %v433
        %v1032 = vunpack.c.h.b16 %v433
        %v1033 = vunpack.c.l.b16 %v434
        %v1034 = vunpack.c.l.b16 %v435
        %v1035 = vunpack.c.h.b16 %v435
        %v1036 = vunpack.c.l.b16 %v436
        %v1037 = vunpack.c.l.b16 %v437
        %v1038 = vunpack.c.h.b16 %v437
        %v1039 = vunpack.c.l.b16 %v438
        %v1040 = vunpack.c.l.b16 %v439
        %v1041 = vunpack.c.h.b16 %v439
        %v1042 = vunpack.c.l.b16 %v440
        %v1043 = vunpack.c.l.b16 %v441
        %v1044 = vunpack.c.h.b16 %v441
        %v1045 = vunpack.c.l.b16 %v442
        %v1046 = vunpack.c.l.b16 %v443
        %v1047 = vunpack.c.h.b16 %v443
        %v1048 = vunpack.c.l.b16 %v444
        %v1049 = vunpack.c.l.b16 %v445
        %v1050 = vunpack.c.h.b16 %v445
        %v1051 = vunpack.c.l.b16 %v446
        %v1052 = vunpack.c.l.b16 %v447
        %v1053 = vunpack.c.h.b16 %v447
        %v1054 = vunpack.c.l.b16 %v448
        %v1055 = vunpack.c.l.b16 %v449
        %v1056 = vunpack.c.h.b16 %v449
        %v1057 = vunpack.c.l.b16 %v450
        %v1058 = vunpack.c.l.b16 %v451
        %v1059 = vunpack.c.h.b16 %v451
        %v1060 = vunpack.c.l.b16 %v452
        %v1061 = vunpack.c.l.b16 %v453
        %v1062 = vunpack.c.h.b16 %v453
        %v1063 = vunpack.c.l.b16 %v454
        %v1064 = vunpack.c.l.b16 %v455
        %v1065 = vunpack.c.h.b16 %v455
        %v1066 = vunpack.c.l.b16 %v456
        %v1067 = vunpack.c.l.b16 %v457
        %v1068 = vunpack.c.h.b16 %v457
        %v1069 = vunpack.c.l.b16 %v458
        %v1070 = vunpack.c.l.b16 %v459
        %v1071 = vunpack.c.h.b16 %v459
        %v1072 = vunpack.c.l.b16 %v460
        %v1073 = vunpack.c.l.b16 %v461
        %v1074 = vunpack.c.h.b16 %v461
        %v1075 = vunpack.c.l.b16 %v462
        %v1076 = vunpack.c.l.b16 %v463
        %v1077 = vunpack.c.h.b16 %v463
        %v1078 = vunpack.c.l.b16 %v464
        %v1079 = vunpack.c.l.b16 %v465
        %v1080 = vunpack.c.h.b16 %v465
        %v1081 = vunpack.c.l.b16 %v466
        %v1082 = vunpack.c.l.b16 %v467
        %v1083 = vunpack.c.h.b16 %v467
        %v1084 = vunpack.c.l.b16 %v468
        %v1085 = vunpack.c.l.b16 %v469
        %v1086 = vunpack.c.h.b16 %v469
        %v1087 = vunpack.c.l.b16 %v470
        %v1088 = vunpack.c.l.b16 %v471
        %v1089 = vunpack.c.h.b16 %v471
        %v1090 = vunpack.c.l.b16 %v472
        %v1091 = vunpack.c.l.b16 %v473
        %v1092 = vunpack.c.h.b16 %v473
        %v1093 = vunpack.c.l.b16 %v474
        %v1094 = vunpack.c.l.b16 %v475
        %v1095 = vunpack.c.h.b16 %v475
        %v1096 = vunpack.c.l.b16 %v476
        %v1097 = vunpack.c.l.b16 %v477
        %v1098 = vunpack.c.h.b16 %v477
        %v1099 = vunpack.c.l.b16 %v478
        %v1100 = vunpack.c.l.b16 %v479
        %v1101 = vunpack.c.h.b16 %v479
        %v1102 = vunpack.c.l.b16 %v480
        %v1103 = vunpack.c.l.b16 %v481
        %v1104 = vunpack.c.h.b16 %v481
        %v1105 = vunpack.c.l.b16 %v482
        %v1106 = vunpack.c.l.b16 %v483
        %v1107 = vunpack.c.h.b16 %v483
        %v1108 = vunpack.c.l.b16 %v484
        %v1109 = vunpack.c.l.b16 %v485
        %v1110 = vunpack.c.h.b16 %v485
        %v1111 = vunpack.c.l.b16 %v486
        %v1112 = vunpack.c.l.b16 %v487
        %v1113 = vunpack.c.h.b16 %v487
        %v1114 = vunpack.c.l.b16 %v488
        %v1115 = vunpack.c.l.b16 %v489
        %v1116 = vunpack.c.h.b16 %v489
        %v1117 = vunpack.c.l.b16 %v490
        %v1118 = vunpack.c.l.b16 %v491
        %v1119 = vunpack.c.h.b16 %v491
        %v1120 = vunpack.c.l.b16 %v492
        %v1121 = vunpack.c.l.b16 %v493
        %v1122 = vunpack.c.h.b16 %v493
        %v1123 = vunpack.c.l.b16 %v494
        %v1124 = vunpack.c.l.b16 %v495
        %v1125 = vunpack.c.h.b16 %v495
        %v1126 = vunpack.c.l.b16 %v496
        %v1127 = vunpack.c.l.b16 %v497
        %v1128 = vunpack.c.h.b16 %v497
        %v1129 = vunpack.c.l.b16 %v498
        %v1130 = vunpack.c.l.b16 %v499
        %v1131 = vunpack.c.h.b16 %v499
        %v1132 = vunpack.c.l.b16 %v500
        %v1133 = vunpack.c.l.b16 %v501
        %v1134 = vunpack.c.h.b16 %v501
        %v1135 = vunpack.c.l.b16 %v502
        %v1136 = vunpack.c.l.b16 %v503
        %v1137 = vunpack.c.h.b16 %v503
        %v1138 = vunpack.c.l.b16 %v504
        %v1139 = vunpack.c.l.b16 %v505
        %v1140 = vunpack.c.h.b16 %v505
        %v1141 = vunpack.c.l.b16 %v506
        %v1142 = vunpack.c.l.b16 %v507
        %v1143 = vunpack.c.h.b16 %v507
        %v1144 = vunpack.c.l.b16 %v508
        %v1145 = vunpack.c.l.b16 %v509
        %v1146 = vunpack.c.h.b16 %v509
        %v1147 = vunpack.c.l.b16 %v510
        %v1148 = vunpack.c.l.b16 %v511
        %v1149 = vunpack.c.h.b16 %v511
        %v1150 = vunpack.c.l.b16 %v512
        %v1151 = vunpack.c.l.b16 %v513
        %v1152 = vunpack.c.h.b16 %v513
        %v1153 = vunpack.c.l.b16 %v514
        %v1154 = vunpack.c.l.b16 %v515
        %v1155 = vunpack.c.h.b16 %v515
        %v1156 = vunpack.c.l.b16 %v516
        %v1157 = vunpack.c.l.b16 %v517
        %v1158 = vunpack.c.h.b16 %v517
        %v1159 = vunpack.c.l.b16 %v518
        %v1160 = vunpack.c.l.b16 %v519
        %v1161 = vunpack.c.h.b16 %v519
        %v1162 = vunpack.c.l.b16 %v520
        %v1163 = vunpack.c.l.b16 %v521
        %v1164 = vunpack.c.h.b16 %v521
        %v1165 = vunpack.c.l.b16 %v522
        %v1166 = vunpack.c.l.b16 %v523
        %v1167 = vunpack.c.h.b16 %v523
        %v1168 = vunpack.c.l.b16 %v524
        %v1169 = vunpack.c.l.b16 %v525
        %v1170 = vunpack.c.h.b16 %v525
        %v1171 = vunpack.c.l.b16 %v526
        %v1172 = vunpack.c.l.b16 %v527
        %v1173 = vunpack.c.h.b16 %v527
        %v1174 = vunpack.c.l.b16 %v528
        %v1175 = vunpack.c.l.b16 %v529
        %v1176 = vunpack.c.h.b16 %v529
        %v1177 = vunpack.c.l.b16 %v530
        %v1178 = vunpack.c.l.b16 %v531
        %v1179 = vunpack.c.h.b16 %v531
        %v1180 = vunpack.c.l.b16 %v532
        %v1181 = vunpack.c.l.b16 %v533
        %v1182 = vunpack.c.h.b16 %v533
        %v1183 = vunpack.c.l.b16 %v534
        %v1184 = vunpack.c.l.b16 %v535
        %v1185 = vunpack.c.h.b16 %v535
        %v1186 = vunpack.c.l.b16 %v536
        %v1187 = vunpack.c.l.b16 %v537
        %v1188 = vunpack.c.h.b16 %v537
        %v1189 = vunpack.c.l.b16 %v538
        %v1190 = vunpack.c.l.b16 %v539
        %v1191 = vunpack.c.h.b16 %v539
        %v1192 = vunpack.c.l.b16 %v540
        %v1193 = vunpack.c.l.b16 %v541
        %v1194 = vunpack.c.h.b16 %v541
        %v1195 = vunpack.c.l.b16 %v542
        %v1196 = vunpack.c.l.b16 %v543
        %v1197 = vunpack.c.h.b16 %v543
        %v1198 = vunpack.c.l.b16 %v544
        %v1199 = vunpack.c.l.b16 %v545
        %v1200 = vunpack.c.h.b16 %v545
        %v1201 = vunpack.c.l.b16 %v546
        %v1202 = vunpack.c.l.b16 %v547
        %v1203 = vunpack.c.h.b16 %v547
        %v1204 = vunpack.c.l.b16 %v548
        %v1205 = vunpack.c.l.b16 %v549
        %v1206 = vunpack.c.h.b16 %v549
        %v1207 = vunpack.c.l.b16 %v550
        %v1208 = vunpack.c.l.b16 %v551
        %v1209 = vunpack.c.h.b16 %v551
        %v1210 = vunpack.c.l.b16 %v552
        %v1211 = vunpack.c.l.b16 %v553
        %v1212 = vunpack.c.h.b16 %v553
        %v1213 = vunpack.c.l.b16 %v554
        %v1214 = vunpack.c.l.b16 %v555
        %v1215 = vunpack.c.h.b16 %v555
        %v1216 = vunpack.c.l.b16 %v556
        %v1217 = vunpack.c.l.b16 %v557
        %v1218 = vunpack.c.h.b16 %v557
        %v1219 = vunpack.c.l.b16 %v558
        %v1220 = vunpack.c.l.b16 %v559
        %v1221 = vunpack.c.h.b16 %v559
        %v1222 = vunpack.c.l.b16 %v560
        %v1223 = vunpack.c.l.b16 %v561
        %v1224 = vunpack.c.h.b16 %v561
        %v1225 = vunpack.c.l.b16 %v562
        %v1226 = vunpack.c.l.b16 %v563
        %v1227 = vunpack.c.h.b16 %v563
        %v1228 = vunpack.c.l.b16 %v564
        %v1229 = vunpack.c.l.b16 %v565
        %v1230 = vunpack.c.h.b16 %v565
        %v1231 = vunpack.c.l.b16 %v566
        %v1232 = vunpack.c.l.b16 %v567
        %v1233 = vunpack.c.h.b16 %v567
        %v1234 = vunpack.c.l.b16 %v568
        %v1235 = vunpack.c.l.b16 %v569
        %v1236 = vunpack.c.h.b16 %v569
        %v1237 = vunpack.c.l.b16 %v570
        %v1238 = vunpack.c.l.b16 %v571
        %v1239 = vunpack.c.h.b16 %v571
        %v1240 = vunpack.c.l.b16 %v572
        %v1241 = vunpack.c.l.b16 %v573
        %v1242 = vunpack.c.h.b16 %v573
        %v1243 = vunpack.c.l.b16 %v574
        %v1244 = vunpack.c.l.b16 %v575
        %v1245 = vunpack.c.h.b16 %v575
        %v1246 = vunpack.c.l.b16 %v576
        %v1247 = vunpack.c.l.b16 %v577
        %v1248 = vunpack.c.h.b16 %v577
        %v1249 = vunpack.c.l.b16 %v578
        %v1250 = vunpack.c.l.b16 %v579
        %v1251 = vunpack.c.h.b16 %v579
        %v1252 = vunpack.c.l.b16 %v580
        %v1253 = vunpack.c.l.b16 %v581
        %v1254 = vunpack.c.h.b16 %v581
        %v1255 = vunpack.c.l.b16 %v582
        %v1256 = vunpack.c.l.b16 %v583
        %v1257 = vunpack.c.h.b16 %v583
        %v1258 = vunpack.c.l.b16 %v584
        %v1259 = vunpack.c.l.b16 %v585
        %v1260 = vunpack.c.h.b16 %v585
        %v1261 = vunpack.c.l.b16 %v586
        %v1262 = vunpack.c.l.b16 %v587
        %v1263 = vunpack.c.h.b16 %v587
        %v1264 = vunpack.c.l.b16 %v588
        %v1265 = vunpack.c.l.b16 %v589
        %v1266 = vunpack.c.h.b16 %v589
        %v1267 = vunpack.c.l.b16 %v590
        %v1268 = vunpack.c.l.b16 %v591
        %v1269 = vunpack.c.h.b16 %v591
        %v1270 = vunpack.c.l.b16 %v592
        %v1271 = vunpack.c.l.b16 %v593
        %v1272 = vunpack.c.h.b16 %v593
        %v1273 = vunpack.c.l.b16 %v594
        %v1274 = vunpack.c.l.b16 %v595
        %v1275 = vunpack.c.h.b16 %v595
        %v1276 = vunpack.c.l.b16 %v596
        %v1277 = vunpack.c.l.b16 %v597
        %v1278 = vunpack.c.h.b16 %v597
        %v1279 = vunpack.c.l.b16 %v598
        %v1280 = vunpack.c.l.b16 %v599
        %v1281 = vunpack.c.h.b16 %v599
        %v1282 = vunpack.c.l.b16 %v600
        %v1283 = vunpack.c.l.b16 %v601
        %v1284 = vunpack.c.h.b16 %v601
        %v1285 = vunpack.c.l.b16 %v602
        %v1286 = vunpack.c.l.b16 %v603
        %v1287 = vunpack.c.h.b16 %v603
        %v1288 = vunpack.c.l.b16 %v604
        %v1289 = vpack.c.b16 %v908, %v905
        %v1290 = vpack.c.b16 %v909, %v906
        %v1291 = vpack.c.b16 %v910, %v907
        %v1292 = vpack.c.b16 %v914, %v911
        %v1293 = vpack.c.b16 %v915, %v912
        %v1294 = vpack.c.b16 %v916, %v913
        %v1295 = vpack.c.b16 %v920, %v917
        %v1296 = vpack.c.b16 %v921, %v918
        %v1297 = vpack.c.b16 %v922, %v919
        %v1298 = vpack.c.b16 %v926, %v923
        %v1299 = vpack.c.b16 %v927, %v924
        %v1300 = vpack.c.b16 %v928, %v925
        %v1301 = vpack.c.b16 %v932, %v929
        %v1302 = vpack.c.b16 %v933, %v930
        %v1303 = vpack.c.b16 %v934, %v931
        %v1304 = vpack.c.b16 %v938, %v935
        %v1305 = vpack.c.b16 %v939, %v936
        %v1306 = vpack.c.b16 %v940, %v937
        %v1307 = vpack.c.b16 %v944, %v941
        %v1308 = vpack.c.b16 %v945, %v942
        %v1309 = vpack.c.b16 %v946, %v943
        %v1310 = vpack.c.b16 %v950, %v947
        %v1311 = vpack.c.b16 %v951, %v948
        %v1312 = vpack.c.b16 %v952, %v949
        %v1313 = vpack.c.b16 %v956, %v953
        %v1314 = vpack.c.b16 %v957, %v954
        %v1315 = vpack.c.b16 %v958, %v955
        %v1316 = vpack.c.b16 %v962, %v959
        %v1317 = vpack.c.b16 %v963, %v960
        %v1318 = vpack.c.b16 %v964, %v961
        %v1319 = vpack.c.b16 %v968, %v965
        %v1320 = vpack.c.b16 %v969, %v966
        %v1321 = vpack.c.b16 %v970, %v967
        %v1322 = vpack.c.b16 %v974, %v971
        %v1323 = vpack.c.b16 %v975, %v972
        %v1324 = vpack.c.b16 %v976, %v973
        %v1325 = vpack.c.b16 %v980, %v977
        %v1326 = vpack.c.b16 %v981, %v978
        %v1327 = vpack.c.b16 %v982, %v979
        %v1328 = vpack.c.b16 %v986, %v983
        %v1329 = vpack.c.b16 %v987, %v984
        %v1330 = vpack.c.b16 %v988, %v985
        %v1331 = vpack.c.b16 %v992, %v989
        %v1332 = vpack.c.b16 %v993, %v990
        %v1333 = vpack.c.b16 %v994, %v991
        %v1334 = vpack.c.b16 %v998, %v995
        %v1335 = vpack.c.b16 %v999, %v996
        %v1336 = vpack.c.b16 %v1000, %v997
        %v1337 = vpack.c.b16 %v1004, %v1001
        %v1338 = vpack.c.b16 %v1005, %v1002
        %v1339 = vpack.c.b16 %v1006, %v1003
        %v1340 = vpack.c.b16 %v1010, %v1007
        %v1341 = vpack.c.b16 %v1011, %v1008
        %v1342 = vpack.c.b16 %v1012, %v1009
        %v1343 = vpack.c.b16 %v1016, %v1013
        %v1344 = vpack.c.b16 %v1017, %v1014
        %v1345 = vpack.c.b16 %v1018, %v1015
        %v1346 = vpack.c.b16 %v1022, %v1019
        %v1347 = vpack.c.b16 %v1023, %v1020
        %v1348 = vpack.c.b16 %v1024, %v1021
        %v1349 = vpack.c.b16 %v1028, %v1025
        %v1350 = vpack.c.b16 %v1029, %v1026
        %v1351 = vpack.c.b16 %v1030, %v1027
        %v1352 = vpack.c.b16 %v1034, %v1031
        %v1353 = vpack.c.b16 %v1035, %v1032
        %v1354 = vpack.c.b16 %v1036, %v1033
        %v1355 = vpack.c.b16 %v1040, %v1037
        %v1356 = vpack.c.b16 %v1041, %v1038
        %v1357 = vpack.c.b16 %v1042, %v1039
        %v1358 = vpack.c.b16 %v1046, %v1043
        %v1359 = vpack.c.b16 %v1047, %v1044
        %v1360 = vpack.c.b16 %v1048, %v1045
        %v1361 = vpack.c.b16 %v1052, %v1049
        %v1362 = vpack.c.b16 %v1053, %v1050
        %v1363 = vpack.c.b16 %v1054, %v1051
        %v1364 = vpack.c.b16 %v1058, %v1055
        %v1365 = vpack.c.b16 %v1059, %v1056
        %v1366 = vpack.c.b16 %v1060, %v1057
        %v1367 = vpack.c.b16 %v1064, %v1061
        %v1368 = vpack.c.b16 %v1065, %v1062
        %v1369 = vpack.c.b16 %v1066, %v1063
        %v1370 = vpack.c.b16 %v1070, %v1067
        %v1371 = vpack.c.b16 %v1071, %v1068
        %v1372 = vpack.c.b16 %v1072, %v1069
        %v1373 = vpack.c.b16 %v1076, %v1073
        %v1374 = vpack.c.b16 %v1077, %v1074
        %v1375 = vpack.c.b16 %v1078, %v1075
        %v1376 = vpack.c.b16 %v1082, %v1079
        %v1377 = vpack.c.b16 %v1083, %v1080
        %v1378 = vpack.c.b16 %v1084, %v1081
        %v1379 = vpack.c.b16 %v1088, %v1085
        %v1380 = vpack.c.b16 %v1089, %v1086
        %v1381 = vpack.c.b16 %v1090, %v1087
        %v1382 = vpack.c.b16 %v1094, %v1091
        %v1383 = vpack.c.b16 %v1095, %v1092
        %v1384 = vpack.c.b16 %v1096, %v1093
        %v1385 = vpack.c.b16 %v1100, %v1097
        %v1386 = vpack.c.b16 %v1101, %v1098
        %v1387 = vpack.c.b16 %v1102, %v1099
        %v1388 = vpack.c.b16 %v1106, %v1103
        %v1389 = vpack.c.b16 %v1107, %v1104
        %v1390 = vpack.c.b16 %v1108, %v1105
        %v1391 = vpack.c.b16 %v1112, %v1109
        %v1392 = vpack.c.b16 %v1113, %v1110
        %v1393 = vpack.c.b16 %v1114, %v1111
        %v1394 = vpack.c.b16 %v1118, %v1115
        %v1395 = vpack.c.b16 %v1119, %v1116
        %v1396 = vpack.c.b16 %v1120, %v1117
        %v1397 = vpack.c.b16 %v1124, %v1121
        %v1398 = vpack.c.b16 %v1125, %v1122
        %v1399 = vpack.c.b16 %v1126, %v1123
        %v1400 = vpack.c.b16 %v1130, %v1127
        %v1401 = vpack.c.b16 %v1131, %v1128
        %v1402 = vpack.c.b16 %v1132, %v1129
        %v1403 = vpack.c.b16 %v1136, %v1133
        %v1404 = vpack.c.b16 %v1137, %v1134
        %v1405 = vpack.c.b16 %v1138, %v1135
        %v1406 = vpack.c.b16 %v1142, %v1139
        %v1407 = vpack.c.b16 %v1143, %v1140
        %v1408 = vpack.c.b16 %v1144, %v1141
        %v1409 = vpack.c.b16 %v1148, %v1145
        %v1410 = vpack.c.b16 %v1149, %v1146
        %v1411 = vpack.c.b16 %v1150, %v1147
        %v1412 = vpack.c.b16 %v1154, %v1151
        %v1413 = vpack.c.b16 %v1155, %v1152
        %v1414 = vpack.c.b16 %v1156, %v1153
        %v1415 = vpack.c.b16 %v1160, %v1157
        %v1416 = vpack.c.b16 %v1161, %v1158
        %v1417 = vpack.c.b16 %v1162, %v1159
        %v1418 = vpack.c.b16 %v1166, %v1163
        %v1419 = vpack.c.b16 %v1167, %v1164
        %v1420 = vpack.c.b16 %v1168, %v1165
        %v1421 = vpack.c.b16 %v1172, %v1169
        %v1422 = vpack.c.b16 %v1173, %v1170
        %v1423 = vpack.c.b16 %v1174, %v1171
        %v1424 = vpack.c.b16 %v1178, %v1175
        %v1425 = vpack.c.b16 %v1179, %v1176
        %v1426 = vpack.c.b16 %v1180, %v1177
        %v1427 = vpack.c.b16 %v1184, %v1181
        %v1428 = vpack.c.b16 %v1185, %v1182
        %v1429 = vpack.c.b16 %v1186, %v1183
        %v1430 = vpack.c.b16 %v1190, %v1187
        %v1431 = vpack.c.b16 %v1191, %v1188
        %v1432 = vpack.c.b16 %v1192, %v1189
        %v1433 = vpack.c.b16 %v1196, %v1193
        %v1434 = vpack.c.b16 %v1197, %v1194
        %v1435 = vpack.c.b16 %v1198, %v1195
        %v1436 = vpack.c.b16 %v1202, %v1199
        %v1437 = vpack.c.b16 %v1203, %v1200
        %v1438 = vpack.c.b16 %v1204, %v1201
        %v1439 = vpack.c.b16 %v1208, %v1205
        %v1440 = vpack.c.b16 %v1209, %v1206
        %v1441 = vpack.c.b16 %v1210, %v1207
        %v1442 = vpack.c.b16 %v1214, %v1211
        %v1443 = vpack.c.b16 %v1215, %v1212
        %v1444 = vpack.c.b16 %v1216, %v1213
        %v1445 = vpack.c.b16 %v1220, %v1217
        %v1446 = vpack.c.b16 %v1221, %v1218
        %v1447 = vpack.c.b16 %v1222, %v1219
        %v1448 = vpack.c.b16 %v1226, %v1223
        %v1449 = vpack.c.b16 %v1227, %v1224
        %v1450 = vpack.c.b16 %v1228, %v1225
        %v1451 = vpack.c.b16 %v1232, %v1229
        %v1452 = vpack.c.b16 %v1233, %v1230
        %v1453 = vpack.c.b16 %v1234, %v1231
        %v1454 = vpack.c.b16 %v1238, %v1235
        %v1455 = vpack.c.b16 %v1239, %v1236
        %v1456 = vpack.c.b16 %v1240, %v1237
        %v1457 = vpack.c.b16 %v1244, %v1241
        %v1458 = vpack.c.b16 %v1245, %v1242
        %v1459 = vpack.c.b16 %v1246, %v1243
        %v1460 = vpack.c.b16 %v1250, %v1247
        %v1461 = vpack.c.b16 %v1251, %v1248
        %v1462 = vpack.c.b16 %v1252, %v1249
        %v1463 = vpack.c.b16 %v1256, %v1253
        %v1464 = vpack.c.b16 %v1257, %v1254
        %v1465 = vpack.c.b16 %v1258, %v1255
        %v1466 = vpack.c.b16 %v1262, %v1259
        %v1467 = vpack.c.b16 %v1263, %v1260
        %v1468 = vpack.c.b16 %v1264, %v1261
        %v1469 = vpack.c.b16 %v1268, %v1265
        %v1470 = vpack.c.b16 %v1269, %v1266
        %v1471 = vpack.c.b16 %v1270, %v1267
        %v1472 = vpack.c.b16 %v1274, %v1271
        %v1473 = vpack.c.b16 %v1275, %v1272
        %v1474 = vpack.c.b16 %v1276, %v1273
        %v1475 = vpack.c.b16 %v1280, %v1277
        %v1476 = vpack.c.b16 %v1281, %v1278
        %v1477 = vpack.c.b16 %v1282, %v1279
        %v1478 = vpack.c.b16 %v1286, %v1283
        %v1479 = vpack.c.b16 %v1287, %v1284
        %v1480 = vpack.c.b16 %v1288, %v1285
        %v1649 = vunpack.c.l.b16 %v605
        %v1650 = vunpack.c.l.b16 %v606
        %v1651 = vunpack.c.l.b16 %v607
        %v1652 = vunpack.c.l.b16 %v608
        %v1653 = vunpack.c.l.b16 %v609
        %v1654 = vunpack.c.l.b16 %v610
        %v1655 = vunpack.c.l.b16 %v611
        %v1656 = vunpack.c.l.b16 %v612
        %v1657 = vunpack.c.l.b16 %v613
        %v1658 = vunpack.c.l.b16 %v614
        %v1659 = vunpack.c.l.b16 %v615
        %v1660 = vunpack.c.l.b16 %v616
        %v1661 = vunpack.c.l.b16 %v617
        %v1662 = vunpack.c.l.b16 %v618
        %v1663 = vunpack.c.l.b16 %v619
        %v1664 = vunpack.c.l.b16 %v620
        %v1665 = vunpack.c.l.b16 %v621
        %v1666 = vunpack.c.l.b16 %v622
        %v1667 = vunpack.c.l.b16 %v623
        %v1668 = vunpack.c.l.b16 %v624
        %v1669 = vunpack.c.l.b16 %v625
        %v1670 = vunpack.c.l.b16 %v626
        %v1671 = vunpack.c.l.b16 %v627
        %v1672 = vunpack.c.l.b16 %v628
        %v1673 = vunpack.c.l.b16 %v629
        %v1674 = vunpack.c.l.b16 %v630
        %v1675 = vunpack.c.l.b16 %v631
        %v1676 = vunpack.c.l.b16 %v632
        %v1677 = vunpack.c.l.b16 %v633
        %v1678 = vunpack.c.l.b16 %v634
        %v1679 = vunpack.c.l.b16 %v635
        %v1680 = vunpack.c.l.b16 %v636
        %v1681 = vunpack.c.l.b16 %v637
        %v1682 = vunpack.c.l.b16 %v638
        %v1683 = vunpack.c.l.b16 %v639
        %v1684 = vunpack.c.l.b16 %v640
        %v1685 = vunpack.c.l.b16 %v641
        %v1686 = vunpack.c.l.b16 %v642
        %v1687 = vunpack.c.l.b16 %v643
        %v1688 = vunpack.c.l.b16 %v644
        %v1689 = vpack.c.b16 %v1650, %v1649
        %v1690 = vpack.c.b16 %v1652, %v1651
        %v1691 = vpack.c.b16 %v1654, %v1653
        %v1692 = vpack.c.b16 %v1656, %v1655
        %v1693 = vpack.c.b16 %v1658, %v1657
        %v1694 = vpack.c.b16 %v1660, %v1659
        %v1695 = vpack.c.b16 %v1662, %v1661
        %v1696 = vpack.c.b16 %v1664, %v1663
        %v1697 = vpack.c.b16 %v1666, %v1665
        %v1698 = vpack.c.b16 %v1668, %v1667
        %v1699 = vpack.c.b16 %v1670, %v1669
        %v1700 = vpack.c.b16 %v1672, %v1671
        %v1701 = vpack.c.b16 %v1674, %v1673
        %v1702 = vpack.c.b16 %v1676, %v1675
        %v1703 = vpack.c.b16 %v1678, %v1677
        %v1704 = vpack.c.b16 %v1680, %v1679
        %v1705 = vpack.c.b16 %v1682, %v1681
        %v1706 = vpack.c.b16 %v1684, %v1683
        %v1707 = vpack.c.b16 %v1686, %v1685
        %v1708 = vpack.c.b16 %v1688, %v1687
        %vm1729 = vcmask 523264
        %v1731 = vsel %vm1729, %v1291, 0
        %v1734 = vsel %vm1729, %v1294, 0
        %v1737 = vsel %vm1729, %v1297, 0
        %v1740 = vsel %vm1729, %v1300, 0
        %v1743 = vsel %vm1729, %v1303, 0
        %v1746 = vsel %vm1729, %v1306, 0
        %v1749 = vsel %vm1729, %v1309, 0
        %v1752 = vsel %vm1729, %v1312, 0
        %v1755 = vsel %vm1729, %v1315, 0
        %v1758 = vsel %vm1729, %v1318, 0
        %v1761 = vsel %vm1729, %v1321, 0
        %v1764 = vsel %vm1729, %v1324, 0
        %v1767 = vsel %vm1729, %v1327, 0
        %v1770 = vsel %vm1729, %v1330, 0
        %v1773 = vsel %vm1729, %v1333, 0
        %v1776 = vsel %vm1729, %v1336, 0
        %v1779 = vsel %vm1729, %v1339, 0
        %v1782 = vsel %vm1729, %v1342, 0
        %v1785 = vsel %vm1729, %v1345, 0
        %v1788 = vsel %vm1729, %v1348, 0
        %v1791 = vsel %vm1729, %v1351, 0
        %v1794 = vsel %vm1729, %v1354, 0
        %v1797 = vsel %vm1729, %v1357, 0
        %v1800 = vsel %vm1729, %v1360, 0
        %v1803 = vsel %vm1729, %v1363, 0
        %v1806 = vsel %vm1729, %v1366, 0
        %v1809 = vsel %vm1729, %v1369, 0
        %v1812 = vsel %vm1729, %v1372, 0
        %v1815 = vsel %vm1729, %v1375, 0
        %v1818 = vsel %vm1729, %v1378, 0
        %v1821 = vsel %vm1729, %v1381, 0
        %v1824 = vsel %vm1729, %v1384, 0
        %v1827 = vsel %vm1729, %v1387, 0
        %v1830 = vsel %vm1729, %v1390, 0
        %v1833 = vsel %vm1729, %v1393, 0
        %v1836 = vsel %vm1729, %v1396, 0
        %v1839 = vsel %vm1729, %v1399, 0
        %v1842 = vsel %vm1729, %v1402, 0
        %v1845 = vsel %vm1729, %v1405, 0
        %v1848 = vsel %vm1729, %v1408, 0
        %v1851 = vsel %vm1729, %v1411, 0
        %v1854 = vsel %vm1729, %v1414, 0
        %v1857 = vsel %vm1729, %v1417, 0
        %v1860 = vsel %vm1729, %v1420, 0
        %v1863 = vsel %vm1729, %v1423, 0
        %v1866 = vsel %vm1729, %v1426, 0
        %v1869 = vsel %vm1729, %v1429, 0
        %v1872 = vsel %vm1729, %v1432, 0
        %v1875 = vsel %vm1729, %v1435, 0
        %v1878 = vsel %vm1729, %v1438, 0
        %v1881 = vsel %vm1729, %v1441, 0
        %v1884 = vsel %vm1729, %v1444, 0
        %v1887 = vsel %vm1729, %v1447, 0
        %v1890 = vsel %vm1729, %v1450, 0
        %v1893 = vsel %vm1729, %v1453, 0
        %v1896 = vsel %vm1729, %v1456, 0
        %v1899 = vsel %vm1729, %v1459, 0
        %v1902 = vsel %vm1729, %v1462, 0
        %v1905 = vsel %vm1729, %v1465, 0
        %v1908 = vsel %vm1729, %v1468, 0
        %v1911 = vsel %vm1729, %v1471, 0
        %v1914 = vsel %vm1729, %v1474, 0
        %v1917 = vsel %vm1729, %v1477, 0
        %v1920 = vsel %vm1729, %v1480, 0
        %1922 = vmatpush.bf16.msra.mxu0 %v1696
        %1923 = vmatpush.bf16.msra.mxu0 %v1695
        %1924 = vmatpush.bf16.msra.mxu0 %v1694
        %1925 = vmatpush.bf16.msra.mxu0 %v1693
        %1926 = vmatpush.bf16.msra.mxu0 %v1692
        %1927 = vmatpush.bf16.msra.mxu0 %v1691
        %1928 = vmatpush.bf16.msra.mxu0 %v1690
        %1929 = vmatpush.bf16.msra.mxu0 %v1689
        %1930 = vmatmul.bf16.gmra.mxu0 %v1289
        %v1931 = vpop.f32.mrf.mxu0
        %v1932 = vadd.f32 %v647, %v1931
        %v1933 = vpop.f32.mrf.mxu0
        %v1934 = vadd.f32 %v647, %v1933
        %1935 = vmatmul.bf16.gmra.mxu0 %v1292
        %v1936 = vpop.f32.mrf.mxu0
        %v1937 = vadd.f32 %v647, %v1936
        %v1938 = vpop.f32.mrf.mxu0
        %v1939 = vadd.f32 %v647, %v1938
        %1940 = vmatmul.bf16.gmra.mxu0 %v1295
        %v1941 = vpop.f32.mrf.mxu0
        %v1942 = vadd.f32 %v647, %v1941
        %v1943 = vpop.f32.mrf.mxu0
        %v1944 = vadd.f32 %v647, %v1943
        %1945 = vmatmul.bf16.gmra.mxu0 %v1298
        %v1946 = vpop.f32.mrf.mxu0
        %v1947 = vadd.f32 %v647, %v1946
        %v1948 = vpop.f32.mrf.mxu0
        %v1949 = vadd.f32 %v647, %v1948
        %1950 = vmatmul.bf16.gmra.mxu0 %v1301
        %v1951 = vpop.f32.mrf.mxu0
        %v1952 = vadd.f32 %v647, %v1951
        %v1953 = vpop.f32.mrf.mxu0
        %v1954 = vadd.f32 %v647, %v1953
        %1955 = vmatmul.bf16.gmra.mxu0 %v1304
        %v1956 = vpop.f32.mrf.mxu0
        %v1957 = vadd.f32 %v647, %v1956
        %v1958 = vpop.f32.mrf.mxu0
        %v1959 = vadd.f32 %v647, %v1958
        %1960 = vmatmul.bf16.gmra.mxu0 %v1307
        %v1961 = vpop.f32.mrf.mxu0
        %v1962 = vadd.f32 %v647, %v1961
        %v1963 = vpop.f32.mrf.mxu0
        %v1964 = vadd.f32 %v647, %v1963
        %1965 = vmatmul.bf16.gmra.mxu0 %v1310
        %v1966 = vpop.f32.mrf.mxu0
        %v1967 = vadd.f32 %v647, %v1966
        %v1968 = vpop.f32.mrf.mxu0
        %v1969 = vadd.f32 %v647, %v1968
        %1970 = vmatmul.bf16.gmra.mxu0 %v1313
        %v1971 = vpop.f32.mrf.mxu0
        %v1972 = vadd.f32 %v647, %v1971
        %v1973 = vpop.f32.mrf.mxu0
        %v1974 = vadd.f32 %v647, %v1973
        %1975 = vmatmul.bf16.gmra.mxu0 %v1316
        %v1976 = vpop.f32.mrf.mxu0
        %v1977 = vadd.f32 %v647, %v1976
        %v1978 = vpop.f32.mrf.mxu0
        %v1979 = vadd.f32 %v647, %v1978
        %1980 = vmatmul.bf16.gmra.mxu0 %v1319
        %v1981 = vpop.f32.mrf.mxu0
        %v1982 = vadd.f32 %v647, %v1981
        %v1983 = vpop.f32.mrf.mxu0
        %v1984 = vadd.f32 %v647, %v1983
        %1985 = vmatmul.bf16.gmra.mxu0 %v1322
        %v1986 = vpop.f32.mrf.mxu0
        %v1987 = vadd.f32 %v647, %v1986
        %v1988 = vpop.f32.mrf.mxu0
        %v1989 = vadd.f32 %v647, %v1988
        %1990 = vmatmul.bf16.gmra.mxu0 %v1325
        %v1991 = vpop.f32.mrf.mxu0
        %v1992 = vadd.f32 %v647, %v1991
        %v1993 = vpop.f32.mrf.mxu0
        %v1994 = vadd.f32 %v647, %v1993
        %1995 = vmatmul.bf16.gmra.mxu0 %v1328
        %v1996 = vpop.f32.mrf.mxu0
        %v1997 = vadd.f32 %v647, %v1996
        %v1998 = vpop.f32.mrf.mxu0
        %v1999 = vadd.f32 %v647, %v1998
        %2000 = vmatmul.bf16.gmra.mxu0 %v1331
        %v2001 = vpop.f32.mrf.mxu0
        %v2002 = vadd.f32 %v647, %v2001
        %v2003 = vpop.f32.mrf.mxu0
        %v2004 = vadd.f32 %v647, %v2003
        %2005 = vmatmul.bf16.gmra.mxu0 %v1334
        %v2006 = vpop.f32.mrf.mxu0
        %v2007 = vadd.f32 %v647, %v2006
        %v2008 = vpop.f32.mrf.mxu0
        %v2009 = vadd.f32 %v647, %v2008
        %2010 = vmatmul.bf16.gmra.mxu0 %v1337
        %v2011 = vpop.f32.mrf.mxu0
        %v2012 = vadd.f32 %v647, %v2011
        %v2013 = vpop.f32.mrf.mxu0
        %v2014 = vadd.f32 %v647, %v2013
        %2015 = vmatmul.bf16.gmra.mxu0 %v1340
        %v2016 = vpop.f32.mrf.mxu0
        %v2017 = vadd.f32 %v647, %v2016
        %v2018 = vpop.f32.mrf.mxu0
        %v2019 = vadd.f32 %v647, %v2018
        %2020 = vmatmul.bf16.gmra.mxu0 %v1343
        %v2021 = vpop.f32.mrf.mxu0
        %v2022 = vadd.f32 %v647, %v2021
        %v2023 = vpop.f32.mrf.mxu0
        %v2024 = vadd.f32 %v647, %v2023
        %2025 = vmatmul.bf16.gmra.mxu0 %v1346
        %v2026 = vpop.f32.mrf.mxu0
        %v2027 = vadd.f32 %v647, %v2026
        %v2028 = vpop.f32.mrf.mxu0
        %v2029 = vadd.f32 %v647, %v2028
        %2030 = vmatmul.bf16.gmra.mxu0 %v1349
        %v2031 = vpop.f32.mrf.mxu0
        %v2032 = vadd.f32 %v647, %v2031
        %v2033 = vpop.f32.mrf.mxu0
        %v2034 = vadd.f32 %v647, %v2033
        %2035 = vmatmul.bf16.gmra.mxu0 %v1352
        %v2036 = vpop.f32.mrf.mxu0
        %v2037 = vadd.f32 %v647, %v2036
        %v2038 = vpop.f32.mrf.mxu0
        %v2039 = vadd.f32 %v647, %v2038
        %2040 = vmatmul.bf16.gmra.mxu0 %v1355
        %v2041 = vpop.f32.mrf.mxu0
        %v2042 = vadd.f32 %v647, %v2041
        %v2043 = vpop.f32.mrf.mxu0
        %v2044 = vadd.f32 %v647, %v2043
        %2045 = vmatmul.bf16.gmra.mxu0 %v1358
        %v2046 = vpop.f32.mrf.mxu0
        %v2047 = vadd.f32 %v647, %v2046
        %v2048 = vpop.f32.mrf.mxu0
        %v2049 = vadd.f32 %v647, %v2048
        %2050 = vmatmul.bf16.gmra.mxu0 %v1361
        %v2051 = vpop.f32.mrf.mxu0
        %v2052 = vadd.f32 %v647, %v2051
        %v2053 = vpop.f32.mrf.mxu0
        %v2054 = vadd.f32 %v647, %v2053
        %2055 = vmatmul.bf16.gmra.mxu0 %v1364
        %v2056 = vpop.f32.mrf.mxu0
        %v2057 = vadd.f32 %v647, %v2056
        %v2058 = vpop.f32.mrf.mxu0
        %v2059 = vadd.f32 %v647, %v2058
        %2060 = vmatmul.bf16.gmra.mxu0 %v1367
        %v2061 = vpop.f32.mrf.mxu0
        %v2062 = vadd.f32 %v647, %v2061
        %v2063 = vpop.f32.mrf.mxu0
        %v2064 = vadd.f32 %v647, %v2063
        %2065 = vmatmul.bf16.gmra.mxu0 %v1370
        %v2066 = vpop.f32.mrf.mxu0
        %v2067 = vadd.f32 %v647, %v2066
        %v2068 = vpop.f32.mrf.mxu0
        %v2069 = vadd.f32 %v647, %v2068
        %2070 = vmatmul.bf16.gmra.mxu0 %v1373
        %v2071 = vpop.f32.mrf.mxu0
        %v2072 = vadd.f32 %v647, %v2071
        %v2073 = vpop.f32.mrf.mxu0
        %v2074 = vadd.f32 %v647, %v2073
        %2075 = vmatmul.bf16.gmra.mxu0 %v1376
        %v2076 = vpop.f32.mrf.mxu0
        %v2077 = vadd.f32 %v647, %v2076
        %v2078 = vpop.f32.mrf.mxu0
        %v2079 = vadd.f32 %v647, %v2078
        %2080 = vmatmul.bf16.gmra.mxu0 %v1379
        %v2081 = vpop.f32.mrf.mxu0
        %v2082 = vadd.f32 %v647, %v2081
        %v2083 = vpop.f32.mrf.mxu0
        %v2084 = vadd.f32 %v647, %v2083
        %2085 = vmatmul.bf16.gmra.mxu0 %v1382
        %v2086 = vpop.f32.mrf.mxu0
        %v2087 = vadd.f32 %v647, %v2086
        %v2088 = vpop.f32.mrf.mxu0
        %v2089 = vadd.f32 %v647, %v2088
        %2090 = vmatmul.bf16.gmra.mxu0 %v1385
        %v2091 = vpop.f32.mrf.mxu0
        %v2092 = vadd.f32 %v647, %v2091
        %v2093 = vpop.f32.mrf.mxu0
        %v2094 = vadd.f32 %v647, %v2093
        %2095 = vmatmul.bf16.gmra.mxu0 %v1388
        %v2096 = vpop.f32.mrf.mxu0
        %v2097 = vadd.f32 %v647, %v2096
        %v2098 = vpop.f32.mrf.mxu0
        %v2099 = vadd.f32 %v647, %v2098
        %2100 = vmatmul.bf16.gmra.mxu0 %v1391
        %v2101 = vpop.f32.mrf.mxu0
        %v2102 = vadd.f32 %v647, %v2101
        %v2103 = vpop.f32.mrf.mxu0
        %v2104 = vadd.f32 %v647, %v2103
        %2105 = vmatmul.bf16.gmra.mxu0 %v1394
        %v2106 = vpop.f32.mrf.mxu0
        %v2107 = vadd.f32 %v647, %v2106
        %v2108 = vpop.f32.mrf.mxu0
        %v2109 = vadd.f32 %v647, %v2108
        %2110 = vmatmul.bf16.gmra.mxu0 %v1397
        %v2111 = vpop.f32.mrf.mxu0
        %v2112 = vadd.f32 %v647, %v2111
        %v2113 = vpop.f32.mrf.mxu0
        %v2114 = vadd.f32 %v647, %v2113
        %2115 = vmatmul.bf16.gmra.mxu0 %v1400
        %v2116 = vpop.f32.mrf.mxu0
        %v2117 = vadd.f32 %v647, %v2116
        %v2118 = vpop.f32.mrf.mxu0
        %v2119 = vadd.f32 %v647, %v2118
        %2120 = vmatmul.bf16.gmra.mxu0 %v1403
        %v2121 = vpop.f32.mrf.mxu0
        %v2122 = vadd.f32 %v647, %v2121
        %v2123 = vpop.f32.mrf.mxu0
        %v2124 = vadd.f32 %v647, %v2123
        %2125 = vmatmul.bf16.gmra.mxu0 %v1406
        %v2126 = vpop.f32.mrf.mxu0
        %v2127 = vadd.f32 %v647, %v2126
        %v2128 = vpop.f32.mrf.mxu0
        %v2129 = vadd.f32 %v647, %v2128
        %2130 = vmatmul.bf16.gmra.mxu0 %v1409
        %v2131 = vpop.f32.mrf.mxu0
        %v2132 = vadd.f32 %v647, %v2131
        %v2133 = vpop.f32.mrf.mxu0
        %v2134 = vadd.f32 %v647, %v2133
        %2135 = vmatmul.bf16.gmra.mxu0 %v1412
        %v2136 = vpop.f32.mrf.mxu0
        %v2137 = vadd.f32 %v647, %v2136
        %v2138 = vpop.f32.mrf.mxu0
        %v2139 = vadd.f32 %v647, %v2138
        %2140 = vmatmul.bf16.gmra.mxu0 %v1415
        %v2141 = vpop.f32.mrf.mxu0
        %v2142 = vadd.f32 %v647, %v2141
        %v2143 = vpop.f32.mrf.mxu0
        %v2144 = vadd.f32 %v647, %v2143
        %2145 = vmatmul.bf16.gmra.mxu0 %v1418
        %v2146 = vpop.f32.mrf.mxu0
        %v2147 = vadd.f32 %v647, %v2146
        %v2148 = vpop.f32.mrf.mxu0
        %v2149 = vadd.f32 %v647, %v2148
        %2150 = vmatmul.bf16.gmra.mxu0 %v1421
        %v2151 = vpop.f32.mrf.mxu0
        %v2152 = vadd.f32 %v647, %v2151
        %v2153 = vpop.f32.mrf.mxu0
        %v2154 = vadd.f32 %v647, %v2153
        %2155 = vmatmul.bf16.gmra.mxu0 %v1424
        %v2156 = vpop.f32.mrf.mxu0
        %v2157 = vadd.f32 %v647, %v2156
        %v2158 = vpop.f32.mrf.mxu0
        %v2159 = vadd.f32 %v647, %v2158
        %2160 = vmatmul.bf16.gmra.mxu0 %v1427
        %v2161 = vpop.f32.mrf.mxu0
        %v2162 = vadd.f32 %v647, %v2161
        %v2163 = vpop.f32.mrf.mxu0
        %v2164 = vadd.f32 %v647, %v2163
        %2165 = vmatmul.bf16.gmra.mxu0 %v1430
        %v2166 = vpop.f32.mrf.mxu0
        %v2167 = vadd.f32 %v647, %v2166
        %v2168 = vpop.f32.mrf.mxu0
        %v2169 = vadd.f32 %v647, %v2168
        %2170 = vmatmul.bf16.gmra.mxu0 %v1433
        %v2171 = vpop.f32.mrf.mxu0
        %v2172 = vadd.f32 %v647, %v2171
        %v2173 = vpop.f32.mrf.mxu0
        %v2174 = vadd.f32 %v647, %v2173
        %2175 = vmatmul.bf16.gmra.mxu0 %v1436
        %v2176 = vpop.f32.mrf.mxu0
        %v2177 = vadd.f32 %v647, %v2176
        %v2178 = vpop.f32.mrf.mxu0
        %v2179 = vadd.f32 %v647, %v2178
        %2180 = vmatmul.bf16.gmra.mxu0 %v1439
        %v2181 = vpop.f32.mrf.mxu0
        %v2182 = vadd.f32 %v647, %v2181
        %v2183 = vpop.f32.mrf.mxu0
        %v2184 = vadd.f32 %v647, %v2183
        %2185 = vmatmul.bf16.gmra.mxu0 %v1442
        %v2186 = vpop.f32.mrf.mxu0
        %v2187 = vadd.f32 %v647, %v2186
        %v2188 = vpop.f32.mrf.mxu0
        %v2189 = vadd.f32 %v647, %v2188
        %2190 = vmatmul.bf16.gmra.mxu0 %v1445
        %v2191 = vpop.f32.mrf.mxu0
        %v2192 = vadd.f32 %v647, %v2191
        %v2193 = vpop.f32.mrf.mxu0
        %v2194 = vadd.f32 %v647, %v2193
        %2195 = vmatmul.bf16.gmra.mxu0 %v1448
        %v2196 = vpop.f32.mrf.mxu0
        %v2197 = vadd.f32 %v647, %v2196
        %v2198 = vpop.f32.mrf.mxu0
        %v2199 = vadd.f32 %v647, %v2198
        %2200 = vmatmul.bf16.gmra.mxu0 %v1451
        %v2201 = vpop.f32.mrf.mxu0
        %v2202 = vadd.f32 %v647, %v2201
        %v2203 = vpop.f32.mrf.mxu0
        %v2204 = vadd.f32 %v647, %v2203
        %2205 = vmatmul.bf16.gmra.mxu0 %v1454
        %v2206 = vpop.f32.mrf.mxu0
        %v2207 = vadd.f32 %v647, %v2206
        %v2208 = vpop.f32.mrf.mxu0
        %v2209 = vadd.f32 %v647, %v2208
        %2210 = vmatmul.bf16.gmra.mxu0 %v1457
        %v2211 = vpop.f32.mrf.mxu0
        %v2212 = vadd.f32 %v647, %v2211
        %v2213 = vpop.f32.mrf.mxu0
        %v2214 = vadd.f32 %v647, %v2213
        %2215 = vmatmul.bf16.gmra.mxu0 %v1460
        %v2216 = vpop.f32.mrf.mxu0
        %v2217 = vadd.f32 %v647, %v2216
        %v2218 = vpop.f32.mrf.mxu0
        %v2219 = vadd.f32 %v647, %v2218
        %2220 = vmatmul.bf16.gmra.mxu0 %v1463
        %v2221 = vpop.f32.mrf.mxu0
        %v2222 = vadd.f32 %v647, %v2221
        %v2223 = vpop.f32.mrf.mxu0
        %v2224 = vadd.f32 %v647, %v2223
        %2225 = vmatmul.bf16.gmra.mxu0 %v1466
        %v2226 = vpop.f32.mrf.mxu0
        %v2227 = vadd.f32 %v647, %v2226
        %v2228 = vpop.f32.mrf.mxu0
        %v2229 = vadd.f32 %v647, %v2228
        %2230 = vmatmul.bf16.gmra.mxu0 %v1469
        %v2231 = vpop.f32.mrf.mxu0
        %v2232 = vadd.f32 %v647, %v2231
        %v2233 = vpop.f32.mrf.mxu0
        %v2234 = vadd.f32 %v647, %v2233
        %2235 = vmatmul.bf16.gmra.mxu0 %v1472
        %v2236 = vpop.f32.mrf.mxu0
        %v2237 = vadd.f32 %v647, %v2236
        %v2238 = vpop.f32.mrf.mxu0
        %v2239 = vadd.f32 %v647, %v2238
        %2240 = vmatmul.bf16.gmra.mxu0 %v1475
        %v2241 = vpop.f32.mrf.mxu0
        %v2242 = vadd.f32 %v647, %v2241
        %v2243 = vpop.f32.mrf.mxu0
        %v2244 = vadd.f32 %v647, %v2243
        %2245 = vmatmul.bf16.gmra.mxu0 %v1478
        %v2246 = vpop.f32.mrf.mxu0
        %v2247 = vadd.f32 %v647, %v2246
        %v2248 = vpop.f32.mrf.mxu0
        %v2249 = vadd.f32 %v647, %v2248
        %2250 = vdwg.mxu0
        %2251 = vmatpush.bf16.msra.mxu0 %v1704
        %2252 = vmatpush.bf16.msra.mxu0 %v1703
        %2253 = vmatpush.bf16.msra.mxu0 %v1702
        %2254 = vmatpush.bf16.msra.mxu0 %v1701
        %2255 = vmatpush.bf16.msra.mxu0 %v1700
        %2256 = vmatpush.bf16.msra.mxu0 %v1699
        %2257 = vmatpush.bf16.msra.mxu0 %v1698
        %2258 = vmatpush.bf16.msra.mxu0 %v1697
        %2259 = vmatmul.bf16.gmra.mxu0 %v1290
        %v2260 = vpop.f32.mrf.mxu0
        %v2261 = vadd.f32 %v1932, %v2260
        %v2262 = vpop.f32.mrf.mxu0
        %v2263 = vadd.f32 %v1934, %v2262
        %2264 = vmatmul.bf16.gmra.mxu0 %v1293
        %v2265 = vpop.f32.mrf.mxu0
        %v2266 = vadd.f32 %v1937, %v2265
        %v2267 = vpop.f32.mrf.mxu0
        %v2268 = vadd.f32 %v1939, %v2267
        %2269 = vmatmul.bf16.gmra.mxu0 %v1296
        %v2270 = vpop.f32.mrf.mxu0
        %v2271 = vadd.f32 %v1942, %v2270
        %v2272 = vpop.f32.mrf.mxu0
        %v2273 = vadd.f32 %v1944, %v2272
        %2274 = vmatmul.bf16.gmra.mxu0 %v1299
        %v2275 = vpop.f32.mrf.mxu0
        %v2276 = vadd.f32 %v1947, %v2275
        %v2277 = vpop.f32.mrf.mxu0
        %v2278 = vadd.f32 %v1949, %v2277
        %2279 = vmatmul.bf16.gmra.mxu0 %v1302
        %v2280 = vpop.f32.mrf.mxu0
        %v2281 = vadd.f32 %v1952, %v2280
        %v2282 = vpop.f32.mrf.mxu0
        %v2283 = vadd.f32 %v1954, %v2282
        %2284 = vmatmul.bf16.gmra.mxu0 %v1305
        %v2285 = vpop.f32.mrf.mxu0
        %v2286 = vadd.f32 %v1957, %v2285
        %v2287 = vpop.f32.mrf.mxu0
        %v2288 = vadd.f32 %v1959, %v2287
        %2289 = vmatmul.bf16.gmra.mxu0 %v1308
        %v2290 = vpop.f32.mrf.mxu0
        %v2291 = vadd.f32 %v1962, %v2290
        %v2292 = vpop.f32.mrf.mxu0
        %v2293 = vadd.f32 %v1964, %v2292
        %2294 = vmatmul.bf16.gmra.mxu0 %v1311
        %v2295 = vpop.f32.mrf.mxu0
        %v2296 = vadd.f32 %v1967, %v2295
        %v2297 = vpop.f32.mrf.mxu0
        %v2298 = vadd.f32 %v1969, %v2297
        %2299 = vmatmul.bf16.gmra.mxu0 %v1314
        %v2300 = vpop.f32.mrf.mxu0
        %v2301 = vadd.f32 %v1972, %v2300
        %v2302 = vpop.f32.mrf.mxu0
        %v2303 = vadd.f32 %v1974, %v2302
        %2304 = vmatmul.bf16.gmra.mxu0 %v1317
        %v2305 = vpop.f32.mrf.mxu0
        %v2306 = vadd.f32 %v1977, %v2305
        %v2307 = vpop.f32.mrf.mxu0
        %v2308 = vadd.f32 %v1979, %v2307
        %2309 = vmatmul.bf16.gmra.mxu0 %v1320
        %v2310 = vpop.f32.mrf.mxu0
        %v2311 = vadd.f32 %v1982, %v2310
        %v2312 = vpop.f32.mrf.mxu0
        %v2313 = vadd.f32 %v1984, %v2312
        %2314 = vmatmul.bf16.gmra.mxu0 %v1323
        %v2315 = vpop.f32.mrf.mxu0
        %v2316 = vadd.f32 %v1987, %v2315
        %v2317 = vpop.f32.mrf.mxu0
        %v2318 = vadd.f32 %v1989, %v2317
        %2319 = vmatmul.bf16.gmra.mxu0 %v1326
        %v2320 = vpop.f32.mrf.mxu0
        %v2321 = vadd.f32 %v1992, %v2320
        %v2322 = vpop.f32.mrf.mxu0
        %v2323 = vadd.f32 %v1994, %v2322
        %2324 = vmatmul.bf16.gmra.mxu0 %v1329
        %v2325 = vpop.f32.mrf.mxu0
        %v2326 = vadd.f32 %v1997, %v2325
        %v2327 = vpop.f32.mrf.mxu0
        %v2328 = vadd.f32 %v1999, %v2327
        %2329 = vmatmul.bf16.gmra.mxu0 %v1332
        %v2330 = vpop.f32.mrf.mxu0
        %v2331 = vadd.f32 %v2002, %v2330
        %v2332 = vpop.f32.mrf.mxu0
        %v2333 = vadd.f32 %v2004, %v2332
        %2334 = vmatmul.bf16.gmra.mxu0 %v1335
        %v2335 = vpop.f32.mrf.mxu0
        %v2336 = vadd.f32 %v2007, %v2335
        %v2337 = vpop.f32.mrf.mxu0
        %v2338 = vadd.f32 %v2009, %v2337
        %2339 = vmatmul.bf16.gmra.mxu0 %v1338
        %v2340 = vpop.f32.mrf.mxu0
        %v2341 = vadd.f32 %v2012, %v2340
        %v2342 = vpop.f32.mrf.mxu0
        %v2343 = vadd.f32 %v2014, %v2342
        %2344 = vmatmul.bf16.gmra.mxu0 %v1341
        %v2345 = vpop.f32.mrf.mxu0
        %v2346 = vadd.f32 %v2017, %v2345
        %v2347 = vpop.f32.mrf.mxu0
        %v2348 = vadd.f32 %v2019, %v2347
        %2349 = vmatmul.bf16.gmra.mxu0 %v1344
        %v2350 = vpop.f32.mrf.mxu0
        %v2351 = vadd.f32 %v2022, %v2350
        %v2352 = vpop.f32.mrf.mxu0
        %v2353 = vadd.f32 %v2024, %v2352
        %2354 = vmatmul.bf16.gmra.mxu0 %v1347
        %v2355 = vpop.f32.mrf.mxu0
        %v2356 = vadd.f32 %v2027, %v2355
        %v2357 = vpop.f32.mrf.mxu0
        %v2358 = vadd.f32 %v2029, %v2357
        %2359 = vmatmul.bf16.gmra.mxu0 %v1350
        %v2360 = vpop.f32.mrf.mxu0
        %v2361 = vadd.f32 %v2032, %v2360
        %v2362 = vpop.f32.mrf.mxu0
        %v2363 = vadd.f32 %v2034, %v2362
        %2364 = vmatmul.bf16.gmra.mxu0 %v1353
        %v2365 = vpop.f32.mrf.mxu0
        %v2366 = vadd.f32 %v2037, %v2365
        %v2367 = vpop.f32.mrf.mxu0
        %v2368 = vadd.f32 %v2039, %v2367
        %2369 = vmatmul.bf16.gmra.mxu0 %v1356
        %v2370 = vpop.f32.mrf.mxu0
        %v2371 = vadd.f32 %v2042, %v2370
        %v2372 = vpop.f32.mrf.mxu0
        %v2373 = vadd.f32 %v2044, %v2372
        %2374 = vmatmul.bf16.gmra.mxu0 %v1359
        %v2375 = vpop.f32.mrf.mxu0
        %v2376 = vadd.f32 %v2047, %v2375
        %v2377 = vpop.f32.mrf.mxu0
        %v2378 = vadd.f32 %v2049, %v2377
        %2379 = vmatmul.bf16.gmra.mxu0 %v1362
        %v2380 = vpop.f32.mrf.mxu0
        %v2381 = vadd.f32 %v2052, %v2380
        %v2382 = vpop.f32.mrf.mxu0
        %v2383 = vadd.f32 %v2054, %v2382
        %2384 = vmatmul.bf16.gmra.mxu0 %v1365
        %v2385 = vpop.f32.mrf.mxu0
        %v2386 = vadd.f32 %v2057, %v2385
        %v2387 = vpop.f32.mrf.mxu0
        %v2388 = vadd.f32 %v2059, %v2387
        %2389 = vmatmul.bf16.gmra.mxu0 %v1368
        %v2390 = vpop.f32.mrf.mxu0
        %v2391 = vadd.f32 %v2062, %v2390
        %v2392 = vpop.f32.mrf.mxu0
        %v2393 = vadd.f32 %v2064, %v2392
        %2394 = vmatmul.bf16.gmra.mxu0 %v1371
        %v2395 = vpop.f32.mrf.mxu0
        %v2396 = vadd.f32 %v2067, %v2395
        %v2397 = vpop.f32.mrf.mxu0
        %v2398 = vadd.f32 %v2069, %v2397
        %2399 = vmatmul.bf16.gmra.mxu0 %v1374
        %v2400 = vpop.f32.mrf.mxu0
        %v2401 = vadd.f32 %v2072, %v2400
        %v2402 = vpop.f32.mrf.mxu0
        %v2403 = vadd.f32 %v2074, %v2402
        %2404 = vmatmul.bf16.gmra.mxu0 %v1377
        %v2405 = vpop.f32.mrf.mxu0
        %v2406 = vadd.f32 %v2077, %v2405
        %v2407 = vpop.f32.mrf.mxu0
        %v2408 = vadd.f32 %v2079, %v2407
        %2409 = vmatmul.bf16.gmra.mxu0 %v1380
        %v2410 = vpop.f32.mrf.mxu0
        %v2411 = vadd.f32 %v2082, %v2410
        %v2412 = vpop.f32.mrf.mxu0
        %v2413 = vadd.f32 %v2084, %v2412
        %2414 = vmatmul.bf16.gmra.mxu0 %v1383
        %v2415 = vpop.f32.mrf.mxu0
        %v2416 = vadd.f32 %v2087, %v2415
        %v2417 = vpop.f32.mrf.mxu0
        %v2418 = vadd.f32 %v2089, %v2417
        %2419 = vmatmul.bf16.gmra.mxu0 %v1386
        %v2420 = vpop.f32.mrf.mxu0
        %v2421 = vadd.f32 %v2092, %v2420
        %v2422 = vpop.f32.mrf.mxu0
        %v2423 = vadd.f32 %v2094, %v2422
        %2424 = vmatmul.bf16.gmra.mxu0 %v1389
        %v2425 = vpop.f32.mrf.mxu0
        %v2426 = vadd.f32 %v2097, %v2425
        %v2427 = vpop.f32.mrf.mxu0
        %v2428 = vadd.f32 %v2099, %v2427
        %2429 = vmatmul.bf16.gmra.mxu0 %v1392
        %v2430 = vpop.f32.mrf.mxu0
        %v2431 = vadd.f32 %v2102, %v2430
        %v2432 = vpop.f32.mrf.mxu0
        %v2433 = vadd.f32 %v2104, %v2432
        %2434 = vmatmul.bf16.gmra.mxu0 %v1395
        %v2435 = vpop.f32.mrf.mxu0
        %v2436 = vadd.f32 %v2107, %v2435
        %v2437 = vpop.f32.mrf.mxu0
        %v2438 = vadd.f32 %v2109, %v2437
        %2439 = vmatmul.bf16.gmra.mxu0 %v1398
        %v2440 = vpop.f32.mrf.mxu0
        %v2441 = vadd.f32 %v2112, %v2440
        %v2442 = vpop.f32.mrf.mxu0
        %v2443 = vadd.f32 %v2114, %v2442
        %2444 = vmatmul.bf16.gmra.mxu0 %v1401
        %v2445 = vpop.f32.mrf.mxu0
        %v2446 = vadd.f32 %v2117, %v2445
        %v2447 = vpop.f32.mrf.mxu0
        %v2448 = vadd.f32 %v2119, %v2447
        %2449 = vmatmul.bf16.gmra.mxu0 %v1404
        %v2450 = vpop.f32.mrf.mxu0
        %v2451 = vadd.f32 %v2122, %v2450
        %v2452 = vpop.f32.mrf.mxu0
        %v2453 = vadd.f32 %v2124, %v2452
        %2454 = vmatmul.bf16.gmra.mxu0 %v1407
        %v2455 = vpop.f32.mrf.mxu0
        %v2456 = vadd.f32 %v2127, %v2455
        %v2457 = vpop.f32.mrf.mxu0
        %v2458 = vadd.f32 %v2129, %v2457
        %2459 = vmatmul.bf16.gmra.mxu0 %v1410
        %v2460 = vpop.f32.mrf.mxu0
        %v2461 = vadd.f32 %v2132, %v2460
        %v2462 = vpop.f32.mrf.mxu0
        %v2463 = vadd.f32 %v2134, %v2462
        %2464 = vmatmul.bf16.gmra.mxu0 %v1413
        %v2465 = vpop.f32.mrf.mxu0
        %v2466 = vadd.f32 %v2137, %v2465
        %v2467 = vpop.f32.mrf.mxu0
        %v2468 = vadd.f32 %v2139, %v2467
        %2469 = vmatmul.bf16.gmra.mxu0 %v1416
        %v2470 = vpop.f32.mrf.mxu0
        %v2471 = vadd.f32 %v2142, %v2470
        %v2472 = vpop.f32.mrf.mxu0
        %v2473 = vadd.f32 %v2144, %v2472
        %2474 = vmatmul.bf16.gmra.mxu0 %v1419
        %v2475 = vpop.f32.mrf.mxu0
        %v2476 = vadd.f32 %v2147, %v2475
        %v2477 = vpop.f32.mrf.mxu0
        %v2478 = vadd.f32 %v2149, %v2477
        %2479 = vmatmul.bf16.gmra.mxu0 %v1422
        %v2480 = vpop.f32.mrf.mxu0
        %v2481 = vadd.f32 %v2152, %v2480
        %v2482 = vpop.f32.mrf.mxu0
        %v2483 = vadd.f32 %v2154, %v2482
        %2484 = vmatmul.bf16.gmra.mxu0 %v1425
        %v2485 = vpop.f32.mrf.mxu0
        %v2486 = vadd.f32 %v2157, %v2485
        %v2487 = vpop.f32.mrf.mxu0
        %v2488 = vadd.f32 %v2159, %v2487
        %2489 = vmatmul.bf16.gmra.mxu0 %v1428
        %v2490 = vpop.f32.mrf.mxu0
        %v2491 = vadd.f32 %v2162, %v2490
        %v2492 = vpop.f32.mrf.mxu0
        %v2493 = vadd.f32 %v2164, %v2492
        %2494 = vmatmul.bf16.gmra.mxu0 %v1431
        %v2495 = vpop.f32.mrf.mxu0
        %v2496 = vadd.f32 %v2167, %v2495
        %v2497 = vpop.f32.mrf.mxu0
        %v2498 = vadd.f32 %v2169, %v2497
        %2499 = vmatmul.bf16.gmra.mxu0 %v1434
        %v2500 = vpop.f32.mrf.mxu0
        %v2501 = vadd.f32 %v2172, %v2500
        %v2502 = vpop.f32.mrf.mxu0
        %v2503 = vadd.f32 %v2174, %v2502
        %2504 = vmatmul.bf16.gmra.mxu0 %v1437
        %v2505 = vpop.f32.mrf.mxu0
        %v2506 = vadd.f32 %v2177, %v2505
        %v2507 = vpop.f32.mrf.mxu0
        %v2508 = vadd.f32 %v2179, %v2507
        %2509 = vmatmul.bf16.gmra.mxu0 %v1440
        %v2510 = vpop.f32.mrf.mxu0
        %v2511 = vadd.f32 %v2182, %v2510
        %v2512 = vpop.f32.mrf.mxu0
        %v2513 = vadd.f32 %v2184, %v2512
        %2514 = vmatmul.bf16.gmra.mxu0 %v1443
        %v2515 = vpop.f32.mrf.mxu0
        %v2516 = vadd.f32 %v2187, %v2515
        %v2517 = vpop.f32.mrf.mxu0
        %v2518 = vadd.f32 %v2189, %v2517
        %2519 = vmatmul.bf16.gmra.mxu0 %v1446
        %v2520 = vpop.f32.mrf.mxu0
        %v2521 = vadd.f32 %v2192, %v2520
        %v2522 = vpop.f32.mrf.mxu0
        %v2523 = vadd.f32 %v2194, %v2522
        %2524 = vmatmul.bf16.gmra.mxu0 %v1449
        %v2525 = vpop.f32.mrf.mxu0
        %v2526 = vadd.f32 %v2197, %v2525
        %v2527 = vpop.f32.mrf.mxu0
        %v2528 = vadd.f32 %v2199, %v2527
        %2529 = vmatmul.bf16.gmra.mxu0 %v1452
        %v2530 = vpop.f32.mrf.mxu0
        %v2531 = vadd.f32 %v2202, %v2530
        %v2532 = vpop.f32.mrf.mxu0
        %v2533 = vadd.f32 %v2204, %v2532
        %2534 = vmatmul.bf16.gmra.mxu0 %v1455
        %v2535 = vpop.f32.mrf.mxu0
        %v2536 = vadd.f32 %v2207, %v2535
        %v2537 = vpop.f32.mrf.mxu0
        %v2538 = vadd.f32 %v2209, %v2537
        %2539 = vmatmul.bf16.gmra.mxu0 %v1458
        %v2540 = vpop.f32.mrf.mxu0
        %v2541 = vadd.f32 %v2212, %v2540
        %v2542 = vpop.f32.mrf.mxu0
        %v2543 = vadd.f32 %v2214, %v2542
        %2544 = vmatmul.bf16.gmra.mxu0 %v1461
        %v2545 = vpop.f32.mrf.mxu0
        %v2546 = vadd.f32 %v2217, %v2545
        %v2547 = vpop.f32.mrf.mxu0
        %v2548 = vadd.f32 %v2219, %v2547
        %2549 = vmatmul.bf16.gmra.mxu0 %v1464
        %v2550 = vpop.f32.mrf.mxu0
        %v2551 = vadd.f32 %v2222, %v2550
        %v2552 = vpop.f32.mrf.mxu0
        %v2553 = vadd.f32 %v2224, %v2552
        %2554 = vmatmul.bf16.gmra.mxu0 %v1467
        %v2555 = vpop.f32.mrf.mxu0
        %v2556 = vadd.f32 %v2227, %v2555
        %v2557 = vpop.f32.mrf.mxu0
        %v2558 = vadd.f32 %v2229, %v2557
        %2559 = vmatmul.bf16.gmra.mxu0 %v1470
        %v2560 = vpop.f32.mrf.mxu0
        %v2561 = vadd.f32 %v2232, %v2560
        %v2562 = vpop.f32.mrf.mxu0
        %v2563 = vadd.f32 %v2234, %v2562
        %2564 = vmatmul.bf16.gmra.mxu0 %v1473
        %v2565 = vpop.f32.mrf.mxu0
        %v2566 = vadd.f32 %v2237, %v2565
        %v2567 = vpop.f32.mrf.mxu0
        %v2568 = vadd.f32 %v2239, %v2567
        %2569 = vmatmul.bf16.gmra.mxu0 %v1476
        %v2570 = vpop.f32.mrf.mxu0
        %v2571 = vadd.f32 %v2242, %v2570
        %v2572 = vpop.f32.mrf.mxu0
        %v2573 = vadd.f32 %v2244, %v2572
        %2574 = vmatmul.bf16.gmra.mxu0 %v1479
        %v2575 = vpop.f32.mrf.mxu0
        %v2576 = vadd.f32 %v2247, %v2575
        %v2577 = vpop.f32.mrf.mxu0
        %v2578 = vadd.f32 %v2249, %v2577
        %2579 = vdwg.mxu0
        %2580 = vmatpush.bf16.msra.mxu0 0
        %2581 = vmatpush.bf16.msra.mxu0 0
        %2582 = vmatpush.bf16.msra.mxu0 0
        %2583 = vmatpush.bf16.msra.mxu0 0
        %2584 = vmatpush.bf16.msra.mxu0 %v1708
        %2585 = vmatpush.bf16.msra.mxu0 %v1707
        %2586 = vmatpush.bf16.msra.mxu0 %v1706
        %2587 = vmatpush.bf16.msra.mxu0 %v1705
        %2588 = vmatmul.bf16.gmra.mxu0 %v1731
        %v2589 = vpop.f32.mrf.mxu0
        %v2590 = vadd.f32 %v2261, %v2589
        %v2591 = vpop.f32.mrf.mxu0
        %v2592 = vadd.f32 %v2263, %v2591
        %2593 = vmatmul.bf16.gmra.mxu0 %v1734
        %v2594 = vpop.f32.mrf.mxu0
        %v2595 = vadd.f32 %v2266, %v2594
        %v2596 = vpop.f32.mrf.mxu0
        %v2597 = vadd.f32 %v2268, %v2596
        %2598 = vmatmul.bf16.gmra.mxu0 %v1737
        %v2599 = vpop.f32.mrf.mxu0
        %v2600 = vadd.f32 %v2271, %v2599
        %v2601 = vpop.f32.mrf.mxu0
        %v2602 = vadd.f32 %v2273, %v2601
        %2603 = vmatmul.bf16.gmra.mxu0 %v1740
        %v2604 = vpop.f32.mrf.mxu0
        %v2605 = vadd.f32 %v2276, %v2604
        %v2606 = vpop.f32.mrf.mxu0
        %v2607 = vadd.f32 %v2278, %v2606
        %2608 = vmatmul.bf16.gmra.mxu0 %v1743
        %v2609 = vpop.f32.mrf.mxu0
        %v2610 = vadd.f32 %v2281, %v2609
        %v2611 = vpop.f32.mrf.mxu0
        %v2612 = vadd.f32 %v2283, %v2611
        %2613 = vmatmul.bf16.gmra.mxu0 %v1746
        %v2614 = vpop.f32.mrf.mxu0
        %v2615 = vadd.f32 %v2286, %v2614
        %v2616 = vpop.f32.mrf.mxu0
        %v2617 = vadd.f32 %v2288, %v2616
        %2618 = vmatmul.bf16.gmra.mxu0 %v1749
        %v2619 = vpop.f32.mrf.mxu0
        %v2620 = vadd.f32 %v2291, %v2619
        %v2621 = vpop.f32.mrf.mxu0
        %v2622 = vadd.f32 %v2293, %v2621
        %2623 = vmatmul.bf16.gmra.mxu0 %v1752
        %v2624 = vpop.f32.mrf.mxu0
        %v2625 = vadd.f32 %v2296, %v2624
        %v2626 = vpop.f32.mrf.mxu0
        %v2627 = vadd.f32 %v2298, %v2626
        %2628 = vmatmul.bf16.gmra.mxu0 %v1755
        %v2629 = vpop.f32.mrf.mxu0
        %v2630 = vadd.f32 %v2301, %v2629
        %v2631 = vpop.f32.mrf.mxu0
        %v2632 = vadd.f32 %v2303, %v2631
        %2633 = vmatmul.bf16.gmra.mxu0 %v1758
        %v2634 = vpop.f32.mrf.mxu0
        %v2635 = vadd.f32 %v2306, %v2634
        %v2636 = vpop.f32.mrf.mxu0
        %v2637 = vadd.f32 %v2308, %v2636
        %2638 = vmatmul.bf16.gmra.mxu0 %v1761
        %v2639 = vpop.f32.mrf.mxu0
        %v2640 = vadd.f32 %v2311, %v2639
        %v2641 = vpop.f32.mrf.mxu0
        %v2642 = vadd.f32 %v2313, %v2641
        %2643 = vmatmul.bf16.gmra.mxu0 %v1764
        %v2644 = vpop.f32.mrf.mxu0
        %v2645 = vadd.f32 %v2316, %v2644
        %v2646 = vpop.f32.mrf.mxu0
        %v2647 = vadd.f32 %v2318, %v2646
        %2648 = vmatmul.bf16.gmra.mxu0 %v1767
        %v2649 = vpop.f32.mrf.mxu0
        %v2650 = vadd.f32 %v2321, %v2649
        %v2651 = vpop.f32.mrf.mxu0
        %v2652 = vadd.f32 %v2323, %v2651
        %2653 = vmatmul.bf16.gmra.mxu0 %v1770
        %v2654 = vpop.f32.mrf.mxu0
        %v2655 = vadd.f32 %v2326, %v2654
        %v2656 = vpop.f32.mrf.mxu0
        %v2657 = vadd.f32 %v2328, %v2656
        %2658 = vmatmul.bf16.gmra.mxu0 %v1773
        %v2659 = vpop.f32.mrf.mxu0
        %v2660 = vadd.f32 %v2331, %v2659
        %v2661 = vpop.f32.mrf.mxu0
        %v2662 = vadd.f32 %v2333, %v2661
        %2663 = vmatmul.bf16.gmra.mxu0 %v1776
        %v2664 = vpop.f32.mrf.mxu0
        %v2665 = vadd.f32 %v2336, %v2664
        %v2666 = vpop.f32.mrf.mxu0
        %v2667 = vadd.f32 %v2338, %v2666
        %2668 = vmatmul.bf16.gmra.mxu0 %v1779
        %v2669 = vpop.f32.mrf.mxu0
        %v2670 = vadd.f32 %v2341, %v2669
        %v2671 = vpop.f32.mrf.mxu0
        %v2672 = vadd.f32 %v2343, %v2671
        %2673 = vmatmul.bf16.gmra.mxu0 %v1782
        %v2674 = vpop.f32.mrf.mxu0
        %v2675 = vadd.f32 %v2346, %v2674
        %v2676 = vpop.f32.mrf.mxu0
        %v2677 = vadd.f32 %v2348, %v2676
        %2678 = vmatmul.bf16.gmra.mxu0 %v1785
        %v2679 = vpop.f32.mrf.mxu0
        %v2680 = vadd.f32 %v2351, %v2679
        %v2681 = vpop.f32.mrf.mxu0
        %v2682 = vadd.f32 %v2353, %v2681
        %2683 = vmatmul.bf16.gmra.mxu0 %v1788
        %v2684 = vpop.f32.mrf.mxu0
        %v2685 = vadd.f32 %v2356, %v2684
        %v2686 = vpop.f32.mrf.mxu0
        %v2687 = vadd.f32 %v2358, %v2686
        %2688 = vmatmul.bf16.gmra.mxu0 %v1791
        %v2689 = vpop.f32.mrf.mxu0
        %v2690 = vadd.f32 %v2361, %v2689
        %v2691 = vpop.f32.mrf.mxu0
        %v2692 = vadd.f32 %v2363, %v2691
        %2693 = vmatmul.bf16.gmra.mxu0 %v1794
        %v2694 = vpop.f32.mrf.mxu0
        %v2695 = vadd.f32 %v2366, %v2694
        %v2696 = vpop.f32.mrf.mxu0
        %v2697 = vadd.f32 %v2368, %v2696
        %2698 = vmatmul.bf16.gmra.mxu0 %v1797
        %v2699 = vpop.f32.mrf.mxu0
        %v2700 = vadd.f32 %v2371, %v2699
        %v2701 = vpop.f32.mrf.mxu0
        %v2702 = vadd.f32 %v2373, %v2701
        %2703 = vmatmul.bf16.gmra.mxu0 %v1800
        %v2704 = vpop.f32.mrf.mxu0
        %v2705 = vadd.f32 %v2376, %v2704
        %v2706 = vpop.f32.mrf.mxu0
        %v2707 = vadd.f32 %v2378, %v2706
        %2708 = vmatmul.bf16.gmra.mxu0 %v1803
        %v2709 = vpop.f32.mrf.mxu0
        %v2710 = vadd.f32 %v2381, %v2709
        %v2711 = vpop.f32.mrf.mxu0
        %v2712 = vadd.f32 %v2383, %v2711
        %2713 = vmatmul.bf16.gmra.mxu0 %v1806
        %v2714 = vpop.f32.mrf.mxu0
        %v2715 = vadd.f32 %v2386, %v2714
        %v2716 = vpop.f32.mrf.mxu0
        %v2717 = vadd.f32 %v2388, %v2716
        %2718 = vmatmul.bf16.gmra.mxu0 %v1809
        %v2719 = vpop.f32.mrf.mxu0
        %v2720 = vadd.f32 %v2391, %v2719
        %v2721 = vpop.f32.mrf.mxu0
        %v2722 = vadd.f32 %v2393, %v2721
        %2723 = vmatmul.bf16.gmra.mxu0 %v1812
        %v2724 = vpop.f32.mrf.mxu0
        %v2725 = vadd.f32 %v2396, %v2724
        %v2726 = vpop.f32.mrf.mxu0
        %v2727 = vadd.f32 %v2398, %v2726
        %2728 = vmatmul.bf16.gmra.mxu0 %v1815
        %v2729 = vpop.f32.mrf.mxu0
        %v2730 = vadd.f32 %v2401, %v2729
        %v2731 = vpop.f32.mrf.mxu0
        %v2732 = vadd.f32 %v2403, %v2731
        %2733 = vmatmul.bf16.gmra.mxu0 %v1818
        %v2734 = vpop.f32.mrf.mxu0
        %v2735 = vadd.f32 %v2406, %v2734
        %v2736 = vpop.f32.mrf.mxu0
        %v2737 = vadd.f32 %v2408, %v2736
        %2738 = vmatmul.bf16.gmra.mxu0 %v1821
        %v2739 = vpop.f32.mrf.mxu0
        %v2740 = vadd.f32 %v2411, %v2739
        %v2741 = vpop.f32.mrf.mxu0
        %v2742 = vadd.f32 %v2413, %v2741
        %2743 = vmatmul.bf16.gmra.mxu0 %v1824
        %v2744 = vpop.f32.mrf.mxu0
        %v2745 = vadd.f32 %v2416, %v2744
        %v2746 = vpop.f32.mrf.mxu0
        %v2747 = vadd.f32 %v2418, %v2746
        %2748 = vmatmul.bf16.gmra.mxu0 %v1827
        %v2749 = vpop.f32.mrf.mxu0
        %v2750 = vadd.f32 %v2421, %v2749
        %v2751 = vpop.f32.mrf.mxu0
        %v2752 = vadd.f32 %v2423, %v2751
        %2753 = vmatmul.bf16.gmra.mxu0 %v1830
        %v2754 = vpop.f32.mrf.mxu0
        %v2755 = vadd.f32 %v2426, %v2754
        %v2756 = vpop.f32.mrf.mxu0
        %v2757 = vadd.f32 %v2428, %v2756
        %2758 = vmatmul.bf16.gmra.mxu0 %v1833
        %v2759 = vpop.f32.mrf.mxu0
        %v2760 = vadd.f32 %v2431, %v2759
        %v2761 = vpop.f32.mrf.mxu0
        %v2762 = vadd.f32 %v2433, %v2761
        %2763 = vmatmul.bf16.gmra.mxu0 %v1836
        %v2764 = vpop.f32.mrf.mxu0
        %v2765 = vadd.f32 %v2436, %v2764
        %v2766 = vpop.f32.mrf.mxu0
        %v2767 = vadd.f32 %v2438, %v2766
        %2768 = vmatmul.bf16.gmra.mxu0 %v1839
        %v2769 = vpop.f32.mrf.mxu0
        %v2770 = vadd.f32 %v2441, %v2769
        %v2771 = vpop.f32.mrf.mxu0
        %v2772 = vadd.f32 %v2443, %v2771
        %2773 = vmatmul.bf16.gmra.mxu0 %v1842
        %v2774 = vpop.f32.mrf.mxu0
        %v2775 = vadd.f32 %v2446, %v2774
        %v2776 = vpop.f32.mrf.mxu0
        %v2777 = vadd.f32 %v2448, %v2776
        %2778 = vmatmul.bf16.gmra.mxu0 %v1845
        %v2779 = vpop.f32.mrf.mxu0
        %v2780 = vadd.f32 %v2451, %v2779
        %v2781 = vpop.f32.mrf.mxu0
        %v2782 = vadd.f32 %v2453, %v2781
        %2783 = vmatmul.bf16.gmra.mxu0 %v1848
        %v2784 = vpop.f32.mrf.mxu0
        %v2785 = vadd.f32 %v2456, %v2784
        %v2786 = vpop.f32.mrf.mxu0
        %v2787 = vadd.f32 %v2458, %v2786
        %2788 = vmatmul.bf16.gmra.mxu0 %v1851
        %v2789 = vpop.f32.mrf.mxu0
        %v2790 = vadd.f32 %v2461, %v2789
        %v2791 = vpop.f32.mrf.mxu0
        %v2792 = vadd.f32 %v2463, %v2791
        %2793 = vmatmul.bf16.gmra.mxu0 %v1854
        %v2794 = vpop.f32.mrf.mxu0
        %v2795 = vadd.f32 %v2466, %v2794
        %v2796 = vpop.f32.mrf.mxu0
        %v2797 = vadd.f32 %v2468, %v2796
        %2798 = vmatmul.bf16.gmra.mxu0 %v1857
        %v2799 = vpop.f32.mrf.mxu0
        %v2800 = vadd.f32 %v2471, %v2799
        %v2801 = vpop.f32.mrf.mxu0
        %v2802 = vadd.f32 %v2473, %v2801
        %2803 = vmatmul.bf16.gmra.mxu0 %v1860
        %v2804 = vpop.f32.mrf.mxu0
        %v2805 = vadd.f32 %v2476, %v2804
        %v2806 = vpop.f32.mrf.mxu0
        %v2807 = vadd.f32 %v2478, %v2806
        %2808 = vmatmul.bf16.gmra.mxu0 %v1863
        %v2809 = vpop.f32.mrf.mxu0
        %v2810 = vadd.f32 %v2481, %v2809
        %v2811 = vpop.f32.mrf.mxu0
        %v2812 = vadd.f32 %v2483, %v2811
        %2813 = vmatmul.bf16.gmra.mxu0 %v1866
        %v2814 = vpop.f32.mrf.mxu0
        %v2815 = vadd.f32 %v2486, %v2814
        %v2816 = vpop.f32.mrf.mxu0
        %v2817 = vadd.f32 %v2488, %v2816
        %2818 = vmatmul.bf16.gmra.mxu0 %v1869
        %v2819 = vpop.f32.mrf.mxu0
        %v2820 = vadd.f32 %v2491, %v2819
        %v2821 = vpop.f32.mrf.mxu0
        %v2822 = vadd.f32 %v2493, %v2821
        %2823 = vmatmul.bf16.gmra.mxu0 %v1872
        %v2824 = vpop.f32.mrf.mxu0
        %v2825 = vadd.f32 %v2496, %v2824
        %v2826 = vpop.f32.mrf.mxu0
        %v2827 = vadd.f32 %v2498, %v2826
        %2828 = vmatmul.bf16.gmra.mxu0 %v1875
        %v2829 = vpop.f32.mrf.mxu0
        %v2830 = vadd.f32 %v2501, %v2829
        %v2831 = vpop.f32.mrf.mxu0
        %v2832 = vadd.f32 %v2503, %v2831
        %2833 = vmatmul.bf16.gmra.mxu0 %v1878
        %v2834 = vpop.f32.mrf.mxu0
        %v2835 = vadd.f32 %v2506, %v2834
        %v2836 = vpop.f32.mrf.mxu0
        %v2837 = vadd.f32 %v2508, %v2836
        %2838 = vmatmul.bf16.gmra.mxu0 %v1881
        %v2839 = vpop.f32.mrf.mxu0
        %v2840 = vadd.f32 %v2511, %v2839
        %v2841 = vpop.f32.mrf.mxu0
        %v2842 = vadd.f32 %v2513, %v2841
        %2843 = vmatmul.bf16.gmra.mxu0 %v1884
        %v2844 = vpop.f32.mrf.mxu0
        %v2845 = vadd.f32 %v2516, %v2844
        %v2846 = vpop.f32.mrf.mxu0
        %v2847 = vadd.f32 %v2518, %v2846
        %2848 = vmatmul.bf16.gmra.mxu0 %v1887
        %v2849 = vpop.f32.mrf.mxu0
        %v2850 = vadd.f32 %v2521, %v2849
        %v2851 = vpop.f32.mrf.mxu0
        %v2852 = vadd.f32 %v2523, %v2851
        %2853 = vmatmul.bf16.gmra.mxu0 %v1890
        %v2854 = vpop.f32.mrf.mxu0
        %v2855 = vadd.f32 %v2526, %v2854
        %v2856 = vpop.f32.mrf.mxu0
        %v2857 = vadd.f32 %v2528, %v2856
        %2858 = vmatmul.bf16.gmra.mxu0 %v1893
        %v2859 = vpop.f32.mrf.mxu0
        %v2860 = vadd.f32 %v2531, %v2859
        %v2861 = vpop.f32.mrf.mxu0
        %v2862 = vadd.f32 %v2533, %v2861
        %2863 = vmatmul.bf16.gmra.mxu0 %v1896
        %v2864 = vpop.f32.mrf.mxu0
        %v2865 = vadd.f32 %v2536, %v2864
        %v2866 = vpop.f32.mrf.mxu0
        %v2867 = vadd.f32 %v2538, %v2866
        %2868 = vmatmul.bf16.gmra.mxu0 %v1899
        %v2869 = vpop.f32.mrf.mxu0
        %v2870 = vadd.f32 %v2541, %v2869
        %v2871 = vpop.f32.mrf.mxu0
        %v2872 = vadd.f32 %v2543, %v2871
        %2873 = vmatmul.bf16.gmra.mxu0 %v1902
        %v2874 = vpop.f32.mrf.mxu0
        %v2875 = vadd.f32 %v2546, %v2874
        %v2876 = vpop.f32.mrf.mxu0
        %v2877 = vadd.f32 %v2548, %v2876
        %2878 = vmatmul.bf16.gmra.mxu0 %v1905
        %v2879 = vpop.f32.mrf.mxu0
        %v2880 = vadd.f32 %v2551, %v2879
        %v2881 = vpop.f32.mrf.mxu0
        %v2882 = vadd.f32 %v2553, %v2881
        %2883 = vmatmul.bf16.gmra.mxu0 %v1908
        %v2884 = vpop.f32.mrf.mxu0
        %v2885 = vadd.f32 %v2556, %v2884
        %v2886 = vpop.f32.mrf.mxu0
        %v2887 = vadd.f32 %v2558, %v2886
        %2888 = vmatmul.bf16.gmra.mxu0 %v1911
        %v2889 = vpop.f32.mrf.mxu0
        %v2890 = vadd.f32 %v2561, %v2889
        %v2891 = vpop.f32.mrf.mxu0
        %v2892 = vadd.f32 %v2563, %v2891
        %2893 = vmatmul.bf16.gmra.mxu0 %v1914
        %v2894 = vpop.f32.mrf.mxu0
        %v2895 = vadd.f32 %v2566, %v2894
        %v2896 = vpop.f32.mrf.mxu0
        %v2897 = vadd.f32 %v2568, %v2896
        %2898 = vmatmul.bf16.gmra.mxu0 %v1917
        %v2899 = vpop.f32.mrf.mxu0
        %v2900 = vadd.f32 %v2571, %v2899
        %v2901 = vpop.f32.mrf.mxu0
        %v2902 = vadd.f32 %v2573, %v2901
        %2903 = vmatmul.bf16.gmra.mxu0 %v1920
        %v2904 = vpop.f32.mrf.mxu0
        %v2905 = vadd.f32 %v2576, %v2904
        %v2906 = vpop.f32.mrf.mxu0
        %v2907 = vadd.f32 %v2578, %v2906
        %2908 = vdwg.mxu0
        %v2909 = vpack.c.bf16 %v2590, %v2590
        %v2910 = vpack.c.bf16 %v2592, %v2592
        %v2911 = vpack.c.bf16 %v2595, %v2595
        %v2912 = vpack.c.bf16 %v2597, %v2597
        %v2913 = vpack.c.bf16 %v2600, %v2600
        %v2914 = vpack.c.bf16 %v2602, %v2602
        %v2915 = vpack.c.bf16 %v2605, %v2605
        %v2916 = vpack.c.bf16 %v2607, %v2607
        %v2917 = vpack.c.bf16 %v2610, %v2610
        %v2918 = vpack.c.bf16 %v2612, %v2612
        %v2919 = vpack.c.bf16 %v2615, %v2615
        %v2920 = vpack.c.bf16 %v2617, %v2617
        %v2921 = vpack.c.bf16 %v2620, %v2620
        %v2922 = vpack.c.bf16 %v2622, %v2622
        %v2923 = vpack.c.bf16 %v2625, %v2625
        %v2924 = vpack.c.bf16 %v2627, %v2627
        %v2925 = vpack.c.bf16 %v2630, %v2630
        %v2926 = vpack.c.bf16 %v2632, %v2632
        %v2927 = vpack.c.bf16 %v2635, %v2635
        %v2928 = vpack.c.bf16 %v2637, %v2637
        %v2929 = vpack.c.bf16 %v2640, %v2640
        %v2930 = vpack.c.bf16 %v2642, %v2642
        %v2931 = vpack.c.bf16 %v2645, %v2645
        %v2932 = vpack.c.bf16 %v2647, %v2647
        %v2933 = vpack.c.bf16 %v2650, %v2650
        %v2934 = vpack.c.bf16 %v2652, %v2652
        %v2935 = vpack.c.bf16 %v2655, %v2655
        %v2936 = vpack.c.bf16 %v2657, %v2657
        %v2937 = vpack.c.bf16 %v2660, %v2660
        %v2938 = vpack.c.bf16 %v2662, %v2662
        %v2939 = vpack.c.bf16 %v2665, %v2665
        %v2940 = vpack.c.bf16 %v2667, %v2667
        %v2941 = vpack.c.bf16 %v2670, %v2670
        %v2942 = vpack.c.bf16 %v2672, %v2672
        %v2943 = vpack.c.bf16 %v2675, %v2675
        %v2944 = vpack.c.bf16 %v2677, %v2677
        %v2945 = vpack.c.bf16 %v2680, %v2680
        %v2946 = vpack.c.bf16 %v2682, %v2682
        %v2947 = vpack.c.bf16 %v2685, %v2685
        %v2948 = vpack.c.bf16 %v2687, %v2687
        %v2949 = vpack.c.bf16 %v2690, %v2690
        %v2950 = vpack.c.bf16 %v2692, %v2692
        %v2951 = vpack.c.bf16 %v2695, %v2695
        %v2952 = vpack.c.bf16 %v2697, %v2697
        %v2953 = vpack.c.bf16 %v2700, %v2700
        %v2954 = vpack.c.bf16 %v2702, %v2702
        %v2955 = vpack.c.bf16 %v2705, %v2705
        %v2956 = vpack.c.bf16 %v2707, %v2707
        %v2957 = vpack.c.bf16 %v2710, %v2710
        %v2958 = vpack.c.bf16 %v2712, %v2712
        %v2959 = vpack.c.bf16 %v2715, %v2715
        %v2960 = vpack.c.bf16 %v2717, %v2717
        %v2961 = vpack.c.bf16 %v2720, %v2720
        %v2962 = vpack.c.bf16 %v2722, %v2722
        %v2963 = vpack.c.bf16 %v2725, %v2725
        %v2964 = vpack.c.bf16 %v2727, %v2727
        %v2965 = vpack.c.bf16 %v2730, %v2730
        %v2966 = vpack.c.bf16 %v2732, %v2732
        %v2967 = vpack.c.bf16 %v2735, %v2735
        %v2968 = vpack.c.bf16 %v2737, %v2737
        %v2969 = vpack.c.bf16 %v2740, %v2740
        %v2970 = vpack.c.bf16 %v2742, %v2742
        %v2971 = vpack.c.bf16 %v2745, %v2745
        %v2972 = vpack.c.bf16 %v2747, %v2747
        %v2973 = vpack.c.bf16 %v2750, %v2750
        %v2974 = vpack.c.bf16 %v2752, %v2752
        %v2975 = vpack.c.bf16 %v2755, %v2755
        %v2976 = vpack.c.bf16 %v2757, %v2757
        %v2977 = vpack.c.bf16 %v2760, %v2760
        %v2978 = vpack.c.bf16 %v2762, %v2762
        %v2979 = vpack.c.bf16 %v2765, %v2765
        %v2980 = vpack.c.bf16 %v2767, %v2767
        %v2981 = vpack.c.bf16 %v2770, %v2770
        %v2982 = vpack.c.bf16 %v2772, %v2772
        %v2983 = vpack.c.bf16 %v2775, %v2775
        %v2984 = vpack.c.bf16 %v2777, %v2777
        %v2985 = vpack.c.bf16 %v2780, %v2780
        %v2986 = vpack.c.bf16 %v2782, %v2782
        %v2987 = vpack.c.bf16 %v2785, %v2785
        %v2988 = vpack.c.bf16 %v2787, %v2787
        %v2989 = vpack.c.bf16 %v2790, %v2790
        %v2990 = vpack.c.bf16 %v2792, %v2792
        %v2991 = vpack.c.bf16 %v2795, %v2795
        %v2992 = vpack.c.bf16 %v2797, %v2797
        %v2993 = vpack.c.bf16 %v2800, %v2800
        %v2994 = vpack.c.bf16 %v2802, %v2802
        %v2995 = vpack.c.bf16 %v2805, %v2805
        %v2996 = vpack.c.bf16 %v2807, %v2807
        %v2997 = vpack.c.bf16 %v2810, %v2810
        %v2998 = vpack.c.bf16 %v2812, %v2812
        %v2999 = vpack.c.bf16 %v2815, %v2815
        %v3000 = vpack.c.bf16 %v2817, %v2817
        %v3001 = vpack.c.bf16 %v2820, %v2820
        %v3002 = vpack.c.bf16 %v2822, %v2822
        %v3003 = vpack.c.bf16 %v2825, %v2825
        %v3004 = vpack.c.bf16 %v2827, %v2827
        %v3005 = vpack.c.bf16 %v2830, %v2830
        %v3006 = vpack.c.bf16 %v2832, %v2832
        %v3007 = vpack.c.bf16 %v2835, %v2835
        %v3008 = vpack.c.bf16 %v2837, %v2837
        %v3009 = vpack.c.bf16 %v2840, %v2840
        %v3010 = vpack.c.bf16 %v2842, %v2842
        %v3011 = vpack.c.bf16 %v2845, %v2845
        %v3012 = vpack.c.bf16 %v2847, %v2847
        %v3013 = vpack.c.bf16 %v2850, %v2850
        %v3014 = vpack.c.bf16 %v2852, %v2852
        %v3015 = vpack.c.bf16 %v2855, %v2855
        %v3016 = vpack.c.bf16 %v2857, %v2857
        %v3017 = vpack.c.bf16 %v2860, %v2860
        %v3018 = vpack.c.bf16 %v2862, %v2862
        %v3019 = vpack.c.bf16 %v2865, %v2865
        %v3020 = vpack.c.bf16 %v2867, %v2867
        %v3021 = vpack.c.bf16 %v2870, %v2870
        %v3022 = vpack.c.bf16 %v2872, %v2872
        %v3023 = vpack.c.bf16 %v2875, %v2875
        %v3024 = vpack.c.bf16 %v2877, %v2877
        %v3025 = vpack.c.bf16 %v2880, %v2880
        %v3026 = vpack.c.bf16 %v2882, %v2882
        %v3027 = vpack.c.bf16 %v2885, %v2885
        %v3028 = vpack.c.bf16 %v2887, %v2887
        %v3029 = vpack.c.bf16 %v2890, %v2890
        %v3030 = vpack.c.bf16 %v2892, %v2892
        %v3031 = vpack.c.bf16 %v2895, %v2895
        %v3032 = vpack.c.bf16 %v2897, %v2897
        %v3033 = vpack.c.bf16 %v2900, %v2900
        %v3034 = vpack.c.bf16 %v2902, %v2902
        %v3035 = vpack.c.bf16 %v2905, %v2905
        %v3036 = vpack.c.bf16 %v2907, %v2907
        %vm3037 = vcmask 519168
        %3038 = vst.msk [vmem:[%s315] sm:$0xf] %vm3037, %v2909
        %3039 = vst.msk [vmem:[%s315 + $0x4] sm:$0xf] %vm3037, %v2910
        %3040 = vst.msk [vmem:[%s315 + $0x8] sm:$0xf] %vm3037, %v2911
        %3041 = vst.msk [vmem:[%s315 + $0xc] sm:$0xf] %vm3037, %v2912
        %3042 = vst.msk [vmem:[%s315 + $0x10] sm:$0xf] %vm3037, %v2913
        %3043 = vst.msk [vmem:[%s315 + $0x14] sm:$0xf] %vm3037, %v2914
        %3044 = vst.msk [vmem:[%s315 + $0x18] sm:$0xf] %vm3037, %v2915
        %3045 = vst.msk [vmem:[%s315 + $0x1c] sm:$0xf] %vm3037, %v2916
        %3046 = vst.msk [vmem:[%s315 + $0x20] sm:$0xf] %vm3037, %v2917
        %3047 = vst.msk [vmem:[%s315 + $0x24] sm:$0xf] %vm3037, %v2918
        %3048 = vst.msk [vmem:[%s315 + $0x28] sm:$0xf] %vm3037, %v2919
        %3049 = vst.msk [vmem:[%s315 + $0x2c] sm:$0xf] %vm3037, %v2920
        %3050 = vst.msk [vmem:[%s315 + $0x30] sm:$0xf] %vm3037, %v2921
        %3051 = vst.msk [vmem:[%s315 + $0x34] sm:$0xf] %vm3037, %v2922
        %3052 = vst.msk [vmem:[%s315 + $0x38] sm:$0xf] %vm3037, %v2923
        %3053 = vst.msk [vmem:[%s315 + $0x3c] sm:$0xf] %vm3037, %v2924
        %3054 = vst.msk [vmem:[%s315 + $0x40] sm:$0xf] %vm3037, %v2925
        %3055 = vst.msk [vmem:[%s315 + $0x44] sm:$0xf] %vm3037, %v2926
        %3056 = vst.msk [vmem:[%s315 + $0x48] sm:$0xf] %vm3037, %v2927
        %3057 = vst.msk [vmem:[%s315 + $0x4c] sm:$0xf] %vm3037, %v2928
        %3058 = vst.msk [vmem:[%s315 + $0x50] sm:$0xf] %vm3037, %v2929
        %3059 = vst.msk [vmem:[%s315 + $0x54] sm:$0xf] %vm3037, %v2930
        %3060 = vst.msk [vmem:[%s315 + $0x58] sm:$0xf] %vm3037, %v2931
        %3061 = vst.msk [vmem:[%s315 + $0x5c] sm:$0xf] %vm3037, %v2932
        %3062 = vst.msk [vmem:[%s315 + $0x60] sm:$0xf] %vm3037, %v2933
        %3063 = vst.msk [vmem:[%s315 + $0x64] sm:$0xf] %vm3037, %v2934
        %3064 = vst.msk [vmem:[%s315 + $0x68] sm:$0xf] %vm3037, %v2935
        %3065 = vst.msk [vmem:[%s315 + $0x6c] sm:$0xf] %vm3037, %v2936
        %3066 = vst.msk [vmem:[%s315 + $0x70] sm:$0xf] %vm3037, %v2937
        %3067 = vst.msk [vmem:[%s315 + $0x74] sm:$0xf] %vm3037, %v2938
        %3068 = vst.msk [vmem:[%s315 + $0x78] sm:$0xf] %vm3037, %v2939
        %3069 = vst.msk [vmem:[%s315 + $0x7c] sm:$0xf] %vm3037, %v2940
        %3070 = vst.msk [vmem:[%s315 + $0x80] sm:$0xf] %vm3037, %v2941
        %3071 = vst.msk [vmem:[%s315 + $0x84] sm:$0xf] %vm3037, %v2942
        %3072 = vst.msk [vmem:[%s315 + $0x88] sm:$0xf] %vm3037, %v2943
        %3073 = vst.msk [vmem:[%s315 + $0x8c] sm:$0xf] %vm3037, %v2944
        %3074 = vst.msk [vmem:[%s315 + $0x90] sm:$0xf] %vm3037, %v2945
        %3075 = vst.msk [vmem:[%s315 + $0x94] sm:$0xf] %vm3037, %v2946
        %3076 = vst.msk [vmem:[%s315 + $0x98] sm:$0xf] %vm3037, %v2947
        %3077 = vst.msk [vmem:[%s315 + $0x9c] sm:$0xf] %vm3037, %v2948
        %3078 = vst.msk [vmem:[%s315 + $0xa0] sm:$0xf] %vm3037, %v2949
        %3079 = vst.msk [vmem:[%s315 + $0xa4] sm:$0xf] %vm3037, %v2950
        %3080 = vst.msk [vmem:[%s315 + $0xa8] sm:$0xf] %vm3037, %v2951
        %3081 = vst.msk [vmem:[%s315 + $0xac] sm:$0xf] %vm3037, %v2952
        %3082 = vst.msk [vmem:[%s315 + $0xb0] sm:$0xf] %vm3037, %v2953
        %3083 = vst.msk [vmem:[%s315 + $0xb4] sm:$0xf] %vm3037, %v2954
        %3084 = vst.msk [vmem:[%s315 + $0xb8] sm:$0xf] %vm3037, %v2955
        %3085 = vst.msk [vmem:[%s315 + $0xbc] sm:$0xf] %vm3037, %v2956
        %3086 = vst.msk [vmem:[%s315 + $0xc0] sm:$0xf] %vm3037, %v2957
        %3087 = vst.msk [vmem:[%s315 + $0xc4] sm:$0xf] %vm3037, %v2958
        %3088 = vst.msk [vmem:[%s315 + $0xc8] sm:$0xf] %vm3037, %v2959
        %3089 = vst.msk [vmem:[%s315 + $0xcc] sm:$0xf] %vm3037, %v2960
        %3090 = vst.msk [vmem:[%s315 + $0xd0] sm:$0xf] %vm3037, %v2961
        %3091 = vst.msk [vmem:[%s315 + $0xd4] sm:$0xf] %vm3037, %v2962
        %3092 = vst.msk [vmem:[%s315 + $0xd8] sm:$0xf] %vm3037, %v2963
        %3093 = vst.msk [vmem:[%s315 + $0xdc] sm:$0xf] %vm3037, %v2964
        %3094 = vst.msk [vmem:[%s315 + $0xe0] sm:$0xf] %vm3037, %v2965
        %3095 = vst.msk [vmem:[%s315 + $0xe4] sm:$0xf] %vm3037, %v2966
        %3096 = vst.msk [vmem:[%s315 + $0xe8] sm:$0xf] %vm3037, %v2967
        %3097 = vst.msk [vmem:[%s315 + $0xec] sm:$0xf] %vm3037, %v2968
        %3098 = vst.msk [vmem:[%s315 + $0xf0] sm:$0xf] %vm3037, %v2969
        %3099 = vst.msk [vmem:[%s315 + $0xf4] sm:$0xf] %vm3037, %v2970
        %3100 = vst.msk [vmem:[%s315 + $0xf8] sm:$0xf] %vm3037, %v2971
        %3101 = vst.msk [vmem:[%s315 + $0xfc] sm:$0xf] %vm3037, %v2972
        %3102 = vst.msk [vmem:[%s315 + $0x100] sm:$0xf] %vm3037, %v2973
        %3103 = vst.msk [vmem:[%s315 + $0x104] sm:$0xf] %vm3037, %v2974
        %3104 = vst.msk [vmem:[%s315 + $0x108] sm:$0xf] %vm3037, %v2975
        %3105 = vst.msk [vmem:[%s315 + $0x10c] sm:$0xf] %vm3037, %v2976
        %3106 = vst.msk [vmem:[%s315 + $0x110] sm:$0xf] %vm3037, %v2977
        %3107 = vst.msk [vmem:[%s315 + $0x114] sm:$0xf] %vm3037, %v2978
        %3108 = vst.msk [vmem:[%s315 + $0x118] sm:$0xf] %vm3037, %v2979
        %3109 = vst.msk [vmem:[%s315 + $0x11c] sm:$0xf] %vm3037, %v2980
        %3110 = vst.msk [vmem:[%s315 + $0x120] sm:$0xf] %vm3037, %v2981
        %3111 = vst.msk [vmem:[%s315 + $0x124] sm:$0xf] %vm3037, %v2982
        %3112 = vst.msk [vmem:[%s315 + $0x128] sm:$0xf] %vm3037, %v2983
        %3113 = vst.msk [vmem:[%s315 + $0x12c] sm:$0xf] %vm3037, %v2984
        %3114 = vst.msk [vmem:[%s315 + $0x130] sm:$0xf] %vm3037, %v2985
        %3115 = vst.msk [vmem:[%s315 + $0x134] sm:$0xf] %vm3037, %v2986
        %3116 = vst.msk [vmem:[%s315 + $0x138] sm:$0xf] %vm3037, %v2987
        %3117 = vst.msk [vmem:[%s315 + $0x13c] sm:$0xf] %vm3037, %v2988
        %3118 = vst.msk [vmem:[%s315 + $0x140] sm:$0xf] %vm3037, %v2989
        %3119 = vst.msk [vmem:[%s315 + $0x144] sm:$0xf] %vm3037, %v2990
        %3120 = vst.msk [vmem:[%s315 + $0x148] sm:$0xf] %vm3037, %v2991
        %3121 = vst.msk [vmem:[%s315 + $0x14c] sm:$0xf] %vm3037, %v2992
        %3122 = vst.msk [vmem:[%s315 + $0x150] sm:$0xf] %vm3037, %v2993
        %3123 = vst.msk [vmem:[%s315 + $0x154] sm:$0xf] %vm3037, %v2994
        %3124 = vst.msk [vmem:[%s315 + $0x158] sm:$0xf] %vm3037, %v2995
        %3125 = vst.msk [vmem:[%s315 + $0x15c] sm:$0xf] %vm3037, %v2996
        %3126 = vst.msk [vmem:[%s315 + $0x160] sm:$0xf] %vm3037, %v2997
        %3127 = vst.msk [vmem:[%s315 + $0x164] sm:$0xf] %vm3037, %v2998
        %3128 = vst.msk [vmem:[%s315 + $0x168] sm:$0xf] %vm3037, %v2999
        %3129 = vst.msk [vmem:[%s315 + $0x16c] sm:$0xf] %vm3037, %v3000
        %3130 = vst.msk [vmem:[%s315 + $0x170] sm:$0xf] %vm3037, %v3001
        %3131 = vst.msk [vmem:[%s315 + $0x174] sm:$0xf] %vm3037, %v3002
        %3132 = vst.msk [vmem:[%s315 + $0x178] sm:$0xf] %vm3037, %v3003
        %3133 = vst.msk [vmem:[%s315 + $0x17c] sm:$0xf] %vm3037, %v3004
        %3134 = vst.msk [vmem:[%s315 + $0x180] sm:$0xf] %vm3037, %v3005
        %3135 = vst.msk [vmem:[%s315 + $0x184] sm:$0xf] %vm3037, %v3006
        %3136 = vst.msk [vmem:[%s315 + $0x188] sm:$0xf] %vm3037, %v3007
        %3137 = vst.msk [vmem:[%s315 + $0x18c] sm:$0xf] %vm3037, %v3008
        %3138 = vst.msk [vmem:[%s315 + $0x190] sm:$0xf] %vm3037, %v3009
        %3139 = vst.msk [vmem:[%s315 + $0x194] sm:$0xf] %vm3037, %v3010
        %3140 = vst.msk [vmem:[%s315 + $0x198] sm:$0xf] %vm3037, %v3011
        %3141 = vst.msk [vmem:[%s315 + $0x19c] sm:$0xf] %vm3037, %v3012
        %3142 = vst.msk [vmem:[%s315 + $0x1a0] sm:$0xf] %vm3037, %v3013
        %3143 = vst.msk [vmem:[%s315 + $0x1a4] sm:$0xf] %vm3037, %v3014
        %3144 = vst.msk [vmem:[%s315 + $0x1a8] sm:$0xf] %vm3037, %v3015
        %3145 = vst.msk [vmem:[%s315 + $0x1ac] sm:$0xf] %vm3037, %v3016
        %3146 = vst.msk [vmem:[%s315 + $0x1b0] sm:$0xf] %vm3037, %v3017
        %3147 = vst.msk [vmem:[%s315 + $0x1b4] sm:$0xf] %vm3037, %v3018
        %3148 = vst.msk [vmem:[%s315 + $0x1b8] sm:$0xf] %vm3037, %v3019
        %3149 = vst.msk [vmem:[%s315 + $0x1bc] sm:$0xf] %vm3037, %v3020
        %3150 = vst.msk [vmem:[%s315 + $0x1c0] sm:$0xf] %vm3037, %v3021
        %3151 = vst.msk [vmem:[%s315 + $0x1c4] sm:$0xf] %vm3037, %v3022
        %3152 = vst.msk [vmem:[%s315 + $0x1c8] sm:$0xf] %vm3037, %v3023
        %3153 = vst.msk [vmem:[%s315 + $0x1cc] sm:$0xf] %vm3037, %v3024
        %3154 = vst.msk [vmem:[%s315 + $0x1d0] sm:$0xf] %vm3037, %v3025
        %3155 = vst.msk [vmem:[%s315 + $0x1d4] sm:$0xf] %vm3037, %v3026
        %3156 = vst.msk [vmem:[%s315 + $0x1d8] sm:$0xf] %vm3037, %v3027
        %3157 = vst.msk [vmem:[%s315 + $0x1dc] sm:$0xf] %vm3037, %v3028
        %3158 = vst.msk [vmem:[%s315 + $0x1e0] sm:$0xf] %vm3037, %v3029
        %3159 = vst.msk [vmem:[%s315 + $0x1e4] sm:$0xf] %vm3037, %v3030
        %3160 = vst.msk [vmem:[%s315 + $0x1e8] sm:$0xf] %vm3037, %v3031
        %3161 = vst.msk [vmem:[%s315 + $0x1ec] sm:$0xf] %vm3037, %v3032
        %3162 = vst.msk [vmem:[%s315 + $0x1f0] sm:$0xf] %vm3037, %v3033
        %3163 = vst.msk [vmem:[%s315 + $0x1f4] sm:$0xf] %vm3037, %v3034
        %3164 = vst.msk [vmem:[%s315 + $0x1f8] sm:$0xf] %vm3037, %v3035
        %3165 = vst.msk [vmem:[%s315 + $0x1fc] sm:$0xf] %vm3037, %v3036
        %v3166 = vld [vmem:[%s3] sm:$0xff]
        %v3167 = vld [vmem:[%s3 + $0x8] sm:$0xff]
        %v3168 = vld [vmem:[%s3 + $0x10] sm:$0xff]
        %v3169 = vld [vmem:[%s3 + $0x18] sm:$0xff]
        %v3170 = vld [vmem:[%s3 + $0x20] sm:$0xff]
        %v3171 = vld [vmem:[%s3 + $0x28] sm:$0xff]
        %v3172 = vld [vmem:[%s3 + $0x30] sm:$0xff]
        %v3173 = vld [vmem:[%s3 + $0x38] sm:$0xff]
        %v3174 = vld [vmem:[%s4] sm:$0x1]
        %v3176 = vperm.slane %v3174, 0
        %v3179 = vsel %vm1729, %v2590, 0
        %v3182 = vsel %vm1729, %v2592, 0
        %v3185 = vsel %vm1729, %v2595, 0
        %v3188 = vsel %vm1729, %v2597, 0
        %v3191 = vsel %vm1729, %v2600, 0
        %v3194 = vsel %vm1729, %v2602, 0
        %v3197 = vsel %vm1729, %v2605, 0
        %v3200 = vsel %vm1729, %v2607, 0
        %v3203 = vsel %vm1729, %v2610, 0
        %v3206 = vsel %vm1729, %v2612, 0
        %v3209 = vsel %vm1729, %v2615, 0
        %v3212 = vsel %vm1729, %v2617, 0
        %v3215 = vsel %vm1729, %v2620, 0
        %v3218 = vsel %vm1729, %v2622, 0
        %v3221 = vsel %vm1729, %v2625, 0
        %v3224 = vsel %vm1729, %v2627, 0
        %v3227 = vsel %vm1729, %v2630, 0
        %v3230 = vsel %vm1729, %v2632, 0
        %v3233 = vsel %vm1729, %v2635, 0
        %v3236 = vsel %vm1729, %v2637, 0
        %v3239 = vsel %vm1729, %v2640, 0
        %v3242 = vsel %vm1729, %v2642, 0
        %v3245 = vsel %vm1729, %v2645, 0
        %v3248 = vsel %vm1729, %v2647, 0
        %v3251 = vsel %vm1729, %v2650, 0
        %v3254 = vsel %vm1729, %v2652, 0
        %v3257 = vsel %vm1729, %v2655, 0
        %v3260 = vsel %vm1729, %v2657, 0
        %v3263 = vsel %vm1729, %v2660, 0
        %v3266 = vsel %vm1729, %v2662, 0
        %v3269 = vsel %vm1729, %v2665, 0
        %v3272 = vsel %vm1729, %v2667, 0
        %v3275 = vsel %vm1729, %v2670, 0
        %v3278 = vsel %vm1729, %v2672, 0
        %v3281 = vsel %vm1729, %v2675, 0
        %v3284 = vsel %vm1729, %v2677, 0
        %v3287 = vsel %vm1729, %v2680, 0
        %v3290 = vsel %vm1729, %v2682, 0
        %v3293 = vsel %vm1729, %v2685, 0
        %v3296 = vsel %vm1729, %v2687, 0
        %v3299 = vsel %vm1729, %v2690, 0
        %v3302 = vsel %vm1729, %v2692, 0
        %v3305 = vsel %vm1729, %v2695, 0
        %v3308 = vsel %vm1729, %v2697, 0
        %v3311 = vsel %vm1729, %v2700, 0
        %v3314 = vsel %vm1729, %v2702, 0
        %v3317 = vsel %vm1729, %v2705, 0
        %v3320 = vsel %vm1729, %v2707, 0
        %v3323 = vsel %vm1729, %v2710, 0
        %v3326 = vsel %vm1729, %v2712, 0
        %v3329 = vsel %vm1729, %v2715, 0
        %v3332 = vsel %vm1729, %v2717, 0
        %v3335 = vsel %vm1729, %v2720, 0
        %v3338 = vsel %vm1729, %v2722, 0
        %v3341 = vsel %vm1729, %v2725, 0
        %v3344 = vsel %vm1729, %v2727, 0
        %v3347 = vsel %vm1729, %v2730, 0
        %v3350 = vsel %vm1729, %v2732, 0
        %v3353 = vsel %vm1729, %v2735, 0
        %v3356 = vsel %vm1729, %v2737, 0
        %v3359 = vsel %vm1729, %v2740, 0
        %v3362 = vsel %vm1729, %v2742, 0
        %v3365 = vsel %vm1729, %v2745, 0
        %v3368 = vsel %vm1729, %v2747, 0
        %v3371 = vsel %vm1729, %v2750, 0
        %v3374 = vsel %vm1729, %v2752, 0
        %v3377 = vsel %vm1729, %v2755, 0
        %v3380 = vsel %vm1729, %v2757, 0
        %v3383 = vsel %vm1729, %v2760, 0
        %v3386 = vsel %vm1729, %v2762, 0
        %v3389 = vsel %vm1729, %v2765, 0
        %v3392 = vsel %vm1729, %v2767, 0
        %v3395 = vsel %vm1729, %v2770, 0
        %v3398 = vsel %vm1729, %v2772, 0
        %v3401 = vsel %vm1729, %v2775, 0
        %v3404 = vsel %vm1729, %v2777, 0
        %v3407 = vsel %vm1729, %v2780, 0
        %v3410 = vsel %vm1729, %v2782, 0
        %v3413 = vsel %vm1729, %v2785, 0
        %v3416 = vsel %vm1729, %v2787, 0
        %v3419 = vsel %vm1729, %v2790, 0
        %v3422 = vsel %vm1729, %v2792, 0
        %v3425 = vsel %vm1729, %v2795, 0
        %v3428 = vsel %vm1729, %v2797, 0
        %v3431 = vsel %vm1729, %v2800, 0
        %v3434 = vsel %vm1729, %v2802, 0
        %v3437 = vsel %vm1729, %v2805, 0
        %v3440 = vsel %vm1729, %v2807, 0
        %v3443 = vsel %vm1729, %v2810, 0
        %v3446 = vsel %vm1729, %v2812, 0
        %v3449 = vsel %vm1729, %v2815, 0
        %v3452 = vsel %vm1729, %v2817, 0
        %v3455 = vsel %vm1729, %v2820, 0
        %v3458 = vsel %vm1729, %v2822, 0
        %v3461 = vsel %vm1729, %v2825, 0
        %v3464 = vsel %vm1729, %v2827, 0
        %v3467 = vsel %vm1729, %v2830, 0
        %v3470 = vsel %vm1729, %v2832, 0
        %v3473 = vsel %vm1729, %v2835, 0
        %v3476 = vsel %vm1729, %v2837, 0
        %v3479 = vsel %vm1729, %v2840, 0
        %v3482 = vsel %vm1729, %v2842, 0
        %v3485 = vsel %vm1729, %v2845, 0
        %v3488 = vsel %vm1729, %v2847, 0
        %v3491 = vsel %vm1729, %v2850, 0
        %v3494 = vsel %vm1729, %v2852, 0
        %v3497 = vsel %vm1729, %v2855, 0
        %v3500 = vsel %vm1729, %v2857, 0
        %v3503 = vsel %vm1729, %v2860, 0
        %v3506 = vsel %vm1729, %v2862, 0
        %v3509 = vsel %vm1729, %v2865, 0
        %v3512 = vsel %vm1729, %v2867, 0
        %v3515 = vsel %vm1729, %v2870, 0
        %v3518 = vsel %vm1729, %v2872, 0
        %v3521 = vsel %vm1729, %v2875, 0
        %v3524 = vsel %vm1729, %v2877, 0
        %v3527 = vsel %vm1729, %v2880, 0
        %v3530 = vsel %vm1729, %v2882, 0
        %v3533 = vsel %vm1729, %v2885, 0
        %v3536 = vsel %vm1729, %v2887, 0
        %v3539 = vsel %vm1729, %v2890, 0
        %v3542 = vsel %vm1729, %v2892, 0
        %v3545 = vsel %vm1729, %v2895, 0
        %v3548 = vsel %vm1729, %v2897, 0
        %v3551 = vsel %vm1729, %v2900, 0
        %v3554 = vsel %vm1729, %v2902, 0
        %v3557 = vsel %vm1729, %v2905, 0
        %v3560 = vsel %vm1729, %v2907, 0
        %3562 = vmatpush.msra.mxu0 0.0
        %3563 = vmatpush.msra.mxu0 0.0
        %3564 = vmatpush.msra.mxu0 0.0
        %3565 = vmatpush.msra.mxu0 0.0
        %3566 = vmatpush.msra.mxu0 0.0
        %3567 = vmatpush.msra.mxu0 0.0
        %3568 = vmatpush.msra.mxu0 0.0
        %3569 = vmatpush.msra.mxu0 0.0
        %3570 = vmatpush.msra.mxu0 %v3173
        %3571 = vmatpush.msra.mxu0 %v3172
        %3572 = vmatpush.msra.mxu0 %v3171
        %3573 = vmatpush.msra.mxu0 %v3170
        %3574 = vmatpush.msra.mxu0 %v3169
        %3575 = vmatpush.msra.mxu0 %v3168
        %3576 = vmatpush.msra.mxu0 %v3167
        %3577 = vmatpush.msra.mxu0 %v3166
        %3578 = vmatmul.f32.gmra.mxu0 %v3179
        %v3579 = vpop.f32.mrf.mxu0
        %v3580 = vadd.f32 %v3176, %v3579
        %3581 = vmatmul.f32.gmra.mxu0 %v3182
        %v3582 = vpop.f32.mrf.mxu0
        %v3583 = vadd.f32 %v3176, %v3582
        %3584 = vmatmul.f32.gmra.mxu0 %v3185
        %v3585 = vpop.f32.mrf.mxu0
        %v3586 = vadd.f32 %v3176, %v3585
        %3587 = vmatmul.f32.gmra.mxu0 %v3188
        %v3588 = vpop.f32.mrf.mxu0
        %v3589 = vadd.f32 %v3176, %v3588
        %3590 = vmatmul.f32.gmra.mxu0 %v3191
        %v3591 = vpop.f32.mrf.mxu0
        %v3592 = vadd.f32 %v3176, %v3591
        %3593 = vmatmul.f32.gmra.mxu0 %v3194
        %v3594 = vpop.f32.mrf.mxu0
        %v3595 = vadd.f32 %v3176, %v3594
        %3596 = vmatmul.f32.gmra.mxu0 %v3197
        %v3597 = vpop.f32.mrf.mxu0
        %v3598 = vadd.f32 %v3176, %v3597
        %3599 = vmatmul.f32.gmra.mxu0 %v3200
        %v3600 = vpop.f32.mrf.mxu0
        %v3601 = vadd.f32 %v3176, %v3600
        %3602 = vmatmul.f32.gmra.mxu0 %v3203
        %v3603 = vpop.f32.mrf.mxu0
        %v3604 = vadd.f32 %v3176, %v3603
        %3605 = vmatmul.f32.gmra.mxu0 %v3206
        %v3606 = vpop.f32.mrf.mxu0
        %v3607 = vadd.f32 %v3176, %v3606
        %3608 = vmatmul.f32.gmra.mxu0 %v3209
        %v3609 = vpop.f32.mrf.mxu0
        %v3610 = vadd.f32 %v3176, %v3609
        %3611 = vmatmul.f32.gmra.mxu0 %v3212
        %v3612 = vpop.f32.mrf.mxu0
        %v3613 = vadd.f32 %v3176, %v3612
        %3614 = vmatmul.f32.gmra.mxu0 %v3215
        %v3615 = vpop.f32.mrf.mxu0
        %v3616 = vadd.f32 %v3176, %v3615
        %3617 = vmatmul.f32.gmra.mxu0 %v3218
        %v3618 = vpop.f32.mrf.mxu0
        %v3619 = vadd.f32 %v3176, %v3618
        %3620 = vmatmul.f32.gmra.mxu0 %v3221
        %v3621 = vpop.f32.mrf.mxu0
        %v3622 = vadd.f32 %v3176, %v3621
        %3623 = vmatmul.f32.gmra.mxu0 %v3224
        %v3624 = vpop.f32.mrf.mxu0
        %v3625 = vadd.f32 %v3176, %v3624
        %3626 = vmatmul.f32.gmra.mxu0 %v3227
        %v3627 = vpop.f32.mrf.mxu0
        %v3628 = vadd.f32 %v3176, %v3627
        %3629 = vmatmul.f32.gmra.mxu0 %v3230
        %v3630 = vpop.f32.mrf.mxu0
        %v3631 = vadd.f32 %v3176, %v3630
        %3632 = vmatmul.f32.gmra.mxu0 %v3233
        %v3633 = vpop.f32.mrf.mxu0
        %v3634 = vadd.f32 %v3176, %v3633
        %3635 = vmatmul.f32.gmra.mxu0 %v3236
        %v3636 = vpop.f32.mrf.mxu0
        %v3637 = vadd.f32 %v3176, %v3636
        %3638 = vmatmul.f32.gmra.mxu0 %v3239
        %v3639 = vpop.f32.mrf.mxu0
        %v3640 = vadd.f32 %v3176, %v3639
        %3641 = vmatmul.f32.gmra.mxu0 %v3242
        %v3642 = vpop.f32.mrf.mxu0
        %v3643 = vadd.f32 %v3176, %v3642
        %3644 = vmatmul.f32.gmra.mxu0 %v3245
        %v3645 = vpop.f32.mrf.mxu0
        %v3646 = vadd.f32 %v3176, %v3645
        %3647 = vmatmul.f32.gmra.mxu0 %v3248
        %v3648 = vpop.f32.mrf.mxu0
        %v3649 = vadd.f32 %v3176, %v3648
        %3650 = vmatmul.f32.gmra.mxu0 %v3251
        %v3651 = vpop.f32.mrf.mxu0
        %v3652 = vadd.f32 %v3176, %v3651
        %3653 = vmatmul.f32.gmra.mxu0 %v3254
        %v3654 = vpop.f32.mrf.mxu0
        %v3655 = vadd.f32 %v3176, %v3654
        %3656 = vmatmul.f32.gmra.mxu0 %v3257
        %v3657 = vpop.f32.mrf.mxu0
        %v3658 = vadd.f32 %v3176, %v3657
        %3659 = vmatmul.f32.gmra.mxu0 %v3260
        %v3660 = vpop.f32.mrf.mxu0
        %v3661 = vadd.f32 %v3176, %v3660
        %3662 = vmatmul.f32.gmra.mxu0 %v3263
        %v3663 = vpop.f32.mrf.mxu0
        %v3664 = vadd.f32 %v3176, %v3663
        %3665 = vmatmul.f32.gmra.mxu0 %v3266
        %v3666 = vpop.f32.mrf.mxu0
        %v3667 = vadd.f32 %v3176, %v3666
        %3668 = vmatmul.f32.gmra.mxu0 %v3269
        %v3669 = vpop.f32.mrf.mxu0
        %v3670 = vadd.f32 %v3176, %v3669
        %3671 = vmatmul.f32.gmra.mxu0 %v3272
        %v3672 = vpop.f32.mrf.mxu0
        %v3673 = vadd.f32 %v3176, %v3672
        %3674 = vmatmul.f32.gmra.mxu0 %v3275
        %v3675 = vpop.f32.mrf.mxu0
        %v3676 = vadd.f32 %v3176, %v3675
        %3677 = vmatmul.f32.gmra.mxu0 %v3278
        %v3678 = vpop.f32.mrf.mxu0
        %v3679 = vadd.f32 %v3176, %v3678
        %3680 = vmatmul.f32.gmra.mxu0 %v3281
        %v3681 = vpop.f32.mrf.mxu0
        %v3682 = vadd.f32 %v3176, %v3681
        %3683 = vmatmul.f32.gmra.mxu0 %v3284
        %v3684 = vpop.f32.mrf.mxu0
        %v3685 = vadd.f32 %v3176, %v3684
        %3686 = vmatmul.f32.gmra.mxu0 %v3287
        %v3687 = vpop.f32.mrf.mxu0
        %v3688 = vadd.f32 %v3176, %v3687
        %3689 = vmatmul.f32.gmra.mxu0 %v3290
        %v3690 = vpop.f32.mrf.mxu0
        %v3691 = vadd.f32 %v3176, %v3690
        %3692 = vmatmul.f32.gmra.mxu0 %v3293
        %v3693 = vpop.f32.mrf.mxu0
        %v3694 = vadd.f32 %v3176, %v3693
        %3695 = vmatmul.f32.gmra.mxu0 %v3296
        %v3696 = vpop.f32.mrf.mxu0
        %v3697 = vadd.f32 %v3176, %v3696
        %3698 = vmatmul.f32.gmra.mxu0 %v3299
        %v3699 = vpop.f32.mrf.mxu0
        %v3700 = vadd.f32 %v3176, %v3699
        %3701 = vmatmul.f32.gmra.mxu0 %v3302
        %v3702 = vpop.f32.mrf.mxu0
        %v3703 = vadd.f32 %v3176, %v3702
        %3704 = vmatmul.f32.gmra.mxu0 %v3305
        %v3705 = vpop.f32.mrf.mxu0
        %v3706 = vadd.f32 %v3176, %v3705
        %3707 = vmatmul.f32.gmra.mxu0 %v3308
        %v3708 = vpop.f32.mrf.mxu0
        %v3709 = vadd.f32 %v3176, %v3708
        %3710 = vmatmul.f32.gmra.mxu0 %v3311
        %v3711 = vpop.f32.mrf.mxu0
        %v3712 = vadd.f32 %v3176, %v3711
        %3713 = vmatmul.f32.gmra.mxu0 %v3314
        %v3714 = vpop.f32.mrf.mxu0
        %v3715 = vadd.f32 %v3176, %v3714
        %3716 = vmatmul.f32.gmra.mxu0 %v3317
        %v3717 = vpop.f32.mrf.mxu0
        %v3718 = vadd.f32 %v3176, %v3717
        %3719 = vmatmul.f32.gmra.mxu0 %v3320
        %v3720 = vpop.f32.mrf.mxu0
        %v3721 = vadd.f32 %v3176, %v3720
        %3722 = vmatmul.f32.gmra.mxu0 %v3323
        %v3723 = vpop.f32.mrf.mxu0
        %v3724 = vadd.f32 %v3176, %v3723
        %3725 = vmatmul.f32.gmra.mxu0 %v3326
        %v3726 = vpop.f32.mrf.mxu0
        %v3727 = vadd.f32 %v3176, %v3726
        %3728 = vmatmul.f32.gmra.mxu0 %v3329
        %v3729 = vpop.f32.mrf.mxu0
        %v3730 = vadd.f32 %v3176, %v3729
        %3731 = vmatmul.f32.gmra.mxu0 %v3332
        %v3732 = vpop.f32.mrf.mxu0
        %v3733 = vadd.f32 %v3176, %v3732
        %3734 = vmatmul.f32.gmra.mxu0 %v3335
        %v3735 = vpop.f32.mrf.mxu0
        %v3736 = vadd.f32 %v3176, %v3735
        %3737 = vmatmul.f32.gmra.mxu0 %v3338
        %v3738 = vpop.f32.mrf.mxu0
        %v3739 = vadd.f32 %v3176, %v3738
        %3740 = vmatmul.f32.gmra.mxu0 %v3341
        %v3741 = vpop.f32.mrf.mxu0
        %v3742 = vadd.f32 %v3176, %v3741
        %3743 = vmatmul.f32.gmra.mxu0 %v3344
        %v3744 = vpop.f32.mrf.mxu0
        %v3745 = vadd.f32 %v3176, %v3744
        %3746 = vmatmul.f32.gmra.mxu0 %v3347
        %v3747 = vpop.f32.mrf.mxu0
        %v3748 = vadd.f32 %v3176, %v3747
        %3749 = vmatmul.f32.gmra.mxu0 %v3350
        %v3750 = vpop.f32.mrf.mxu0
        %v3751 = vadd.f32 %v3176, %v3750
        %3752 = vmatmul.f32.gmra.mxu0 %v3353
        %v3753 = vpop.f32.mrf.mxu0
        %v3754 = vadd.f32 %v3176, %v3753
        %3755 = vmatmul.f32.gmra.mxu0 %v3356
        %v3756 = vpop.f32.mrf.mxu0
        %v3757 = vadd.f32 %v3176, %v3756
        %3758 = vmatmul.f32.gmra.mxu0 %v3359
        %v3759 = vpop.f32.mrf.mxu0
        %v3760 = vadd.f32 %v3176, %v3759
        %3761 = vmatmul.f32.gmra.mxu0 %v3362
        %v3762 = vpop.f32.mrf.mxu0
        %v3763 = vadd.f32 %v3176, %v3762
        %3764 = vmatmul.f32.gmra.mxu0 %v3365
        %v3765 = vpop.f32.mrf.mxu0
        %v3766 = vadd.f32 %v3176, %v3765
        %3767 = vmatmul.f32.gmra.mxu0 %v3368
        %v3768 = vpop.f32.mrf.mxu0
        %v3769 = vadd.f32 %v3176, %v3768
        %3770 = vmatmul.f32.gmra.mxu0 %v3371
        %v3771 = vpop.f32.mrf.mxu0
        %v3772 = vadd.f32 %v3176, %v3771
        %3773 = vmatmul.f32.gmra.mxu0 %v3374
        %v3774 = vpop.f32.mrf.mxu0
        %v3775 = vadd.f32 %v3176, %v3774
        %3776 = vmatmul.f32.gmra.mxu0 %v3377
        %v3777 = vpop.f32.mrf.mxu0
        %v3778 = vadd.f32 %v3176, %v3777
        %3779 = vmatmul.f32.gmra.mxu0 %v3380
        %v3780 = vpop.f32.mrf.mxu0
        %v3781 = vadd.f32 %v3176, %v3780
        %3782 = vmatmul.f32.gmra.mxu0 %v3383
        %v3783 = vpop.f32.mrf.mxu0
        %v3784 = vadd.f32 %v3176, %v3783
        %3785 = vmatmul.f32.gmra.mxu0 %v3386
        %v3786 = vpop.f32.mrf.mxu0
        %v3787 = vadd.f32 %v3176, %v3786
        %3788 = vmatmul.f32.gmra.mxu0 %v3389
        %v3789 = vpop.f32.mrf.mxu0
        %v3790 = vadd.f32 %v3176, %v3789
        %3791 = vmatmul.f32.gmra.mxu0 %v3392
        %v3792 = vpop.f32.mrf.mxu0
        %v3793 = vadd.f32 %v3176, %v3792
        %3794 = vmatmul.f32.gmra.mxu0 %v3395
        %v3795 = vpop.f32.mrf.mxu0
        %v3796 = vadd.f32 %v3176, %v3795
        %3797 = vmatmul.f32.gmra.mxu0 %v3398
        %v3798 = vpop.f32.mrf.mxu0
        %v3799 = vadd.f32 %v3176, %v3798
        %3800 = vmatmul.f32.gmra.mxu0 %v3401
        %v3801 = vpop.f32.mrf.mxu0
        %v3802 = vadd.f32 %v3176, %v3801
        %3803 = vmatmul.f32.gmra.mxu0 %v3404
        %v3804 = vpop.f32.mrf.mxu0
        %v3805 = vadd.f32 %v3176, %v3804
        %3806 = vmatmul.f32.gmra.mxu0 %v3407
        %v3807 = vpop.f32.mrf.mxu0
        %v3808 = vadd.f32 %v3176, %v3807
        %3809 = vmatmul.f32.gmra.mxu0 %v3410
        %v3810 = vpop.f32.mrf.mxu0
        %v3811 = vadd.f32 %v3176, %v3810
        %3812 = vmatmul.f32.gmra.mxu0 %v3413
        %v3813 = vpop.f32.mrf.mxu0
        %v3814 = vadd.f32 %v3176, %v3813
        %3815 = vmatmul.f32.gmra.mxu0 %v3416
        %v3816 = vpop.f32.mrf.mxu0
        %v3817 = vadd.f32 %v3176, %v3816
        %3818 = vmatmul.f32.gmra.mxu0 %v3419
        %v3819 = vpop.f32.mrf.mxu0
        %v3820 = vadd.f32 %v3176, %v3819
        %3821 = vmatmul.f32.gmra.mxu0 %v3422
        %v3822 = vpop.f32.mrf.mxu0
        %v3823 = vadd.f32 %v3176, %v3822
        %3824 = vmatmul.f32.gmra.mxu0 %v3425
        %v3825 = vpop.f32.mrf.mxu0
        %v3826 = vadd.f32 %v3176, %v3825
        %3827 = vmatmul.f32.gmra.mxu0 %v3428
        %v3828 = vpop.f32.mrf.mxu0
        %v3829 = vadd.f32 %v3176, %v3828
        %3830 = vmatmul.f32.gmra.mxu0 %v3431
        %v3831 = vpop.f32.mrf.mxu0
        %v3832 = vadd.f32 %v3176, %v3831
        %3833 = vmatmul.f32.gmra.mxu0 %v3434
        %v3834 = vpop.f32.mrf.mxu0
        %v3835 = vadd.f32 %v3176, %v3834
        %3836 = vmatmul.f32.gmra.mxu0 %v3437
        %v3837 = vpop.f32.mrf.mxu0
        %v3838 = vadd.f32 %v3176, %v3837
        %3839 = vmatmul.f32.gmra.mxu0 %v3440
        %v3840 = vpop.f32.mrf.mxu0
        %v3841 = vadd.f32 %v3176, %v3840
        %3842 = vmatmul.f32.gmra.mxu0 %v3443
        %v3843 = vpop.f32.mrf.mxu0
        %v3844 = vadd.f32 %v3176, %v3843
        %3845 = vmatmul.f32.gmra.mxu0 %v3446
        %v3846 = vpop.f32.mrf.mxu0
        %v3847 = vadd.f32 %v3176, %v3846
        %3848 = vmatmul.f32.gmra.mxu0 %v3449
        %v3849 = vpop.f32.mrf.mxu0
        %v3850 = vadd.f32 %v3176, %v3849
        %3851 = vmatmul.f32.gmra.mxu0 %v3452
        %v3852 = vpop.f32.mrf.mxu0
        %v3853 = vadd.f32 %v3176, %v3852
        %3854 = vmatmul.f32.gmra.mxu0 %v3455
        %v3855 = vpop.f32.mrf.mxu0
        %v3856 = vadd.f32 %v3176, %v3855
        %3857 = vmatmul.f32.gmra.mxu0 %v3458
        %v3858 = vpop.f32.mrf.mxu0
        %v3859 = vadd.f32 %v3176, %v3858
        %3860 = vmatmul.f32.gmra.mxu0 %v3461
        %v3861 = vpop.f32.mrf.mxu0
        %v3862 = vadd.f32 %v3176, %v3861
        %3863 = vmatmul.f32.gmra.mxu0 %v3464
        %v3864 = vpop.f32.mrf.mxu0
        %v3865 = vadd.f32 %v3176, %v3864
        %3866 = vmatmul.f32.gmra.mxu0 %v3467
        %v3867 = vpop.f32.mrf.mxu0
        %v3868 = vadd.f32 %v3176, %v3867
        %3869 = vmatmul.f32.gmra.mxu0 %v3470
        %v3870 = vpop.f32.mrf.mxu0
        %v3871 = vadd.f32 %v3176, %v3870
        %3872 = vmatmul.f32.gmra.mxu0 %v3473
        %v3873 = vpop.f32.mrf.mxu0
        %v3874 = vadd.f32 %v3176, %v3873
        %3875 = vmatmul.f32.gmra.mxu0 %v3476
        %v3876 = vpop.f32.mrf.mxu0
        %v3877 = vadd.f32 %v3176, %v3876
        %3878 = vmatmul.f32.gmra.mxu0 %v3479
        %v3879 = vpop.f32.mrf.mxu0
        %v3880 = vadd.f32 %v3176, %v3879
        %3881 = vmatmul.f32.gmra.mxu0 %v3482
        %v3882 = vpop.f32.mrf.mxu0
        %v3883 = vadd.f32 %v3176, %v3882
        %3884 = vmatmul.f32.gmra.mxu0 %v3485
        %v3885 = vpop.f32.mrf.mxu0
        %v3886 = vadd.f32 %v3176, %v3885
        %3887 = vmatmul.f32.gmra.mxu0 %v3488
        %v3888 = vpop.f32.mrf.mxu0
        %v3889 = vadd.f32 %v3176, %v3888
        %3890 = vmatmul.f32.gmra.mxu0 %v3491
        %v3891 = vpop.f32.mrf.mxu0
        %v3892 = vadd.f32 %v3176, %v3891
        %3893 = vmatmul.f32.gmra.mxu0 %v3494
        %v3894 = vpop.f32.mrf.mxu0
        %v3895 = vadd.f32 %v3176, %v3894
        %3896 = vmatmul.f32.gmra.mxu0 %v3497
        %v3897 = vpop.f32.mrf.mxu0
        %v3898 = vadd.f32 %v3176, %v3897
        %3899 = vmatmul.f32.gmra.mxu0 %v3500
        %v3900 = vpop.f32.mrf.mxu0
        %v3901 = vadd.f32 %v3176, %v3900
        %3902 = vmatmul.f32.gmra.mxu0 %v3503
        %v3903 = vpop.f32.mrf.mxu0
        %v3904 = vadd.f32 %v3176, %v3903
        %3905 = vmatmul.f32.gmra.mxu0 %v3506
        %v3906 = vpop.f32.mrf.mxu0
        %v3907 = vadd.f32 %v3176, %v3906
        %3908 = vmatmul.f32.gmra.mxu0 %v3509
        %v3909 = vpop.f32.mrf.mxu0
        %v3910 = vadd.f32 %v3176, %v3909
        %3911 = vmatmul.f32.gmra.mxu0 %v3512
        %v3912 = vpop.f32.mrf.mxu0
        %v3913 = vadd.f32 %v3176, %v3912
        %3914 = vmatmul.f32.gmra.mxu0 %v3515
        %v3915 = vpop.f32.mrf.mxu0
        %v3916 = vadd.f32 %v3176, %v3915
        %3917 = vmatmul.f32.gmra.mxu0 %v3518
        %v3918 = vpop.f32.mrf.mxu0
        %v3919 = vadd.f32 %v3176, %v3918
        %3920 = vmatmul.f32.gmra.mxu0 %v3521
        %v3921 = vpop.f32.mrf.mxu0
        %v3922 = vadd.f32 %v3176, %v3921
        %3923 = vmatmul.f32.gmra.mxu0 %v3524
        %v3924 = vpop.f32.mrf.mxu0
        %v3925 = vadd.f32 %v3176, %v3924
        %3926 = vmatmul.f32.gmra.mxu0 %v3527
        %v3927 = vpop.f32.mrf.mxu0
        %v3928 = vadd.f32 %v3176, %v3927
        %3929 = vmatmul.f32.gmra.mxu0 %v3530
        %v3930 = vpop.f32.mrf.mxu0
        %v3931 = vadd.f32 %v3176, %v3930
        %3932 = vmatmul.f32.gmra.mxu0 %v3533
        %v3933 = vpop.f32.mrf.mxu0
        %v3934 = vadd.f32 %v3176, %v3933
        %3935 = vmatmul.f32.gmra.mxu0 %v3536
        %v3936 = vpop.f32.mrf.mxu0
        %v3937 = vadd.f32 %v3176, %v3936
        %3938 = vmatmul.f32.gmra.mxu0 %v3539
        %v3939 = vpop.f32.mrf.mxu0
        %v3940 = vadd.f32 %v3176, %v3939
        %3941 = vmatmul.f32.gmra.mxu0 %v3542
        %v3942 = vpop.f32.mrf.mxu0
        %v3943 = vadd.f32 %v3176, %v3942
        %3944 = vmatmul.f32.gmra.mxu0 %v3545
        %v3945 = vpop.f32.mrf.mxu0
        %v3946 = vadd.f32 %v3176, %v3945
        %3947 = vmatmul.f32.gmra.mxu0 %v3548
        %v3948 = vpop.f32.mrf.mxu0
        %v3949 = vadd.f32 %v3176, %v3948
        %3950 = vmatmul.f32.gmra.mxu0 %v3551
        %v3951 = vpop.f32.mrf.mxu0
        %v3952 = vadd.f32 %v3176, %v3951
        %3953 = vmatmul.f32.gmra.mxu0 %v3554
        %v3954 = vpop.f32.mrf.mxu0
        %v3955 = vadd.f32 %v3176, %v3954
        %3956 = vmatmul.f32.gmra.mxu0 %v3557
        %v3957 = vpop.f32.mrf.mxu0
        %v3958 = vadd.f32 %v3176, %v3957
        %3959 = vmatmul.f32.gmra.mxu0 %v3560
        %v3960 = vpop.f32.mrf.mxu0
        %v3961 = vadd.f32 %v3176, %v3960
        %3962 = vdwg.mxu0
        %v3963 = vmax.f32 %v3580, 0.0
        %v3964 = vmax.f32 %v3583, 0.0
        %v3965 = vmax.f32 %v3586, 0.0
        %v3966 = vmax.f32 %v3589, 0.0
        %v3967 = vmax.f32 %v3592, 0.0
        %v3968 = vmax.f32 %v3595, 0.0
        %v3969 = vmax.f32 %v3598, 0.0
        %v3970 = vmax.f32 %v3601, 0.0
        %v3971 = vmax.f32 %v3604, 0.0
        %v3972 = vmax.f32 %v3607, 0.0
        %v3973 = vmax.f32 %v3610, 0.0
        %v3974 = vmax.f32 %v3613, 0.0
        %v3975 = vmax.f32 %v3616, 0.0
        %v3976 = vmax.f32 %v3619, 0.0
        %v3977 = vmax.f32 %v3622, 0.0
        %v3978 = vmax.f32 %v3625, 0.0
        %v3979 = vmax.f32 %v3628, 0.0
        %v3980 = vmax.f32 %v3631, 0.0
        %v3981 = vmax.f32 %v3634, 0.0
        %v3982 = vmax.f32 %v3637, 0.0
        %v3983 = vmax.f32 %v3640, 0.0
        %v3984 = vmax.f32 %v3643, 0.0
        %v3985 = vmax.f32 %v3646, 0.0
        %v3986 = vmax.f32 %v3649, 0.0
        %v3987 = vmax.f32 %v3652, 0.0
        %v3988 = vmax.f32 %v3655, 0.0
        %v3989 = vmax.f32 %v3658, 0.0
        %v3990 = vmax.f32 %v3661, 0.0
        %v3991 = vmax.f32 %v3664, 0.0
        %v3992 = vmax.f32 %v3667, 0.0
        %v3993 = vmax.f32 %v3670, 0.0
        %v3994 = vmax.f32 %v3673, 0.0
        %v3995 = vmax.f32 %v3676, 0.0
        %v3996 = vmax.f32 %v3679, 0.0
        %v3997 = vmax.f32 %v3682, 0.0
        %v3998 = vmax.f32 %v3685, 0.0
        %v3999 = vmax.f32 %v3688, 0.0
        %v4000 = vmax.f32 %v3691, 0.0
        %v4001 = vmax.f32 %v3694, 0.0
        %v4002 = vmax.f32 %v3697, 0.0
        %v4003 = vmax.f32 %v3700, 0.0
        %v4004 = vmax.f32 %v3703, 0.0
        %v4005 = vmax.f32 %v3706, 0.0
        %v4006 = vmax.f32 %v3709, 0.0
        %v4007 = vmax.f32 %v3712, 0.0
        %v4008 = vmax.f32 %v3715, 0.0
        %v4009 = vmax.f32 %v3718, 0.0
        %v4010 = vmax.f32 %v3721, 0.0
        %v4011 = vmax.f32 %v3724, 0.0
        %v4012 = vmax.f32 %v3727, 0.0
        %v4013 = vmax.f32 %v3730, 0.0
        %v4014 = vmax.f32 %v3733, 0.0
        %v4015 = vmax.f32 %v3736, 0.0
        %v4016 = vmax.f32 %v3739, 0.0
        %v4017 = vmax.f32 %v3742, 0.0
        %v4018 = vmax.f32 %v3745, 0.0
        %v4019 = vmax.f32 %v3748, 0.0
        %v4020 = vmax.f32 %v3751, 0.0
        %v4021 = vmax.f32 %v3754, 0.0
        %v4022 = vmax.f32 %v3757, 0.0
        %v4023 = vmax.f32 %v3760, 0.0
        %v4024 = vmax.f32 %v3763, 0.0
        %v4025 = vmax.f32 %v3766, 0.0
        %v4026 = vmax.f32 %v3769, 0.0
        %v4027 = vmax.f32 %v3772, 0.0
        %v4028 = vmax.f32 %v3775, 0.0
        %v4029 = vmax.f32 %v3778, 0.0
        %v4030 = vmax.f32 %v3781, 0.0
        %v4031 = vmax.f32 %v3784, 0.0
        %v4032 = vmax.f32 %v3787, 0.0
        %v4033 = vmax.f32 %v3790, 0.0
        %v4034 = vmax.f32 %v3793, 0.0
        %v4035 = vmax.f32 %v3796, 0.0
        %v4036 = vmax.f32 %v3799, 0.0
        %v4037 = vmax.f32 %v3802, 0.0
        %v4038 = vmax.f32 %v3805, 0.0
        %v4039 = vmax.f32 %v3808, 0.0
        %v4040 = vmax.f32 %v3811, 0.0
        %v4041 = vmax.f32 %v3814, 0.0
        %v4042 = vmax.f32 %v3817, 0.0
        %v4043 = vmax.f32 %v3820, 0.0
        %v4044 = vmax.f32 %v3823, 0.0
        %v4045 = vmax.f32 %v3826, 0.0
        %v4046 = vmax.f32 %v3829, 0.0
        %v4047 = vmax.f32 %v3832, 0.0
        %v4048 = vmax.f32 %v3835, 0.0
        %v4049 = vmax.f32 %v3838, 0.0
        %v4050 = vmax.f32 %v3841, 0.0
        %v4051 = vmax.f32 %v3844, 0.0
        %v4052 = vmax.f32 %v3847, 0.0
        %v4053 = vmax.f32 %v3850, 0.0
        %v4054 = vmax.f32 %v3853, 0.0
        %v4055 = vmax.f32 %v3856, 0.0
        %v4056 = vmax.f32 %v3859, 0.0
        %v4057 = vmax.f32 %v3862, 0.0
        %v4058 = vmax.f32 %v3865, 0.0
        %v4059 = vmax.f32 %v3868, 0.0
        %v4060 = vmax.f32 %v3871, 0.0
        %v4061 = vmax.f32 %v3874, 0.0
        %v4062 = vmax.f32 %v3877, 0.0
        %v4063 = vmax.f32 %v3880, 0.0
        %v4064 = vmax.f32 %v3883, 0.0
        %v4065 = vmax.f32 %v3886, 0.0
        %v4066 = vmax.f32 %v3889, 0.0
        %v4067 = vmax.f32 %v3892, 0.0
        %v4068 = vmax.f32 %v3895, 0.0
        %v4069 = vmax.f32 %v3898, 0.0
        %v4070 = vmax.f32 %v3901, 0.0
        %v4071 = vmax.f32 %v3904, 0.0
        %v4072 = vmax.f32 %v3907, 0.0
        %v4073 = vmax.f32 %v3910, 0.0
        %v4074 = vmax.f32 %v3913, 0.0
        %v4075 = vmax.f32 %v3916, 0.0
        %v4076 = vmax.f32 %v3919, 0.0
        %v4077 = vmax.f32 %v3922, 0.0
        %v4078 = vmax.f32 %v3925, 0.0
        %v4079 = vmax.f32 %v3928, 0.0
        %v4080 = vmax.f32 %v3931, 0.0
        %v4081 = vmax.f32 %v3934, 0.0
        %v4082 = vmax.f32 %v3937, 0.0
        %v4083 = vmax.f32 %v3940, 0.0
        %v4084 = vmax.f32 %v3943, 0.0
        %v4085 = vmax.f32 %v3946, 0.0
        %v4086 = vmax.f32 %v3949, 0.0
        %v4087 = vmax.f32 %v3952, 0.0
        %v4088 = vmax.f32 %v3955, 0.0
        %v4089 = vmax.f32 %v3958, 0.0
        %v4090 = vmax.f32 %v3961, 0.0
        %v4091 = vld [vmem:[%s5] sm:$0x1]
        %v4092 = vld [vmem:[#allocation2] sm:$0x1]
        %4094 = vset.pattern.permute.xlu0 0
        %4095 = vperm.xlu0 %4094, %v4092
        %v4096 = vpop.permute.xlu0 %4095
        %v4098 = vperm.slane %v4096, 0
        %vm4099 = vcmask 261120
        %v4101 = vsel %vm4099, %v4091, 0
        %v4104 = vsel %vm4099, %v3963, 0
        %v4107 = vsel %vm4099, %v3964, 0
        %v4110 = vsel %vm4099, %v3965, 0
        %v4113 = vsel %vm4099, %v3966, 0
        %v4116 = vsel %vm4099, %v3967, 0
        %v4119 = vsel %vm4099, %v3968, 0
        %v4122 = vsel %vm4099, %v3969, 0
        %v4125 = vsel %vm4099, %v3970, 0
        %v4128 = vsel %vm4099, %v3971, 0
        %v4131 = vsel %vm4099, %v3972, 0
        %v4134 = vsel %vm4099, %v3973, 0
        %v4137 = vsel %vm4099, %v3974, 0
        %v4140 = vsel %vm4099, %v3975, 0
        %v4143 = vsel %vm4099, %v3976, 0
        %v4146 = vsel %vm4099, %v3977, 0
        %v4149 = vsel %vm4099, %v3978, 0
        %v4152 = vsel %vm4099, %v3979, 0
        %v4155 = vsel %vm4099, %v3980, 0
        %v4158 = vsel %vm4099, %v3981, 0
        %v4161 = vsel %vm4099, %v3982, 0
        %v4164 = vsel %vm4099, %v3983, 0
        %v4167 = vsel %vm4099, %v3984, 0
        %v4170 = vsel %vm4099, %v3985, 0
        %v4173 = vsel %vm4099, %v3986, 0
        %v4176 = vsel %vm4099, %v3987, 0
        %v4179 = vsel %vm4099, %v3988, 0
        %v4182 = vsel %vm4099, %v3989, 0
        %v4185 = vsel %vm4099, %v3990, 0
        %v4188 = vsel %vm4099, %v3991, 0
        %v4191 = vsel %vm4099, %v3992, 0
        %v4194 = vsel %vm4099, %v3993, 0
        %v4197 = vsel %vm4099, %v3994, 0
        %v4200 = vsel %vm4099, %v3995, 0
        %v4203 = vsel %vm4099, %v3996, 0
        %v4206 = vsel %vm4099, %v3997, 0
        %v4209 = vsel %vm4099, %v3998, 0
        %v4212 = vsel %vm4099, %v3999, 0
        %v4215 = vsel %vm4099, %v4000, 0
        %v4218 = vsel %vm4099, %v4001, 0
        %v4221 = vsel %vm4099, %v4002, 0
        %v4224 = vsel %vm4099, %v4003, 0
        %v4227 = vsel %vm4099, %v4004, 0
        %v4230 = vsel %vm4099, %v4005, 0
        %v4233 = vsel %vm4099, %v4006, 0
        %v4236 = vsel %vm4099, %v4007, 0
        %v4239 = vsel %vm4099, %v4008, 0
        %v4242 = vsel %vm4099, %v4009, 0
        %v4245 = vsel %vm4099, %v4010, 0
        %v4248 = vsel %vm4099, %v4011, 0
        %v4251 = vsel %vm4099, %v4012, 0
        %v4254 = vsel %vm4099, %v4013, 0
        %v4257 = vsel %vm4099, %v4014, 0
        %v4260 = vsel %vm4099, %v4015, 0
        %v4263 = vsel %vm4099, %v4016, 0
        %v4266 = vsel %vm4099, %v4017, 0
        %v4269 = vsel %vm4099, %v4018, 0
        %v4272 = vsel %vm4099, %v4019, 0
        %v4275 = vsel %vm4099, %v4020, 0
        %v4278 = vsel %vm4099, %v4021, 0
        %v4281 = vsel %vm4099, %v4022, 0
        %v4284 = vsel %vm4099, %v4023, 0
        %v4287 = vsel %vm4099, %v4024, 0
        %v4290 = vsel %vm4099, %v4025, 0
        %v4293 = vsel %vm4099, %v4026, 0
        %v4296 = vsel %vm4099, %v4027, 0
        %v4299 = vsel %vm4099, %v4028, 0
        %v4302 = vsel %vm4099, %v4029, 0
        %v4305 = vsel %vm4099, %v4030, 0
        %v4308 = vsel %vm4099, %v4031, 0
        %v4311 = vsel %vm4099, %v4032, 0
        %v4314 = vsel %vm4099, %v4033, 0
        %v4317 = vsel %vm4099, %v4034, 0
        %v4320 = vsel %vm4099, %v4035, 0
        %v4323 = vsel %vm4099, %v4036, 0
        %v4326 = vsel %vm4099, %v4037, 0
        %v4329 = vsel %vm4099, %v4038, 0
        %v4332 = vsel %vm4099, %v4039, 0
        %v4335 = vsel %vm4099, %v4040, 0
        %v4338 = vsel %vm4099, %v4041, 0
        %v4341 = vsel %vm4099, %v4042, 0
        %v4344 = vsel %vm4099, %v4043, 0
        %v4347 = vsel %vm4099, %v4044, 0
        %v4350 = vsel %vm4099, %v4045, 0
        %v4353 = vsel %vm4099, %v4046, 0
        %v4356 = vsel %vm4099, %v4047, 0
        %v4359 = vsel %vm4099, %v4048, 0
        %v4362 = vsel %vm4099, %v4049, 0
        %v4365 = vsel %vm4099, %v4050, 0
        %v4368 = vsel %vm4099, %v4051, 0
        %v4371 = vsel %vm4099, %v4052, 0
        %v4374 = vsel %vm4099, %v4053, 0
        %v4377 = vsel %vm4099, %v4054, 0
        %v4380 = vsel %vm4099, %v4055, 0
        %v4383 = vsel %vm4099, %v4056, 0
        %v4386 = vsel %vm4099, %v4057, 0
        %v4389 = vsel %vm4099, %v4058, 0
        %v4392 = vsel %vm4099, %v4059, 0
        %v4395 = vsel %vm4099, %v4060, 0
        %v4398 = vsel %vm4099, %v4061, 0
        %v4401 = vsel %vm4099, %v4062, 0
        %v4404 = vsel %vm4099, %v4063, 0
        %v4407 = vsel %vm4099, %v4064, 0
        %v4410 = vsel %vm4099, %v4065, 0
        %v4413 = vsel %vm4099, %v4066, 0
        %v4416 = vsel %vm4099, %v4067, 0
        %v4419 = vsel %vm4099, %v4068, 0
        %v4422 = vsel %vm4099, %v4069, 0
        %v4425 = vsel %vm4099, %v4070, 0
        %v4428 = vsel %vm4099, %v4071, 0
        %v4431 = vsel %vm4099, %v4072, 0
        %v4434 = vsel %vm4099, %v4073, 0
        %v4437 = vsel %vm4099, %v4074, 0
        %v4440 = vsel %vm4099, %v4075, 0
        %v4443 = vsel %vm4099, %v4076, 0
        %v4446 = vsel %vm4099, %v4077, 0
        %v4449 = vsel %vm4099, %v4078, 0
        %v4452 = vsel %vm4099, %v4079, 0
        %v4455 = vsel %vm4099, %v4080, 0
        %v4458 = vsel %vm4099, %v4081, 0
        %v4461 = vsel %vm4099, %v4082, 0
        %v4464 = vsel %vm4099, %v4083, 0
        %v4467 = vsel %vm4099, %v4084, 0
        %v4470 = vsel %vm4099, %v4085, 0
        %v4473 = vsel %vm4099, %v4086, 0
        %v4476 = vsel %vm4099, %v4087, 0
        %v4479 = vsel %vm4099, %v4088, 0
        %v4482 = vsel %vm4099, %v4089, 0
        %v4485 = vsel %vm4099, %v4090, 0
        %4487 = vmatpush.xpose.msra.mxu0 %v4149
        %4488 = vmatpush.xpose.msra.mxu0 %v4146
        %4489 = vmatpush.xpose.msra.mxu0 %v4143
        %4490 = vmatpush.xpose.msra.mxu0 %v4140
        %4491 = vmatpush.xpose.msra.mxu0 %v4137
        %4492 = vmatpush.xpose.msra.mxu0 %v4134
        %4493 = vmatpush.xpose.msra.mxu0 %v4131
        %4494 = vmatpush.xpose.msra.mxu0 %v4128
        %4495 = vmatpush.xpose.msra.mxu0 %v4125
        %4496 = vmatpush.xpose.msra.mxu0 %v4122
        %4497 = vmatpush.xpose.msra.mxu0 %v4119
        %4498 = vmatpush.xpose.msra.mxu0 %v4116
        %4499 = vmatpush.xpose.msra.mxu0 %v4113
        %4500 = vmatpush.xpose.msra.mxu0 %v4110
        %4501 = vmatpush.xpose.msra.mxu0 %v4107
        %4502 = vmatpush.xpose.msra.mxu0 %v4104
        %4503 = vmatmul.f32.gmra.mxu0 %v4101
        %v4504 = vpop.f32.mrf.mxu0
        %v4505 = vadd.f32 %v4098, %v4504
        %4506 = vdwg.mxu0
        %4507 = vmatpush.xpose.msra.mxu0 %v4197
        %4508 = vmatpush.xpose.msra.mxu0 %v4194
        %4509 = vmatpush.xpose.msra.mxu0 %v4191
        %4510 = vmatpush.xpose.msra.mxu0 %v4188
        %4511 = vmatpush.xpose.msra.mxu0 %v4185
        %4512 = vmatpush.xpose.msra.mxu0 %v4182
        %4513 = vmatpush.xpose.msra.mxu0 %v4179
        %4514 = vmatpush.xpose.msra.mxu0 %v4176
        %4515 = vmatpush.xpose.msra.mxu0 %v4173
        %4516 = vmatpush.xpose.msra.mxu0 %v4170
        %4517 = vmatpush.xpose.msra.mxu0 %v4167
        %4518 = vmatpush.xpose.msra.mxu0 %v4164
        %4519 = vmatpush.xpose.msra.mxu0 %v4161
        %4520 = vmatpush.xpose.msra.mxu0 %v4158
        %4521 = vmatpush.xpose.msra.mxu0 %v4155
        %4522 = vmatpush.xpose.msra.mxu0 %v4152
        %4523 = vmatmul.f32.gmra.mxu0 %v4101
        %v4524 = vpop.f32.mrf.mxu0
        %v4525 = vadd.f32 %v4098, %v4524
        %4526 = vdwg.mxu0
        %4527 = vmatpush.xpose.msra.mxu0 %v4245
        %4528 = vmatpush.xpose.msra.mxu0 %v4242
        %4529 = vmatpush.xpose.msra.mxu0 %v4239
        %4530 = vmatpush.xpose.msra.mxu0 %v4236
        %4531 = vmatpush.xpose.msra.mxu0 %v4233
        %4532 = vmatpush.xpose.msra.mxu0 %v4230
        %4533 = vmatpush.xpose.msra.mxu0 %v4227
        %4534 = vmatpush.xpose.msra.mxu0 %v4224
        %4535 = vmatpush.xpose.msra.mxu0 %v4221
        %4536 = vmatpush.xpose.msra.mxu0 %v4218
        %4537 = vmatpush.xpose.msra.mxu0 %v4215
        %4538 = vmatpush.xpose.msra.mxu0 %v4212
        %4539 = vmatpush.xpose.msra.mxu0 %v4209
        %4540 = vmatpush.xpose.msra.mxu0 %v4206
        %4541 = vmatpush.xpose.msra.mxu0 %v4203
        %4542 = vmatpush.xpose.msra.mxu0 %v4200
        %4543 = vmatmul.f32.gmra.mxu0 %v4101
        %v4544 = vpop.f32.mrf.mxu0
        %v4545 = vadd.f32 %v4098, %v4544
        %4546 = vdwg.mxu0
        %4547 = vmatpush.xpose.msra.mxu0 %v4293
        %4548 = vmatpush.xpose.msra.mxu0 %v4290
        %4549 = vmatpush.xpose.msra.mxu0 %v4287
        %4550 = vmatpush.xpose.msra.mxu0 %v4284
        %4551 = vmatpush.xpose.msra.mxu0 %v4281
        %4552 = vmatpush.xpose.msra.mxu0 %v4278
        %4553 = vmatpush.xpose.msra.mxu0 %v4275
        %4554 = vmatpush.xpose.msra.mxu0 %v4272
        %4555 = vmatpush.xpose.msra.mxu0 %v4269
        %4556 = vmatpush.xpose.msra.mxu0 %v4266
        %4557 = vmatpush.xpose.msra.mxu0 %v4263
        %4558 = vmatpush.xpose.msra.mxu0 %v4260
        %4559 = vmatpush.xpose.msra.mxu0 %v4257
        %4560 = vmatpush.xpose.msra.mxu0 %v4254
        %4561 = vmatpush.xpose.msra.mxu0 %v4251
        %4562 = vmatpush.xpose.msra.mxu0 %v4248
        %4563 = vmatmul.f32.gmra.mxu0 %v4101
        %v4564 = vpop.f32.mrf.mxu0
        %v4565 = vadd.f32 %v4098, %v4564
        %4566 = vdwg.mxu0
        %4567 = vmatpush.xpose.msra.mxu0 %v4341
        %4568 = vmatpush.xpose.msra.mxu0 %v4338
        %4569 = vmatpush.xpose.msra.mxu0 %v4335
        %4570 = vmatpush.xpose.msra.mxu0 %v4332
        %4571 = vmatpush.xpose.msra.mxu0 %v4329
        %4572 = vmatpush.xpose.msra.mxu0 %v4326
        %4573 = vmatpush.xpose.msra.mxu0 %v4323
        %4574 = vmatpush.xpose.msra.mxu0 %v4320
        %4575 = vmatpush.xpose.msra.mxu0 %v4317
        %4576 = vmatpush.xpose.msra.mxu0 %v4314
        %4577 = vmatpush.xpose.msra.mxu0 %v4311
        %4578 = vmatpush.xpose.msra.mxu0 %v4308
        %4579 = vmatpush.xpose.msra.mxu0 %v4305
        %4580 = vmatpush.xpose.msra.mxu0 %v4302
        %4581 = vmatpush.xpose.msra.mxu0 %v4299
        %4582 = vmatpush.xpose.msra.mxu0 %v4296
        %4583 = vmatmul.f32.gmra.mxu0 %v4101
        %v4584 = vpop.f32.mrf.mxu0
        %v4585 = vadd.f32 %v4098, %v4584
        %4586 = vdwg.mxu0
        %4587 = vmatpush.xpose.msra.mxu0 %v4389
        %4588 = vmatpush.xpose.msra.mxu0 %v4386
        %4589 = vmatpush.xpose.msra.mxu0 %v4383
        %4590 = vmatpush.xpose.msra.mxu0 %v4380
        %4591 = vmatpush.xpose.msra.mxu0 %v4377
        %4592 = vmatpush.xpose.msra.mxu0 %v4374
        %4593 = vmatpush.xpose.msra.mxu0 %v4371
        %4594 = vmatpush.xpose.msra.mxu0 %v4368
        %4595 = vmatpush.xpose.msra.mxu0 %v4365
        %4596 = vmatpush.xpose.msra.mxu0 %v4362
        %4597 = vmatpush.xpose.msra.mxu0 %v4359
        %4598 = vmatpush.xpose.msra.mxu0 %v4356
        %4599 = vmatpush.xpose.msra.mxu0 %v4353
        %4600 = vmatpush.xpose.msra.mxu0 %v4350
        %4601 = vmatpush.xpose.msra.mxu0 %v4347
        %4602 = vmatpush.xpose.msra.mxu0 %v4344
        %4603 = vmatmul.f32.gmra.mxu0 %v4101
        %v4604 = vpop.f32.mrf.mxu0
        %v4605 = vadd.f32 %v4098, %v4604
        %4606 = vdwg.mxu0
        %4607 = vmatpush.xpose.msra.mxu0 %v4437
        %4608 = vmatpush.xpose.msra.mxu0 %v4434
        %4609 = vmatpush.xpose.msra.mxu0 %v4431
        %4610 = vmatpush.xpose.msra.mxu0 %v4428
        %4611 = vmatpush.xpose.msra.mxu0 %v4425
        %4612 = vmatpush.xpose.msra.mxu0 %v4422
        %4613 = vmatpush.xpose.msra.mxu0 %v4419
        %4614 = vmatpush.xpose.msra.mxu0 %v4416
        %4615 = vmatpush.xpose.msra.mxu0 %v4413
        %4616 = vmatpush.xpose.msra.mxu0 %v4410
        %4617 = vmatpush.xpose.msra.mxu0 %v4407
        %4618 = vmatpush.xpose.msra.mxu0 %v4404
        %4619 = vmatpush.xpose.msra.mxu0 %v4401
        %4620 = vmatpush.xpose.msra.mxu0 %v4398
        %4621 = vmatpush.xpose.msra.mxu0 %v4395
        %4622 = vmatpush.xpose.msra.mxu0 %v4392
        %4623 = vmatmul.f32.gmra.mxu0 %v4101
        %v4624 = vpop.f32.mrf.mxu0
        %v4625 = vadd.f32 %v4098, %v4624
        %4626 = vdwg.mxu0
        %4627 = vmatpush.xpose.msra.mxu0 %v4485
        %4628 = vmatpush.xpose.msra.mxu0 %v4482
        %4629 = vmatpush.xpose.msra.mxu0 %v4479
        %4630 = vmatpush.xpose.msra.mxu0 %v4476
        %4631 = vmatpush.xpose.msra.mxu0 %v4473
        %4632 = vmatpush.xpose.msra.mxu0 %v4470
        %4633 = vmatpush.xpose.msra.mxu0 %v4467
        %4634 = vmatpush.xpose.msra.mxu0 %v4464
        %4635 = vmatpush.xpose.msra.mxu0 %v4461
        %4636 = vmatpush.xpose.msra.mxu0 %v4458
        %4637 = vmatpush.xpose.msra.mxu0 %v4455
        %4638 = vmatpush.xpose.msra.mxu0 %v4452
        %4639 = vmatpush.xpose.msra.mxu0 %v4449
        %4640 = vmatpush.xpose.msra.mxu0 %v4446
        %4641 = vmatpush.xpose.msra.mxu0 %v4443
        %4642 = vmatpush.xpose.msra.mxu0 %v4440
        %4643 = vmatmul.f32.gmra.mxu0 %v4101
        %v4644 = vpop.f32.mrf.mxu0
        %v4645 = vadd.f32 %v4098, %v4644
        %4646 = vdwg.mxu0
        %v4647 = vtanh.pop %v4505
        %v4648 = vtanh.pop %v4525
        %v4649 = vtanh.pop %v4545
        %v4650 = vtanh.pop %v4565
        %v4651 = vtanh.pop %v4585
        %v4652 = vtanh.pop %v4605
        %v4653 = vtanh.pop %v4625
        %v4654 = vtanh.pop %v4645
        %v4655 = vmul.f32 %v4647, 2.0
        %v4656 = vmul.f32 %v4648, 2.0
        %v4657 = vmul.f32 %v4649, 2.0
        %v4658 = vmul.f32 %v4650, 2.0
        %v4659 = vmul.f32 %v4651, 2.0
        %v4660 = vmul.f32 %v4652, 2.0
        %v4661 = vmul.f32 %v4653, 2.0
        %v4662 = vmul.f32 %v4654, 2.0
        %v4663 = vadd.f32 %v4655, 3.0
        %v4664 = vadd.f32 %v4656, 3.0
        %v4665 = vadd.f32 %v4657, 3.0
        %v4666 = vadd.f32 %v4658, 3.0
        %v4667 = vadd.f32 %v4659, 3.0
        %v4668 = vadd.f32 %v4660, 3.0
        %v4669 = vadd.f32 %v4661, 3.0
        %v4670 = vadd.f32 %v4662, 3.0
        %v4679 = vrot.slane %v4664, 7
        %v4680 = vrot.slane %v4665, 6
        %v4681 = vrot.slane %v4666, 5
        %v4682 = vrot.slane %v4667, 4
        %v4683 = vrot.slane %v4668, 3
        %v4684 = vrot.slane %v4669, 2
        %v4685 = vrot.slane %v4670, 1
        %vm4686 = vcmask 1040384
        %v4687 = vsel %vm4686, %v4663, %v4679
        %vm4688 = vcmask 1042434
        %v4689 = vsel %vm4688, %v4680, %v4681
        %vm4690 = vcmask 1041408
        %v4691 = vsel %vm4690, %v4687, %v4689
        %vm4692 = vcmask 1044484
        %v4693 = vsel %vm4692, %v4682, %v4683
        %vm4694 = vcmask 1046534
        %v4695 = vsel %vm4694, %v4684, %v4685
        %vm4696 = vcmask 1045508
        %v4697 = vsel %vm4696, %v4693, %v4695
        %vm4698 = vcmask 1043456
        %v4699 = vsel %vm4698, %v4691, %v4697
        %4701 = vst [vmem:[%s347] sm:$0xff] %v4699
        %s4702 = sand.u32 %s182, 1
        %s4703 = sand.u32 %s182, 1
        %s4704 = smul.addr %s4703, 512
        %s4705 = scalar_lea.vmem [#allocation3], %s4704
        %p4706 = scmp.lt.s32.totalorder %s22, 1
        %s4707 = scalar_select %p4706, %s22, 1
        %s4708 = smul.addr %s4707, 8
        %s4709 = scalar_lea.vmem %s8, %s4708
        // Predicated region
        $region49: #{sslmos_forward.1} parent=47 // pred_check
          %p4710 = pneg %p192
        $region50: #{sslmos_forward.1} parent=47 // pred_check_branch
          %4712 = sbr.rel (%p4710) target = $region52
        $region51: #{sslmos_forward.1} parent=47 // pred_region
          %s4713 = smul.u32 128, %s22
          %s4714 = ssub.s32 150, %s4713
          %p4715 = scmp.lt.s32.totalorder %s4714, 128
          %s4716 = scalar_select %p4715, %s4714, 128
          %s4717 = smul.u32 4, %s4716
          %p4718 = scmp.ne.s32.totalorder 0, %s4717
          %s4719 = smul.addr %s4713, 4
          %s4720 = scalar_lea.vmem %s7, %s4719
          // Predicated region
          $region53: #{sslmos_forward.1} parent=51 // pred_check
            %p4721 = pneg %p4718
          $region54: #{sslmos_forward.1} parent=51 // pred_check_branch
            %4723 = sbr.rel (%p4721) target = $region56
          $region55: #{sslmos_forward.1} parent=51 // pred_region
            // Predicated region
            $region57: #{sslmos_forward.1} parent=55 // pred_check
              _
            $region58: #{sslmos_forward.1} parent=55 // pred_check_branch
              %4725 = sbr.rel target = $region60
            $region59: #{sslmos_forward.1} parent=55 // pred_region
              // Predicated region
              $region79: #{sslmos_forward.1} parent=59 // pred_check
                _
              $region80: #{sslmos_forward.1} parent=59 // pred_check_branch
                %4837 = sbr.rel (0) target = $region82
              $region81: #{sslmos_forward.1} parent=59 // pred_region
                %s4839 = ssub.s32 16, 1
                %s4840 = sshrl.u32 %s4716, 5
                // While loop
                $region83: #{sslmos_forward.1} parent=81 // loop_pre_header
                  _
                $region84: #{sslmos_forward.1} parent=81 // loop_header
                  %s4842 = sphi 0, %s4844
                  %p4843 = scmp.ge.s32.totalorder %s4842, %s4840
                  %s4847 = sphi 0, %s4916
                  %s4848 = sphi %s4705, %s4919
                  %s4849 = sphi %s4720, %s4920
                $region85: #{sslmos_forward.1} parent=81 // loop_header_branch
                  %4846 = sbr.rel (%p4843) target = $region89
                $region86: #{sslmos_forward.1} parent=81 // loop_body
                  %v4850 = vld [vmem:[%s4848] sm:%s4839]
                  %4851 = vst [vmem:[%s4849] sm:%s4839] %v4850
                  %v4852 = vld [vmem:[%s4848 + $0x4] sm:%s4839]
                  %4853 = vst [vmem:[%s4849 + $0x4] sm:%s4839] %v4852
                  %v4854 = vld [vmem:[%s4848 + $0x8] sm:%s4839]
                  %4855 = vst [vmem:[%s4849 + $0x8] sm:%s4839] %v4854
                  %v4856 = vld [vmem:[%s4848 + $0xc] sm:%s4839]
                  %4857 = vst [vmem:[%s4849 + $0xc] sm:%s4839] %v4856
                  %v4858 = vld [vmem:[%s4848 + $0x10] sm:%s4839]
                  %4859 = vst [vmem:[%s4849 + $0x10] sm:%s4839] %v4858
                  %v4860 = vld [vmem:[%s4848 + $0x14] sm:%s4839]
                  %4861 = vst [vmem:[%s4849 + $0x14] sm:%s4839] %v4860
                  %v4862 = vld [vmem:[%s4848 + $0x18] sm:%s4839]
                  %4863 = vst [vmem:[%s4849 + $0x18] sm:%s4839] %v4862
                  %v4864 = vld [vmem:[%s4848 + $0x1c] sm:%s4839]
                  %4865 = vst [vmem:[%s4849 + $0x1c] sm:%s4839] %v4864
                  %v4866 = vld [vmem:[%s4848 + $0x20] sm:%s4839]
                  %4867 = vst [vmem:[%s4849 + $0x20] sm:%s4839] %v4866
                  %v4868 = vld [vmem:[%s4848 + $0x24] sm:%s4839]
                  %4869 = vst [vmem:[%s4849 + $0x24] sm:%s4839] %v4868
                  %v4870 = vld [vmem:[%s4848 + $0x28] sm:%s4839]
                  %4871 = vst [vmem:[%s4849 + $0x28] sm:%s4839] %v4870
                  %v4872 = vld [vmem:[%s4848 + $0x2c] sm:%s4839]
                  %4873 = vst [vmem:[%s4849 + $0x2c] sm:%s4839] %v4872
                  %v4874 = vld [vmem:[%s4848 + $0x30] sm:%s4839]
                  %4875 = vst [vmem:[%s4849 + $0x30] sm:%s4839] %v4874
                  %v4876 = vld [vmem:[%s4848 + $0x34] sm:%s4839]
                  %4877 = vst [vmem:[%s4849 + $0x34] sm:%s4839] %v4876
                  %v4878 = vld [vmem:[%s4848 + $0x38] sm:%s4839]
                  %4879 = vst [vmem:[%s4849 + $0x38] sm:%s4839] %v4878
                  %v4880 = vld [vmem:[%s4848 + $0x3c] sm:%s4839]
                  %4881 = vst [vmem:[%s4849 + $0x3c] sm:%s4839] %v4880
                  %v4882 = vld [vmem:[%s4848 + $0x40] sm:%s4839]
                  %4883 = vst [vmem:[%s4849 + $0x40] sm:%s4839] %v4882
                  %v4884 = vld [vmem:[%s4848 + $0x44] sm:%s4839]
                  %4885 = vst [vmem:[%s4849 + $0x44] sm:%s4839] %v4884
                  %v4886 = vld [vmem:[%s4848 + $0x48] sm:%s4839]
                  %4887 = vst [vmem:[%s4849 + $0x48] sm:%s4839] %v4886
                  %v4888 = vld [vmem:[%s4848 + $0x4c] sm:%s4839]
                  %4889 = vst [vmem:[%s4849 + $0x4c] sm:%s4839] %v4888
                  %v4890 = vld [vmem:[%s4848 + $0x50] sm:%s4839]
                  %4891 = vst [vmem:[%s4849 + $0x50] sm:%s4839] %v4890
                  %v4892 = vld [vmem:[%s4848 + $0x54] sm:%s4839]
                  %4893 = vst [vmem:[%s4849 + $0x54] sm:%s4839] %v4892
                  %v4894 = vld [vmem:[%s4848 + $0x58] sm:%s4839]
                  %4895 = vst [vmem:[%s4849 + $0x58] sm:%s4839] %v4894
                  %v4896 = vld [vmem:[%s4848 + $0x5c] sm:%s4839]
                  %4897 = vst [vmem:[%s4849 + $0x5c] sm:%s4839] %v4896
                  %v4898 = vld [vmem:[%s4848 + $0x60] sm:%s4839]
                  %4899 = vst [vmem:[%s4849 + $0x60] sm:%s4839] %v4898
                  %v4900 = vld [vmem:[%s4848 + $0x64] sm:%s4839]
                  %4901 = vst [vmem:[%s4849 + $0x64] sm:%s4839] %v4900
                  %v4902 = vld [vmem:[%s4848 + $0x68] sm:%s4839]
                  %4903 = vst [vmem:[%s4849 + $0x68] sm:%s4839] %v4902
                  %v4904 = vld [vmem:[%s4848 + $0x6c] sm:%s4839]
                  %4905 = vst [vmem:[%s4849 + $0x6c] sm:%s4839] %v4904
                  %v4906 = vld [vmem:[%s4848 + $0x70] sm:%s4839]
                  %4907 = vst [vmem:[%s4849 + $0x70] sm:%s4839] %v4906
                  %v4908 = vld [vmem:[%s4848 + $0x74] sm:%s4839]
                  %4909 = vst [vmem:[%s4849 + $0x74] sm:%s4839] %v4908
                  %v4910 = vld [vmem:[%s4848 + $0x78] sm:%s4839]
                  %4911 = vst [vmem:[%s4849 + $0x78] sm:%s4839] %v4910
                  %v4912 = vld [vmem:[%s4848 + $0x7c] sm:%s4839]
                  %4913 = vst [vmem:[%s4849 + $0x7c] sm:%s4839] %v4912
                  %s4914 = sadd.s32 1, %s4847
                  %p4915 = scmp.ge.s32.totalorder %s4914, %s4840
                  %s4916 = scalar_select %p4915, 0, %s4914
                  %s4917 = smul.u32 %s4916, 128
                  %s4918 = smul.u32 %s4916, 128
                  %s4919 = scalar_lea.vmem %s4705, %s4917 [#allocation3]
                  %s4920 = scalar_lea.vmem %s4720, %s4918
                $region87: #{sslmos_forward.1} parent=81 // loop_footer
                  %s4844 = sadd.s32 %s4842, 1
                $region88: #{sslmos_forward.1} parent=81 // loop_footer_branch
                  %4841 = sbr.rel target = $region84
                $region89: #{sslmos_forward.1} parent=81 // loop_exit
                  _
                %s4921 = sshrl.u32 %s4716, 5
                %s4922 = sand.u32 %s4716, 31
                %s4923 = smul.u32 %s4921, 32
                %s4924 = smul.u32 4, %s4923
                %s4925 = scalar_lea.vmem %s4705, %s4924 [#allocation3]
                %s4926 = smul.u32 4, %s4923
                %s4927 = scalar_lea.vmem %s4720, %s4926
                // While loop
                $region90: #{sslmos_forward.1} parent=81 // loop_pre_header
                  _
                $region91: #{sslmos_forward.1} parent=81 // loop_header
                  %s4929 = sphi 0, %s4931
                  %p4930 = scmp.ge.s32.totalorder %s4929, %s4922
                  %s4934 = sphi 0, %s4941
                  %s4935 = sphi %s4925, %s4944
                  %s4936 = sphi %s4927, %s4945
                $region92: #{sslmos_forward.1} parent=81 // loop_header_branch
                  %4933 = sbr.rel (%p4930) target = $region96
                $region93: #{sslmos_forward.1} parent=81 // loop_body
                  %v4937 = vld [vmem:[%s4935] sm:%s4839]
                  %4938 = vst [vmem:[%s4936] sm:%s4839] %v4937
                  %s4939 = sadd.s32 1, %s4934
                  %p4940 = scmp.ge.s32.totalorder %s4939, %s4922
                  %s4941 = scalar_select %p4940, 0, %s4939
                  %s4942 = smul.u32 %s4941, 4
                  %s4943 = smul.u32 %s4941, 4
                  %s4944 = scalar_lea.vmem %s4925, %s4942 [#allocation3]
                  %s4945 = scalar_lea.vmem %s4927, %s4943
                $region94: #{sslmos_forward.1} parent=81 // loop_footer
                  %s4931 = sadd.s32 %s4929, 1
                $region95: #{sslmos_forward.1} parent=81 // loop_footer_branch
                  %4928 = sbr.rel target = $region91
                $region96: #{sslmos_forward.1} parent=81 // loop_exit
                  _
              $region82: #{sslmos_forward.1} parent=59 // pred_fallthru
                _
            $region60: #{sslmos_forward.1} parent=55 // pred_fallthru
              _
            // Predicated region
            $region61: #{sslmos_forward.1} parent=55 // pred_check
              _
            $region62: #{sslmos_forward.1} parent=55 // pred_check_branch
              %4727 = sbr.rel (0) target = $region64
            $region63: #{sslmos_forward.1} parent=55 // pred_region
              %s4729 = ssub.s32 16, 1
              %s4730 = sshrl.u32 %s4716, 5
              // While loop
              $region65: #{sslmos_forward.1} parent=63 // loop_pre_header
                _
              $region66: #{sslmos_forward.1} parent=63 // loop_header
                %s4732 = sphi 0, %s4734
                %p4733 = scmp.ge.s32.totalorder %s4732, %s4730
                %s4737 = sphi 0, %s4806
                %s4738 = sphi %s4705, %s4809
                %s4739 = sphi %s4720, %s4810
              $region67: #{sslmos_forward.1} parent=63 // loop_header_branch
                %4736 = sbr.rel (%p4733) target = $region71
              $region68: #{sslmos_forward.1} parent=63 // loop_body
                %v4740 = vld [vmem:[%s4738] sm:%s4729]
                %4741 = vst [vmem:[%s4739] sm:%s4729] %v4740
                %v4742 = vld [vmem:[%s4738 + $0x4] sm:%s4729]
                %4743 = vst [vmem:[%s4739 + $0x4] sm:%s4729] %v4742
                %v4744 = vld [vmem:[%s4738 + $0x8] sm:%s4729]
                %4745 = vst [vmem:[%s4739 + $0x8] sm:%s4729] %v4744
                %v4746 = vld [vmem:[%s4738 + $0xc] sm:%s4729]
                %4747 = vst [vmem:[%s4739 + $0xc] sm:%s4729] %v4746
                %v4748 = vld [vmem:[%s4738 + $0x10] sm:%s4729]
                %4749 = vst [vmem:[%s4739 + $0x10] sm:%s4729] %v4748
                %v4750 = vld [vmem:[%s4738 + $0x14] sm:%s4729]
                %4751 = vst [vmem:[%s4739 + $0x14] sm:%s4729] %v4750
                %v4752 = vld [vmem:[%s4738 + $0x18] sm:%s4729]
                %4753 = vst [vmem:[%s4739 + $0x18] sm:%s4729] %v4752
                %v4754 = vld [vmem:[%s4738 + $0x1c] sm:%s4729]
                %4755 = vst [vmem:[%s4739 + $0x1c] sm:%s4729] %v4754
                %v4756 = vld [vmem:[%s4738 + $0x20] sm:%s4729]
                %4757 = vst [vmem:[%s4739 + $0x20] sm:%s4729] %v4756
                %v4758 = vld [vmem:[%s4738 + $0x24] sm:%s4729]
                %4759 = vst [vmem:[%s4739 + $0x24] sm:%s4729] %v4758
                %v4760 = vld [vmem:[%s4738 + $0x28] sm:%s4729]
                %4761 = vst [vmem:[%s4739 + $0x28] sm:%s4729] %v4760
                %v4762 = vld [vmem:[%s4738 + $0x2c] sm:%s4729]
                %4763 = vst [vmem:[%s4739 + $0x2c] sm:%s4729] %v4762
                %v4764 = vld [vmem:[%s4738 + $0x30] sm:%s4729]
                %4765 = vst [vmem:[%s4739 + $0x30] sm:%s4729] %v4764
                %v4766 = vld [vmem:[%s4738 + $0x34] sm:%s4729]
                %4767 = vst [vmem:[%s4739 + $0x34] sm:%s4729] %v4766
                %v4768 = vld [vmem:[%s4738 + $0x38] sm:%s4729]
                %4769 = vst [vmem:[%s4739 + $0x38] sm:%s4729] %v4768
                %v4770 = vld [vmem:[%s4738 + $0x3c] sm:%s4729]
                %4771 = vst [vmem:[%s4739 + $0x3c] sm:%s4729] %v4770
                %v4772 = vld [vmem:[%s4738 + $0x40] sm:%s4729]
                %4773 = vst [vmem:[%s4739 + $0x40] sm:%s4729] %v4772
                %v4774 = vld [vmem:[%s4738 + $0x44] sm:%s4729]
                %4775 = vst [vmem:[%s4739 + $0x44] sm:%s4729] %v4774
                %v4776 = vld [vmem:[%s4738 + $0x48] sm:%s4729]
                %4777 = vst [vmem:[%s4739 + $0x48] sm:%s4729] %v4776
                %v4778 = vld [vmem:[%s4738 + $0x4c] sm:%s4729]
                %4779 = vst [vmem:[%s4739 + $0x4c] sm:%s4729] %v4778
                %v4780 = vld [vmem:[%s4738 + $0x50] sm:%s4729]
                %4781 = vst [vmem:[%s4739 + $0x50] sm:%s4729] %v4780
                %v4782 = vld [vmem:[%s4738 + $0x54] sm:%s4729]
                %4783 = vst [vmem:[%s4739 + $0x54] sm:%s4729] %v4782
                %v4784 = vld [vmem:[%s4738 + $0x58] sm:%s4729]
                %4785 = vst [vmem:[%s4739 + $0x58] sm:%s4729] %v4784
                %v4786 = vld [vmem:[%s4738 + $0x5c] sm:%s4729]
                %4787 = vst [vmem:[%s4739 + $0x5c] sm:%s4729] %v4786
                %v4788 = vld [vmem:[%s4738 + $0x60] sm:%s4729]
                %4789 = vst [vmem:[%s4739 + $0x60] sm:%s4729] %v4788
                %v4790 = vld [vmem:[%s4738 + $0x64] sm:%s4729]
                %4791 = vst [vmem:[%s4739 + $0x64] sm:%s4729] %v4790
                %v4792 = vld [vmem:[%s4738 + $0x68] sm:%s4729]
                %4793 = vst [vmem:[%s4739 + $0x68] sm:%s4729] %v4792
                %v4794 = vld [vmem:[%s4738 + $0x6c] sm:%s4729]
                %4795 = vst [vmem:[%s4739 + $0x6c] sm:%s4729] %v4794
                %v4796 = vld [vmem:[%s4738 + $0x70] sm:%s4729]
                %4797 = vst [vmem:[%s4739 + $0x70] sm:%s4729] %v4796
                %v4798 = vld [vmem:[%s4738 + $0x74] sm:%s4729]
                %4799 = vst [vmem:[%s4739 + $0x74] sm:%s4729] %v4798
                %v4800 = vld [vmem:[%s4738 + $0x78] sm:%s4729]
                %4801 = vst [vmem:[%s4739 + $0x78] sm:%s4729] %v4800
                %v4802 = vld [vmem:[%s4738 + $0x7c] sm:%s4729]
                %4803 = vst [vmem:[%s4739 + $0x7c] sm:%s4729] %v4802
                %s4804 = sadd.s32 1, %s4737
                %p4805 = scmp.ge.s32.totalorder %s4804, %s4730
                %s4806 = scalar_select %p4805, 0, %s4804
                %s4807 = smul.u32 %s4806, 128
                %s4808 = smul.u32 %s4806, 128
                %s4809 = scalar_lea.vmem %s4705, %s4807 [#allocation3]
                %s4810 = scalar_lea.vmem %s4720, %s4808
              $region69: #{sslmos_forward.1} parent=63 // loop_footer
                %s4734 = sadd.s32 %s4732, 1
              $region70: #{sslmos_forward.1} parent=63 // loop_footer_branch
                %4731 = sbr.rel target = $region66
              $region71: #{sslmos_forward.1} parent=63 // loop_exit
                _
              %s4811 = sshrl.u32 %s4716, 5
              %s4812 = sand.u32 %s4716, 31
              %s4813 = smul.u32 %s4811, 32
              %s4814 = smul.u32 4, %s4813
              %s4815 = scalar_lea.vmem %s4705, %s4814 [#allocation3]
              %s4816 = smul.u32 4, %s4813
              %s4817 = scalar_lea.vmem %s4720, %s4816
              // While loop
              $region72: #{sslmos_forward.1} parent=63 // loop_pre_header
                _
              $region73: #{sslmos_forward.1} parent=63 // loop_header
                %s4819 = sphi 0, %s4821
                %p4820 = scmp.ge.s32.totalorder %s4819, %s4812
                %s4824 = sphi 0, %s4831
                %s4825 = sphi %s4815, %s4834
                %s4826 = sphi %s4817, %s4835
              $region74: #{sslmos_forward.1} parent=63 // loop_header_branch
                %4823 = sbr.rel (%p4820) target = $region78
              $region75: #{sslmos_forward.1} parent=63 // loop_body
                %v4827 = vld [vmem:[%s4825] sm:%s4729]
                %4828 = vst [vmem:[%s4826] sm:%s4729] %v4827
                %s4829 = sadd.s32 1, %s4824
                %p4830 = scmp.ge.s32.totalorder %s4829, %s4812
                %s4831 = scalar_select %p4830, 0, %s4829
                %s4832 = smul.u32 %s4831, 4
                %s4833 = smul.u32 %s4831, 4
                %s4834 = scalar_lea.vmem %s4815, %s4832 [#allocation3]
                %s4835 = scalar_lea.vmem %s4817, %s4833
              $region76: #{sslmos_forward.1} parent=63 // loop_footer
                %s4821 = sadd.s32 %s4819, 1
              $region77: #{sslmos_forward.1} parent=63 // loop_footer_branch
                %4818 = sbr.rel target = $region73
              $region78: #{sslmos_forward.1} parent=63 // loop_exit
                _
            $region64: #{sslmos_forward.1} parent=55 // pred_fallthru
              _
          $region56: #{sslmos_forward.1} parent=51 // pred_fallthru
            _
          %4946 = vnop
        $region52: #{sslmos_forward.1} parent=47 // pred_fallthru
          _
        // Predicated region
        $region97: #{sslmos_forward.1} parent=47 // pred_check
          %p4947 = pneg %p218
        $region98: #{sslmos_forward.1} parent=47 // pred_check_branch
          %4949 = sbr.rel (%p4947) target = $region100
        $region99: #{sslmos_forward.1} parent=47 // pred_region
          _
        $region100: #{sslmos_forward.1} parent=47 // pred_fallthru
          _
      $region48: #{sslmos_forward.1} parent=5 // pred_fallthru
        _
      %p4950 = scmp.le.s32.totalorder 2, %s17
      // Predicated region
      $region101: #{sslmos_forward.1} parent=5 // pred_check
        %p4951 = pneg %p4950
      $region102: #{sslmos_forward.1} parent=5 // pred_check_branch
        %4953 = sbr.rel (%p4951) target = $region104
      $region103: #{sslmos_forward.1} parent=5 // pred_region
        %s4954 = ssub.s32 %s17, 2
        // Predicated region
        $region105: #{sslmos_forward.1} parent=103 // pred_check
          %p4955 = pneg %p198
        $region106: #{sslmos_forward.1} parent=103 // pred_check_branch
          %4957 = sbr.rel (%p4955) target = $region108
        $region107: #{sslmos_forward.1} parent=103 // pred_region
          %s4958 = sand.u32 %s183, 1
          %s4959 = sand.u32 %s183, 1
          %s4960 = smul.addr %s4959, 512
          %s4961 = scalar_lea.vmem [#allocation3], %s4960
        $region108: #{sslmos_forward.1} parent=103 // pred_fallthru
          _
        // Predicated region
        $region109: #{sslmos_forward.1} parent=103 // pred_check
          %p4962 = pneg %p224
        $region110: #{sslmos_forward.1} parent=103 // pred_check_branch
          %4964 = sbr.rel (%p4962) target = $region112
        $region111: #{sslmos_forward.1} parent=103 // pred_region
          %p4965 = scmp.lt.s32.totalorder %s23, 1
          %s4966 = scalar_select %p4965, %s23, 1
          %s4967 = smul.addr %s4966, 8
          %s4968 = scalar_lea.vmem %s8, %s4967
        $region112: #{sslmos_forward.1} parent=103 // pred_fallthru
          _
      $region104: #{sslmos_forward.1} parent=5 // pred_fallthru
        _
    $region6: #{sslmos_forward.1} parent=1 // loop_footer
      %s21 = sadd.s32 1, %s17
    $region7: #{sslmos_forward.1} parent=1 // loop_footer_branch
      %16 = sbr.rel target = $region3
    $region8: #{sslmos_forward.1} parent=1 // loop_exit
      _

</llo_original>
